<compile_context>
chip_gen: v7x
topology: tpu7x:2x2x1
jax: 0.10.0
libtpu: 0.0.40
codegen_flags: <defaults>
</compile_context>

<pallas_src>
import jax
import jax.numpy as jnp
from jax.experimental import pallas as pl
from jax.experimental.pallas import tpu as pltpu


IN_FEATURES = 2048   # resnet50.fc.in_features
EMBED_SIZE = 256     # embed_size passed to EncoderCNN.__init__


def _encoder_head_kernel(x_ref, w_ref, b_ref, o_ref):
    """Fused avg-pool + flatten + (eval-mode identity) dropout + linear.

    x_ref: (TB, HW, C)  feature-map batch tile, channels-last (C on lanes)
    w_ref: (C, E)       embed weight^T, pre-scaled by 1/HW, bf16, VMEM-resident
    b_ref: (1, E)       embed bias, f32, VMEM-resident
    o_ref: (TB, E)      output embeddings (f32)
    """
    # AdaptiveAvgPool2d((1,1)): spatial sum in f32 (the 1/HW is folded into w).
    # The following .view(B, -1) is a no-op on this layout.
    pooled = jnp.sum(x_ref[...].astype(jnp.float32), axis=1)            # (TB, C)
    # nn.Dropout2d(p=0.2) in eval mode is the identity (deterministic forward).
    # Linear: pooled @ (W^T / HW) + b  — bf16 MXU matmul, f32 accumulate.
    o_ref[...] = (
        jnp.dot(pooled.astype(w_ref.dtype), w_ref[...],
                preferred_element_type=jnp.float32)
        + b_ref[...]
    )


def encoder_cnn_head(features_nhwc, w_embed, b_embed, *, tb=32):
    """features_nhwc: (B, H, W, C) channels-last backbone feature map
       (TPU-native layout; ideally already bf16 from the frozen trunk).
    w_embed: (E, C) PyTorch-convention Linear weight.  b_embed: (E,).
    Returns (B, E) float32 embeddings."""
    B, H, W, C = features_nhwc.shape
    E = w_embed.shape[0]
    HW = H * W

    # Free reshape (contiguous dims merge) — no HBM transpose pass.
    x = features_nhwc.reshape(B, HW, C)

    # Fold the 1/HW mean into the tiny weight; bf16 for the MXU.
    wt = (jnp.transpose(w_embed).astype(jnp.float32) * (1.0 / HW)).astype(jnp.bfloat16)
    bias = b_embed.astype(jnp.float32).reshape(1, E)

    # Batch tile: single block if the batch is small, else a multiple of 8
    # (sublane alignment for the (TB, E) output block) with zero padding.
    if B <= tb:
        tb = B
        n_b = 1
    else:
        tb = max(8, (tb // 8) * 8)
        n_b = pl.cdiv(B, tb)
        pad = n_b * tb - B
        if pad:
            x = jnp.pad(x, ((0, pad), (0, 0), (0, 0)))

    cost = pl.CostEstimate(
        flops=2 * B * C * E + B * HW * C,
        transcendentals=0,
        bytes_accessed=(x.size * x.dtype.itemsize
                        + wt.size * wt.dtype.itemsize
                        + n_b * tb * E * 4),
    )

    out = pl.pallas_call(
        _encoder_head_kernel,
        out_shape=jax.ShapeDtypeStruct((n_b * tb, E), jnp.float32),
        grid=(n_b,),
        in_specs=[
            pl.BlockSpec((tb, HW, C), lambda b: (b, 0, 0)),   # features: batch-tiled, pipelined
            pl.BlockSpec((C, E), lambda b: (0, 0)),           # W^T: resident across grid steps
            pl.BlockSpec((1, E), lambda b: (0, 0)),           # bias: resident across grid steps
        ],
        out_specs=pl.BlockSpec((tb, E), lambda b: (b, 0)),
        compiler_params=pltpu.CompilerParams(
            dimension_semantics=("parallel",)),               # shard batch tiles over v7x's 2 TCs
        cost_estimate=cost,
    )(x, wt, bias)

    return out[:B]


def _reference(features_nhwc, w_embed, b_embed):
    xf = features_nhwc.astype(jnp.float32)
    pooled = jnp.mean(xf, axis=(1, 2))                        # (B, C)
    return pooled @ w_embed.T.astype(jnp.float32) + b_embed.astype(jnp.float32)


if __name__ == "__main__":
    key = jax.random.PRNGKey(0)
    k_feat, k_w, k_b = jax.random.split(key, 3)

    # Small stand-in shapes: B=16 with tb=8 exercises a 2-step pipelined grid;
    # H=W=4 stands in for the 7x7 resnet feature map; C/E are the module's real sizes.
    B, H, W, C = 16, 4, 4, IN_FEATURES
    E = EMBED_SIZE

    # Synthetic backbone feature map (stands in for self.resnet(images) output),
    # carried in bf16 as the frozen trunk would produce on TPU.
    features = jax.random.normal(
        k_feat, (B, H, W, C), dtype=jnp.float32).astype(jnp.bfloat16)

    # Deterministic Linear init (PyTorch default: U(-1/sqrt(fan_in), 1/sqrt(fan_in))).
    bound = 1.0 / (C ** 0.5)
    w_embed = jax.random.uniform(k_w, (E, C), jnp.float32, -bound, bound)
    b_embed = jax.random.uniform(k_b, (E,), jnp.float32, -bound, bound)

    out = encoder_cnn_head(features, w_embed, b_embed, tb=8)
    out = jax.block_until_ready(out)

    ref = _reference(features, w_embed, b_embed)
    assert out.shape == (B, E), out.shape
    max_err = float(jnp.max(jnp.abs(out - ref)))
    assert jnp.allclose(out, ref, atol=3e-2, rtol=3e-2), max_err

    print("KERNEL_OK")
</pallas_src>

<mosaic_0001>
module attributes {stable_mosaic.version = 11 : i64} {
  func.func @_encoder_head_kernel(%arg0: i32, %arg1: memref<8x16x2048xbf16, #tpu.memory_space<vmem>>, %arg2: memref<2048x256xbf16, #tpu.memory_space<vmem>>, %arg3: memref<1x256xf32, #tpu.memory_space<vmem>>, %arg4: memref<8x256xf32, #tpu.memory_space<vmem>>) attributes {dimension_semantics = [#tpu.dimension_semantics<parallel>], iteration_bounds = array<i64: 2>, scalar_prefetch = 0 : i64, scratch_operands = 0 : i64, tpu.core_type = #tpu.core_type<tc>, window_params = [{transform_indices = @transform_0, window_bounds = array<i64: 8, 16, 2048>}, {pipeline_mode = #tpu.pipeline_mode<synchronous>, transform_indices = @transform_1, window_bounds = array<i64: 2048, 256>}, {pipeline_mode = #tpu.pipeline_mode<synchronous>, transform_indices = @transform_2, window_bounds = array<i64: 1, 256>}, {transform_indices = @transform_3, window_bounds = array<i64: 8, 256>}]} {
    %c0 = arith.constant 0 : index
    %c0_0 = arith.constant 0 : index
    %c0_1 = arith.constant 0 : index
    %0 = vector.load %arg1[%c0, %c0_0, %c0_1] : memref<8x16x2048xbf16, #tpu.memory_space<vmem>>, vector<8x16x2048xbf16>
    %1 = arith.extf %0 : vector<8x16x2048xbf16> to vector<8x16x2048xf32>
    %cst = arith.constant dense<0.000000e+00> : vector<8x2048xf32>
    %2 = vector.multi_reduction <add>, %1, %cst [1] : vector<8x16x2048xf32> to vector<8x2048xf32>
    %3 = arith.truncf %2 : vector<8x2048xf32> to vector<8x2048xbf16>
    %c0_2 = arith.constant 0 : index
    %c0_3 = arith.constant 0 : index
    %4 = vector.load %arg2[%c0_2, %c0_3] : memref<2048x256xbf16, #tpu.memory_space<vmem>>, vector<2048x256xbf16>
    %cst_4 = arith.constant dense<0.000000e+00> : vector<8x256xf32>
    %5 = tpu.matmul %3, %4, %cst_4 {dimension_numbers = #tpu.dot_dimension_numbers<[1], [0], [0], [1], [0, 0, 1, 1], [], []>} : vector<8x2048xbf16>, vector<2048x256xbf16>, vector<8x256xf32> -> vector<8x256xf32>
    %c0_5 = arith.constant 0 : index
    %c0_6 = arith.constant 0 : index
    %6 = vector.load %arg3[%c0_5, %c0_6] : memref<1x256xf32, #tpu.memory_space<vmem>>, vector<1x256xf32>
    %7 = vector.broadcast %6 : vector<1x256xf32> to vector<8x256xf32>
    %8 = arith.addf %5, %7 : vector<8x256xf32>
    %c0_7 = arith.constant 0 : index
    %c0_8 = arith.constant 0 : index
    %9 = vector.load %arg4[%c0_7, %c0_8] : memref<8x256xf32, #tpu.memory_space<vmem>>, vector<8x256xf32>
    tpu.vector_store %arg4[%c0_7, %c0_8], %8 {strides = array<i32>} : memref<8x256xf32, #tpu.memory_space<vmem>>, vector<8x256xf32>,
    return
  }
  func.func @transform_0(%arg0: i32) -> (i32, i32, i32) {
    %c0_i32 = arith.constant 0 : i32
    %c0_i32_0 = arith.constant 0 : i32
    %c0_i32_1 = arith.constant 0 : i32
    return %arg0, %c0_i32, %c0_i32_0 : i32, i32, i32
  }
  func.func @transform_1(%arg0: i32) -> (i32, i32) {
    %c0_i32 = arith.constant 0 : i32
    %c0_i32_0 = arith.constant 0 : i32
    %c0_i32_1 = arith.constant 0 : i32
    return %c0_i32, %c0_i32_0 : i32, i32
  }
  func.func @transform_2(%arg0: i32) -> (i32, i32) {
    %c0_i32 = arith.constant 0 : i32
    %c0_i32_0 = arith.constant 0 : i32
    %c0_i32_1 = arith.constant 0 : i32
    return %c0_i32, %c0_i32_0 : i32, i32
  }
  func.func @transform_3(%arg0: i32) -> (i32, i32) {
    %c0_i32 = arith.constant 0 : i32
    %c0_i32_0 = arith.constant 0 : i32
    return %arg0, %c0_i32 : i32, i32
  }
}

</mosaic_0001>

<llo_original>
// kernel: tpu_custom_call.1
$region0: #{tpu_custom_call.1}
  #allocation0 [shape = 'u32[]', space=smem, size = 0x4, offset = 0x4, fixed_abs, tag = 'smem constant byte address 0x4 - core index']
  #allocation1 [shape = 'u32[144,128]{1,0:T(1,128)}', space=vmem, size = 0x12000, scoped, tag = 'internal scratch']
  %s0 = inlined_call_operand.hbm [shape: bf16[16,16,2048], index: 0, kind: input, shape index: {}]
  %s1 = inlined_call_operand.hbm [shape: bf16[2048,256], index: 1, kind: input, shape index: {}]
  %s2 = inlined_call_operand.vmem [shape: f32[1,256], index: 2, kind: input, shape index: {}]
  %s3 = inlined_call_operand.hbm [shape: f32[16,256], index: 3, kind: output, shape index: {}]
  %s4 = sld [smem:[#allocation0]]
  $region53: #{tpu_custom_call.1} parent=0
    _
  %s6 = ssub.s32 1, %s4
  %s7 = scalar_select 0, %s6, %s4
  $region1: #{tpu_custom_call.1} parent=0
    #allocation2 [shape = 'u8[1048576]{0}', space=vmem, size = 0x100000, scoped, tag = 'input window, operand 0']
    #allocation3 [shape = 's32[2]{0}', space=sflag, size = 0x8, scoped, tag = 'scoped memory for tpu_custom_call.1']
    #allocation4 [shape = 's32[2]{0}', space=sflag, size = 0x8, scoped, tag = 'scoped memory for tpu_custom_call.1']
    #allocation5 [shape = 'u8[1048576]{0}', space=vmem, size = 0x100000, scoped, tag = 'input window, operand 1, single buffered']
    #allocation6 [shape = 's32[1]{0}', space=sflag, size = 0x4, scoped, tag = 'scoped memory for tpu_custom_call.1']
    #allocation7 [shape = 'u8[16384]{0}', space=vmem, size = 0x4000, scoped, tag = 'output window, operand 0']
    %8 = vsyncpa [#allocation3], 0
    %s9 = scalar_lea.sflag [#allocation3], 1
    %10 = vsyncpa %s9, 0
    %11 = vsyncpa [#allocation6], 0
    %12 = vsyncpa [#allocation4], 0
    %s13 = scalar_lea.sflag [#allocation4], 1
    %14 = vsyncpa %s13, 0
    loop: start=0, step=1, limit=4
    $region2: #{tpu_custom_call.1} parent=1 // loop_pre_header
      _
    $region3: #{tpu_custom_call.1} parent=1 // loop_header
      %s16 = sphi 0, %s20
      %p17 = scmp.ge.s32.totalorder %s16, 4
      %s26 = sphi 0, %s28
      %s29 = sphi 0, %s26
      %s30 = sphi 0, %s29
      %s46 = sphi 0, %s30
      %s50 = sphi 0, %s50
      %s52 = sphi 0, %s50
      %s53 = sphi 0, %s52
      %s67 = sphi 0, %s53
      %s71 = sphi 0, %s71
      %s73 = sphi 0, %s71
      %s74 = sphi 0, %s73
      %s88 = sphi 0, %s74
      %s94 = sphi 0, %s96
      %s97 = sphi 0, %s94
      %s98 = sphi 0, %s97
      %s114 = sphi 0, %s98
    $region4: #{tpu_custom_call.1} parent=1 // loop_header_branch
      %19 = sbr.rel (%p17) target = $region8
    $region5: #{tpu_custom_call.1} parent=1 // loop_body
      %s21 = ssub.s32 %s16, 1
      %s22 = ssub.s32 %s16, 2
      %s23 = sadd.s32 %s16, 1
      %s24 = ssub.s32 %s16, %s23
      %p25 = scmp.eq.s32.totalorder %s24, 0
      %s27 = sadd.s32 %s26, 1
      %s28 = scalar_select %p25, %s26, %s27
      %p31 = pneg %p25
      %p32 = scmp.eq.s32.totalorder %s16, 1
      %p33 = por %p31, %p32
      %p34 = scmp.ne.s32.totalorder %s26, %s29
      %p35 = scmp.eq.s32.totalorder %s16, 0
      %p36 = por %p34, %p35
      %p37 = scmp.ne.s32.totalorder %s26, %s29
      %p38 = scmp.eq.s32.totalorder %s21, 1
      %p39 = por %p37, %p38
      %p40 = scmp.ne.s32.totalorder %s29, %s30
      %p41 = scmp.eq.s32.totalorder %s21, 0
      %p42 = por %p40, %p41
      %p43 = scmp.ne.s32.totalorder %s29, %s30
      %p44 = scmp.eq.s32.totalorder %s22, 1
      %p45 = por %p43, %p44
      %p47 = scmp.ne.s32.totalorder %s30, %s46
      %p48 = scmp.eq.s32.totalorder %s22, 0
      %p49 = por %p47, %p48
      %s51 = sadd.s32 %s50, 1
      %p54 = scmp.eq.s32.totalorder %s16, 1
      %p55 = scmp.ne.s32.totalorder %s50, %s52
      %p56 = scmp.eq.s32.totalorder %s16, 0
      %p57 = por %p55, %p56
      %p58 = scmp.ne.s32.totalorder %s50, %s52
      %p59 = scmp.eq.s32.totalorder %s21, 1
      %p60 = por %p58, %p59
      %p61 = scmp.ne.s32.totalorder %s52, %s53
      %p62 = scmp.eq.s32.totalorder %s21, 0
      %p63 = por %p61, %p62
      %p64 = scmp.ne.s32.totalorder %s52, %s53
      %p65 = scmp.eq.s32.totalorder %s22, 1
      %p66 = por %p64, %p65
      %p68 = scmp.ne.s32.totalorder %s53, %s67
      %p69 = scmp.eq.s32.totalorder %s22, 0
      %p70 = por %p68, %p69
      %s72 = sadd.s32 %s71, 1
      %p75 = scmp.eq.s32.totalorder %s16, 1
      %p76 = scmp.ne.s32.totalorder %s71, %s73
      %p77 = scmp.eq.s32.totalorder %s16, 0
      %p78 = por %p76, %p77
      %p79 = scmp.ne.s32.totalorder %s71, %s73
      %p80 = scmp.eq.s32.totalorder %s21, 1
      %p81 = por %p79, %p80
      %p82 = scmp.ne.s32.totalorder %s73, %s74
      %p83 = scmp.eq.s32.totalorder %s21, 0
      %p84 = por %p82, %p83
      %p85 = scmp.ne.s32.totalorder %s73, %s74
      %p86 = scmp.eq.s32.totalorder %s22, 1
      %p87 = por %p85, %p86
      %p89 = scmp.ne.s32.totalorder %s74, %s88
      %p90 = scmp.eq.s32.totalorder %s22, 0
      %p91 = por %p89, %p90
      %s92 = ssub.s32 %s16, %s23
      %p93 = scmp.eq.s32.totalorder %s92, 0
      %s95 = sadd.s32 %s94, 1
      %s96 = scalar_select %p93, %s94, %s95
      %p99 = pneg %p93
      %p100 = scmp.eq.s32.totalorder %s16, 1
      %p101 = por %p99, %p100
      %p102 = scmp.ne.s32.totalorder %s94, %s97
      %p103 = scmp.eq.s32.totalorder %s16, 0
      %p104 = por %p102, %p103
      %p105 = scmp.ne.s32.totalorder %s94, %s97
      %p106 = scmp.eq.s32.totalorder %s21, 1
      %p107 = por %p105, %p106
      %p108 = scmp.ne.s32.totalorder %s97, %s98
      %p109 = scmp.eq.s32.totalorder %s21, 0
      %p110 = por %p108, %p109
      %p111 = scmp.ne.s32.totalorder %s97, %s98
      %p112 = scmp.eq.s32.totalorder %s22, 1
      %p113 = por %p111, %p112
      %p115 = scmp.ne.s32.totalorder %s98, %s114
      %p116 = scmp.eq.s32.totalorder %s22, 0
      %p117 = por %p115, %p116
      %p118 = scmp.le.s32.totalorder 1, %s16
      %p119 = scmp.lt.s32.totalorder %s16, 3
      %p120 = pnand %p118, %p119
      %p121 = pneg %p120
      // Predicated region
      $region9: #{tpu_custom_call.1} parent=5 // pred_check
        _
      $region10: #{tpu_custom_call.1} parent=5 // pred_check_branch
        %123 = sbr.rel (%p120) target = $region12
      $region11: #{tpu_custom_call.1} parent=5 // pred_region
        %s124 = ssub.s32 %s16, 1
        // Predicated region
        $region13: #{tpu_custom_call.1} parent=11 // pred_check
          %p125 = pneg %p63
        $region14: #{tpu_custom_call.1} parent=11 // pred_check_branch
          %127 = sbr.rel (%p125) target = $region16
        $region15: #{tpu_custom_call.1} parent=11 // pred_region
          %s129 = ssub.s32 32768, 32768
          %130 = vsyncadd [#allocation6], %s129
          %s131 = sshll.u32 [#allocation5], 4
          %s132 = int_to_ptr.vmem [resolvable:$true] %s131
          %137 = dma.hbm_to_vmem [thread:$0]  %s1, 32768, %s132, [#allocation6], 128, 128, 8
        $region16: #{tpu_custom_call.1} parent=11 // pred_fallthru
          _
        // Predicated region
        $region17: #{tpu_custom_call.1} parent=11 // pred_check
          %p138 = pneg %p84
        $region18: #{tpu_custom_call.1} parent=11 // pred_check_branch
          %140 = sbr.rel (%p138) target = $region20
        $region19: #{tpu_custom_call.1} parent=11 // pred_region
          _
        $region20: #{tpu_custom_call.1} parent=11 // pred_fallthru
          _
      $region12: #{tpu_custom_call.1} parent=5 // pred_fallthru
        _
      %p141 = scmp.lt.s32.totalorder %s16, 2
      // Predicated region
      $region21: #{tpu_custom_call.1} parent=5 // pred_check
        %p142 = pneg %p141
      $region22: #{tpu_custom_call.1} parent=5 // pred_check_branch
        %144 = sbr.rel (%p142) target = $region24
      $region23: #{tpu_custom_call.1} parent=5 // pred_region
        // Predicated region
        $region25: #{tpu_custom_call.1} parent=23 // pred_check
          %p145 = pneg %p36
        $region26: #{tpu_custom_call.1} parent=23 // pred_check_branch
          %147 = sbr.rel (%p145) target = $region28
        $region27: #{tpu_custom_call.1} parent=23 // pred_region
          %s148 = sand.u32 %s26, 1
          %s149 = scalar_lea.sflag [#allocation3], %s148
          %s150 = sand.u32 %s26, 1
          %s151 = smul.addr %s150, 1024
          %s152 = scalar_lea.vmem [#allocation2], %s151
          %s153 = smul.u32 8, %s16
          %s155 = ssub.s32 16384, 16384
          %156 = vsyncadd %s149, %s155
          %s157 = smul.addr %s153, 32
          %s158 = smul.addr %s157, 64
          %s159 = scalar_lea.hbm %s0, %s158
          %s160 = sshll.u32 %s152, 4
          %s161 = int_to_ptr.vmem [resolvable:$true] %s160
          %166 = dma.hbm_to_vmem [thread:$0]  %s159, 16384, %s161, %s149, 1024, 1024, 64
        $region28: #{tpu_custom_call.1} parent=23 // pred_fallthru
          _
      $region24: #{tpu_custom_call.1} parent=5 // pred_fallthru
        _
      %p167 = scmp.le.s32.totalorder 1, %s16
      %p168 = scmp.lt.s32.totalorder %s16, 3
      %p169 = pnand %p167, %p168
      %p170 = pneg %p169
      // Predicated region
      $region29: #{tpu_custom_call.1} parent=5 // pred_check
        _
      $region30: #{tpu_custom_call.1} parent=5 // pred_check_branch
        %172 = sbr.rel (%p169) target = $region32
      $region31: #{tpu_custom_call.1} parent=5 // pred_region
        %s173 = ssub.s32 %s16, 1
        %s174 = sand.u32 %s29, 1
        %s175 = scalar_lea.sflag [#allocation3], %s174
        %s176 = sand.u32 %s29, 1
        %s177 = smul.addr %s176, 1024
        %s178 = scalar_lea.vmem [#allocation2], %s177
        // Predicated region
        $region33: #{tpu_custom_call.1} parent=31 // pred_check
          %p179 = pneg %p42
        $region34: #{tpu_custom_call.1} parent=31 // pred_check_branch
          %181 = sbr.rel (%p179) target = $region36
        $region35: #{tpu_custom_call.1} parent=31 // pred_region
          %182 = dma.done %s175, 16384
        $region36: #{tpu_custom_call.1} parent=31 // pred_fallthru
          _
        // Predicated region
        $region37: #{tpu_custom_call.1} parent=31 // pred_check
          %p183 = pneg %p63
        $region38: #{tpu_custom_call.1} parent=31 // pred_check_branch
          %185 = sbr.rel (%p183) target = $region40
        $region39: #{tpu_custom_call.1} parent=31 // pred_region
          %186 = dma.done [#allocation6], 32768
        $region40: #{tpu_custom_call.1} parent=31 // pred_fallthru
          _
        %s187 = sand.u32 %s29, 1
        %s188 = scalar_lea.sflag [#allocation3], %s187
        %s189 = sand.u32 %s29, 1
        %s190 = smul.addr %s189, 1024
        %s191 = scalar_lea.vmem [#allocation2], %s190
        %p192 = pneg %p42
        %p193 = pneg %p39
        %p194 = pneg %p63
        %p195 = pneg %p60
        %p196 = pneg %p84
        %p197 = pneg %p81
        %p198 = pneg %p110
        %p199 = pneg %p107
        %s200 = sand.u32 %s97, 1
        %s201 = scalar_lea.sflag [#allocation4], %s200
        %s202 = sand.u32 %s97, 1
        %s203 = smul.addr %s202, 16
        %s204 = scalar_lea.vmem [#allocation7], %s203
        %s205 = smul.u32 8, %s21
        %v206 = vld [vmem:[%s178] sm:$0xff]
        %v207 = vld [vmem:[%s178 + $0x8] sm:$0xff]
        %v208 = vld [vmem:[%s178 + $0x10] sm:$0xff]
        %v209 = vld [vmem:[%s178 + $0x18] sm:$0xff]
        %v210 = vld [vmem:[%s178 + $0x20] sm:$0xff]
        %v211 = vld [vmem:[%s178 + $0x28] sm:$0xff]
        %v212 = vld [vmem:[%s178 + $0x30] sm:$0xff]
        %v213 = vld [vmem:[%s178 + $0x38] sm:$0xff]
        %v214 = vld [vmem:[%s178 + $0x40] sm:$0xff]
        %v215 = vld [vmem:[%s178 + $0x48] sm:$0xff]
        %v216 = vld [vmem:[%s178 + $0x50] sm:$0xff]
        %v217 = vld [vmem:[%s178 + $0x58] sm:$0xff]
        %v218 = vld [vmem:[%s178 + $0x60] sm:$0xff]
        %v219 = vld [vmem:[%s178 + $0x68] sm:$0xff]
        %v220 = vld [vmem:[%s178 + $0x70] sm:$0xff]
        %v221 = vld [vmem:[%s178 + $0x78] sm:$0xff]
        %v222 = vld [vmem:[%s178 + $0x80] sm:$0xff]
        %v223 = vld [vmem:[%s178 + $0x88] sm:$0xff]
        %v224 = vld [vmem:[%s178 + $0x90] sm:$0xff]
        %v225 = vld [vmem:[%s178 + $0x98] sm:$0xff]
        %v226 = vld [vmem:[%s178 + $0xa0] sm:$0xff]
        %v227 = vld [vmem:[%s178 + $0xa8] sm:$0xff]
        %v228 = vld [vmem:[%s178 + $0xb0] sm:$0xff]
        %v229 = vld [vmem:[%s178 + $0xb8] sm:$0xff]
        %v230 = vld [vmem:[%s178 + $0xc0] sm:$0xff]
        %v231 = vld [vmem:[%s178 + $0xc8] sm:$0xff]
        %v232 = vld [vmem:[%s178 + $0xd0] sm:$0xff]
        %v233 = vld [vmem:[%s178 + $0xd8] sm:$0xff]
        %v234 = vld [vmem:[%s178 + $0xe0] sm:$0xff]
        %v235 = vld [vmem:[%s178 + $0xe8] sm:$0xff]
        %v236 = vld [vmem:[%s178 + $0xf0] sm:$0xff]
        %v237 = vld [vmem:[%s178 + $0xf8] sm:$0xff]
        %v238 = vld [vmem:[%s178 + $0x100] sm:$0xff]
        %v239 = vld [vmem:[%s178 + $0x108] sm:$0xff]
        %v240 = vld [vmem:[%s178 + $0x110] sm:$0xff]
        %v241 = vld [vmem:[%s178 + $0x118] sm:$0xff]
        %v242 = vld [vmem:[%s178 + $0x120] sm:$0xff]
        %v243 = vld [vmem:[%s178 + $0x128] sm:$0xff]
        %v244 = vld [vmem:[%s178 + $0x130] sm:$0xff]
        %v245 = vld [vmem:[%s178 + $0x138] sm:$0xff]
        %v246 = vld [vmem:[%s178 + $0x140] sm:$0xff]
        %v247 = vld [vmem:[%s178 + $0x148] sm:$0xff]
        %v248 = vld [vmem:[%s178 + $0x150] sm:$0xff]
        %v249 = vld [vmem:[%s178 + $0x158] sm:$0xff]
        %v250 = vld [vmem:[%s178 + $0x160] sm:$0xff]
        %v251 = vld [vmem:[%s178 + $0x168] sm:$0xff]
        %v252 = vld [vmem:[%s178 + $0x170] sm:$0xff]
        %v253 = vld [vmem:[%s178 + $0x178] sm:$0xff]
        %v254 = vld [vmem:[%s178 + $0x180] sm:$0xff]
        %v255 = vld [vmem:[%s178 + $0x188] sm:$0xff]
        %v256 = vld [vmem:[%s178 + $0x190] sm:$0xff]
        %v257 = vld [vmem:[%s178 + $0x198] sm:$0xff]
        %v258 = vld [vmem:[%s178 + $0x1a0] sm:$0xff]
        %v259 = vld [vmem:[%s178 + $0x1a8] sm:$0xff]
        %v260 = vld [vmem:[%s178 + $0x1b0] sm:$0xff]
        %v261 = vld [vmem:[%s178 + $0x1b8] sm:$0xff]
        %v262 = vld [vmem:[%s178 + $0x1c0] sm:$0xff]
        %v263 = vld [vmem:[%s178 + $0x1c8] sm:$0xff]
        %v264 = vld [vmem:[%s178 + $0x1d0] sm:$0xff]
        %v265 = vld [vmem:[%s178 + $0x1d8] sm:$0xff]
        %v266 = vld [vmem:[%s178 + $0x1e0] sm:$0xff]
        %v267 = vld [vmem:[%s178 + $0x1e8] sm:$0xff]
        %v268 = vld [vmem:[%s178 + $0x1f0] sm:$0xff]
        %v269 = vld [vmem:[%s178 + $0x1f8] sm:$0xff]
        %v270 = vld [vmem:[%s178 + $0x200] sm:$0xff]
        %v271 = vld [vmem:[%s178 + $0x208] sm:$0xff]
        %v272 = vld [vmem:[%s178 + $0x210] sm:$0xff]
        %v273 = vld [vmem:[%s178 + $0x218] sm:$0xff]
        %v274 = vld [vmem:[%s178 + $0x220] sm:$0xff]
        %v275 = vld [vmem:[%s178 + $0x228] sm:$0xff]
        %v276 = vld [vmem:[%s178 + $0x230] sm:$0xff]
        %v277 = vld [vmem:[%s178 + $0x238] sm:$0xff]
        %v278 = vld [vmem:[%s178 + $0x240] sm:$0xff]
        %v279 = vld [vmem:[%s178 + $0x248] sm:$0xff]
        %v280 = vld [vmem:[%s178 + $0x250] sm:$0xff]
        %v281 = vld [vmem:[%s178 + $0x258] sm:$0xff]
        %v282 = vld [vmem:[%s178 + $0x260] sm:$0xff]
        %v283 = vld [vmem:[%s178 + $0x268] sm:$0xff]
        %v284 = vld [vmem:[%s178 + $0x270] sm:$0xff]
        %v285 = vld [vmem:[%s178 + $0x278] sm:$0xff]
        %v286 = vld [vmem:[%s178 + $0x280] sm:$0xff]
        %v287 = vld [vmem:[%s178 + $0x288] sm:$0xff]
        %v288 = vld [vmem:[%s178 + $0x290] sm:$0xff]
        %v289 = vld [vmem:[%s178 + $0x298] sm:$0xff]
        %v290 = vld [vmem:[%s178 + $0x2a0] sm:$0xff]
        %v291 = vld [vmem:[%s178 + $0x2a8] sm:$0xff]
        %v292 = vld [vmem:[%s178 + $0x2b0] sm:$0xff]
        %v293 = vld [vmem:[%s178 + $0x2b8] sm:$0xff]
        %v294 = vld [vmem:[%s178 + $0x2c0] sm:$0xff]
        %v295 = vld [vmem:[%s178 + $0x2c8] sm:$0xff]
        %v296 = vld [vmem:[%s178 + $0x2d0] sm:$0xff]
        %v297 = vld [vmem:[%s178 + $0x2d8] sm:$0xff]
        %v298 = vld [vmem:[%s178 + $0x2e0] sm:$0xff]
        %v299 = vld [vmem:[%s178 + $0x2e8] sm:$0xff]
        %v300 = vld [vmem:[%s178 + $0x2f0] sm:$0xff]
        %v301 = vld [vmem:[%s178 + $0x2f8] sm:$0xff]
        %v302 = vld [vmem:[%s178 + $0x300] sm:$0xff]
        %v303 = vld [vmem:[%s178 + $0x308] sm:$0xff]
        %v304 = vld [vmem:[%s178 + $0x310] sm:$0xff]
        %v305 = vld [vmem:[%s178 + $0x318] sm:$0xff]
        %v306 = vld [vmem:[%s178 + $0x320] sm:$0xff]
        %v307 = vld [vmem:[%s178 + $0x328] sm:$0xff]
        %v308 = vld [vmem:[%s178 + $0x330] sm:$0xff]
        %v309 = vld [vmem:[%s178 + $0x338] sm:$0xff]
        %v310 = vld [vmem:[%s178 + $0x340] sm:$0xff]
        %v311 = vld [vmem:[%s178 + $0x348] sm:$0xff]
        %v312 = vld [vmem:[%s178 + $0x350] sm:$0xff]
        %v313 = vld [vmem:[%s178 + $0x358] sm:$0xff]
        %v314 = vld [vmem:[%s178 + $0x360] sm:$0xff]
        %v315 = vld [vmem:[%s178 + $0x368] sm:$0xff]
        %v316 = vld [vmem:[%s178 + $0x370] sm:$0xff]
        %v317 = vld [vmem:[%s178 + $0x378] sm:$0xff]
        %v318 = vld [vmem:[%s178 + $0x380] sm:$0xff]
        %v319 = vld [vmem:[%s178 + $0x388] sm:$0xff]
        %v320 = vld [vmem:[%s178 + $0x390] sm:$0xff]
        %v321 = vld [vmem:[%s178 + $0x398] sm:$0xff]
        %v322 = vld [vmem:[%s178 + $0x3a0] sm:$0xff]
        %v323 = vld [vmem:[%s178 + $0x3a8] sm:$0xff]
        %v324 = vld [vmem:[%s178 + $0x3b0] sm:$0xff]
        %v325 = vld [vmem:[%s178 + $0x3b8] sm:$0xff]
        %v326 = vld [vmem:[%s178 + $0x3c0] sm:$0xff]
        %v327 = vld [vmem:[%s178 + $0x3c8] sm:$0xff]
        %v328 = vld [vmem:[%s178 + $0x3d0] sm:$0xff]
        %v329 = vld [vmem:[%s178 + $0x3d8] sm:$0xff]
        %v330 = vld [vmem:[%s178 + $0x3e0] sm:$0xff]
        %v331 = vld [vmem:[%s178 + $0x3e8] sm:$0xff]
        %v332 = vld [vmem:[%s178 + $0x3f0] sm:$0xff]
        %v333 = vld [vmem:[%s178 + $0x3f8] sm:$0xff]
        %v334 = vunpack.c.l.bf16 %v206
        %v335 = vunpack.c.h.bf16 %v206
        %v336 = vunpack.c.l.bf16 %v207
        %v337 = vunpack.c.h.bf16 %v207
        %v338 = vunpack.c.l.bf16 %v208
        %v339 = vunpack.c.h.bf16 %v208
        %v340 = vunpack.c.l.bf16 %v209
        %v341 = vunpack.c.h.bf16 %v209
        %v342 = vunpack.c.l.bf16 %v210
        %v343 = vunpack.c.h.bf16 %v210
        %v344 = vunpack.c.l.bf16 %v211
        %v345 = vunpack.c.h.bf16 %v211
        %v346 = vunpack.c.l.bf16 %v212
        %v347 = vunpack.c.h.bf16 %v212
        %v348 = vunpack.c.l.bf16 %v213
        %v349 = vunpack.c.h.bf16 %v213
        %v350 = vunpack.c.l.bf16 %v214
        %v351 = vunpack.c.h.bf16 %v214
        %v352 = vunpack.c.l.bf16 %v215
        %v353 = vunpack.c.h.bf16 %v215
        %v354 = vunpack.c.l.bf16 %v216
        %v355 = vunpack.c.h.bf16 %v216
        %v356 = vunpack.c.l.bf16 %v217
        %v357 = vunpack.c.h.bf16 %v217
        %v358 = vunpack.c.l.bf16 %v218
        %v359 = vunpack.c.h.bf16 %v218
        %v360 = vunpack.c.l.bf16 %v219
        %v361 = vunpack.c.h.bf16 %v219
        %v362 = vunpack.c.l.bf16 %v220
        %v363 = vunpack.c.h.bf16 %v220
        %v364 = vunpack.c.l.bf16 %v221
        %v365 = vunpack.c.h.bf16 %v221
        %v366 = vunpack.c.l.bf16 %v222
        %v367 = vunpack.c.h.bf16 %v222
        %v368 = vunpack.c.l.bf16 %v223
        %v369 = vunpack.c.h.bf16 %v223
        %v370 = vunpack.c.l.bf16 %v224
        %v371 = vunpack.c.h.bf16 %v224
        %v372 = vunpack.c.l.bf16 %v225
        %v373 = vunpack.c.h.bf16 %v225
        %v374 = vunpack.c.l.bf16 %v226
        %v375 = vunpack.c.h.bf16 %v226
        %v376 = vunpack.c.l.bf16 %v227
        %v377 = vunpack.c.h.bf16 %v227
        %v378 = vunpack.c.l.bf16 %v228
        %v379 = vunpack.c.h.bf16 %v228
        %v380 = vunpack.c.l.bf16 %v229
        %v381 = vunpack.c.h.bf16 %v229
        %v382 = vunpack.c.l.bf16 %v230
        %v383 = vunpack.c.h.bf16 %v230
        %v384 = vunpack.c.l.bf16 %v231
        %v385 = vunpack.c.h.bf16 %v231
        %v386 = vunpack.c.l.bf16 %v232
        %v387 = vunpack.c.h.bf16 %v232
        %v388 = vunpack.c.l.bf16 %v233
        %v389 = vunpack.c.h.bf16 %v233
        %v390 = vunpack.c.l.bf16 %v234
        %v391 = vunpack.c.h.bf16 %v234
        %v392 = vunpack.c.l.bf16 %v235
        %v393 = vunpack.c.h.bf16 %v235
        %v394 = vunpack.c.l.bf16 %v236
        %v395 = vunpack.c.h.bf16 %v236
        %v396 = vunpack.c.l.bf16 %v237
        %v397 = vunpack.c.h.bf16 %v237
        %v398 = vunpack.c.l.bf16 %v238
        %v399 = vunpack.c.h.bf16 %v238
        %v400 = vunpack.c.l.bf16 %v239
        %v401 = vunpack.c.h.bf16 %v239
        %v402 = vunpack.c.l.bf16 %v240
        %v403 = vunpack.c.h.bf16 %v240
        %v404 = vunpack.c.l.bf16 %v241
        %v405 = vunpack.c.h.bf16 %v241
        %v406 = vunpack.c.l.bf16 %v242
        %v407 = vunpack.c.h.bf16 %v242
        %v408 = vunpack.c.l.bf16 %v243
        %v409 = vunpack.c.h.bf16 %v243
        %v410 = vunpack.c.l.bf16 %v244
        %v411 = vunpack.c.h.bf16 %v244
        %v412 = vunpack.c.l.bf16 %v245
        %v413 = vunpack.c.h.bf16 %v245
        %v414 = vunpack.c.l.bf16 %v246
        %v415 = vunpack.c.h.bf16 %v246
        %v416 = vunpack.c.l.bf16 %v247
        %v417 = vunpack.c.h.bf16 %v247
        %v418 = vunpack.c.l.bf16 %v248
        %v419 = vunpack.c.h.bf16 %v248
        %v420 = vunpack.c.l.bf16 %v249
        %v421 = vunpack.c.h.bf16 %v249
        %v422 = vunpack.c.l.bf16 %v250
        %v423 = vunpack.c.h.bf16 %v250
        %v424 = vunpack.c.l.bf16 %v251
        %v425 = vunpack.c.h.bf16 %v251
        %v426 = vunpack.c.l.bf16 %v252
        %v427 = vunpack.c.h.bf16 %v252
        %v428 = vunpack.c.l.bf16 %v253
        %v429 = vunpack.c.h.bf16 %v253
        %v430 = vunpack.c.l.bf16 %v254
        %v431 = vunpack.c.h.bf16 %v254
        %v432 = vunpack.c.l.bf16 %v255
        %v433 = vunpack.c.h.bf16 %v255
        %v434 = vunpack.c.l.bf16 %v256
        %v435 = vunpack.c.h.bf16 %v256
        %v436 = vunpack.c.l.bf16 %v257
        %v437 = vunpack.c.h.bf16 %v257
        %v438 = vunpack.c.l.bf16 %v258
        %v439 = vunpack.c.h.bf16 %v258
        %v440 = vunpack.c.l.bf16 %v259
        %v441 = vunpack.c.h.bf16 %v259
        %v442 = vunpack.c.l.bf16 %v260
        %v443 = vunpack.c.h.bf16 %v260
        %v444 = vunpack.c.l.bf16 %v261
        %v445 = vunpack.c.h.bf16 %v261
        %v446 = vunpack.c.l.bf16 %v262
        %v447 = vunpack.c.h.bf16 %v262
        %v448 = vunpack.c.l.bf16 %v263
        %v449 = vunpack.c.h.bf16 %v263
        %v450 = vunpack.c.l.bf16 %v264
        %v451 = vunpack.c.h.bf16 %v264
        %v452 = vunpack.c.l.bf16 %v265
        %v453 = vunpack.c.h.bf16 %v265
        %v454 = vunpack.c.l.bf16 %v266
        %v455 = vunpack.c.h.bf16 %v266
        %v456 = vunpack.c.l.bf16 %v267
        %v457 = vunpack.c.h.bf16 %v267
        %v458 = vunpack.c.l.bf16 %v268
        %v459 = vunpack.c.h.bf16 %v268
        %v460 = vunpack.c.l.bf16 %v269
        %v461 = vunpack.c.h.bf16 %v269
        %v462 = vunpack.c.l.bf16 %v270
        %v463 = vunpack.c.h.bf16 %v270
        %v464 = vunpack.c.l.bf16 %v271
        %v465 = vunpack.c.h.bf16 %v271
        %v466 = vunpack.c.l.bf16 %v272
        %v467 = vunpack.c.h.bf16 %v272
        %v468 = vunpack.c.l.bf16 %v273
        %v469 = vunpack.c.h.bf16 %v273
        %v470 = vunpack.c.l.bf16 %v274
        %v471 = vunpack.c.h.bf16 %v274
        %v472 = vunpack.c.l.bf16 %v275
        %v473 = vunpack.c.h.bf16 %v275
        %v474 = vunpack.c.l.bf16 %v276
        %v475 = vunpack.c.h.bf16 %v276
        %v476 = vunpack.c.l.bf16 %v277
        %v477 = vunpack.c.h.bf16 %v277
        %v478 = vunpack.c.l.bf16 %v278
        %v479 = vunpack.c.h.bf16 %v278
        %v480 = vunpack.c.l.bf16 %v279
        %v481 = vunpack.c.h.bf16 %v279
        %v482 = vunpack.c.l.bf16 %v280
        %v483 = vunpack.c.h.bf16 %v280
        %v484 = vunpack.c.l.bf16 %v281
        %v485 = vunpack.c.h.bf16 %v281
        %v486 = vunpack.c.l.bf16 %v282
        %v487 = vunpack.c.h.bf16 %v282
        %v488 = vunpack.c.l.bf16 %v283
        %v489 = vunpack.c.h.bf16 %v283
        %v490 = vunpack.c.l.bf16 %v284
        %v491 = vunpack.c.h.bf16 %v284
        %v492 = vunpack.c.l.bf16 %v285
        %v493 = vunpack.c.h.bf16 %v285
        %v494 = vunpack.c.l.bf16 %v286
        %v495 = vunpack.c.h.bf16 %v286
        %v496 = vunpack.c.l.bf16 %v287
        %v497 = vunpack.c.h.bf16 %v287
        %v498 = vunpack.c.l.bf16 %v288
        %v499 = vunpack.c.h.bf16 %v288
        %v500 = vunpack.c.l.bf16 %v289
        %v501 = vunpack.c.h.bf16 %v289
        %v502 = vunpack.c.l.bf16 %v290
        %v503 = vunpack.c.h.bf16 %v290
        %v504 = vunpack.c.l.bf16 %v291
        %v505 = vunpack.c.h.bf16 %v291
        %v506 = vunpack.c.l.bf16 %v292
        %v507 = vunpack.c.h.bf16 %v292
        %v508 = vunpack.c.l.bf16 %v293
        %v509 = vunpack.c.h.bf16 %v293
        %v510 = vunpack.c.l.bf16 %v294
        %v511 = vunpack.c.h.bf16 %v294
        %v512 = vunpack.c.l.bf16 %v295
        %v513 = vunpack.c.h.bf16 %v295
        %v514 = vunpack.c.l.bf16 %v296
        %v515 = vunpack.c.h.bf16 %v296
        %v516 = vunpack.c.l.bf16 %v297
        %v517 = vunpack.c.h.bf16 %v297
        %v518 = vunpack.c.l.bf16 %v298
        %v519 = vunpack.c.h.bf16 %v298
        %v520 = vunpack.c.l.bf16 %v299
        %v521 = vunpack.c.h.bf16 %v299
        %v522 = vunpack.c.l.bf16 %v300
        %v523 = vunpack.c.h.bf16 %v300
        %v524 = vunpack.c.l.bf16 %v301
        %v525 = vunpack.c.h.bf16 %v301
        %v526 = vunpack.c.l.bf16 %v302
        %v527 = vunpack.c.h.bf16 %v302
        %v528 = vunpack.c.l.bf16 %v303
        %v529 = vunpack.c.h.bf16 %v303
        %v530 = vunpack.c.l.bf16 %v304
        %v531 = vunpack.c.h.bf16 %v304
        %v532 = vunpack.c.l.bf16 %v305
        %v533 = vunpack.c.h.bf16 %v305
        %v534 = vunpack.c.l.bf16 %v306
        %v535 = vunpack.c.h.bf16 %v306
        %v536 = vunpack.c.l.bf16 %v307
        %v537 = vunpack.c.h.bf16 %v307
        %v538 = vunpack.c.l.bf16 %v308
        %v539 = vunpack.c.h.bf16 %v308
        %v540 = vunpack.c.l.bf16 %v309
        %v541 = vunpack.c.h.bf16 %v309
        %v542 = vunpack.c.l.bf16 %v310
        %v543 = vunpack.c.h.bf16 %v310
        %v544 = vunpack.c.l.bf16 %v311
        %v545 = vunpack.c.h.bf16 %v311
        %v546 = vunpack.c.l.bf16 %v312
        %v547 = vunpack.c.h.bf16 %v312
        %v548 = vunpack.c.l.bf16 %v313
        %v549 = vunpack.c.h.bf16 %v313
        %v550 = vunpack.c.l.bf16 %v314
        %v551 = vunpack.c.h.bf16 %v314
        %v552 = vunpack.c.l.bf16 %v315
        %v553 = vunpack.c.h.bf16 %v315
        %v554 = vunpack.c.l.bf16 %v316
        %v555 = vunpack.c.h.bf16 %v316
        %v556 = vunpack.c.l.bf16 %v317
        %v557 = vunpack.c.h.bf16 %v317
        %v558 = vunpack.c.l.bf16 %v318
        %v559 = vunpack.c.h.bf16 %v318
        %v560 = vunpack.c.l.bf16 %v319
        %v561 = vunpack.c.h.bf16 %v319
        %v562 = vunpack.c.l.bf16 %v320
        %v563 = vunpack.c.h.bf16 %v320
        %v564 = vunpack.c.l.bf16 %v321
        %v565 = vunpack.c.h.bf16 %v321
        %v566 = vunpack.c.l.bf16 %v322
        %v567 = vunpack.c.h.bf16 %v322
        %v568 = vunpack.c.l.bf16 %v323
        %v569 = vunpack.c.h.bf16 %v323
        %v570 = vunpack.c.l.bf16 %v324
        %v571 = vunpack.c.h.bf16 %v324
        %v572 = vunpack.c.l.bf16 %v325
        %v573 = vunpack.c.h.bf16 %v325
        %v574 = vunpack.c.l.bf16 %v326
        %v575 = vunpack.c.h.bf16 %v326
        %v576 = vunpack.c.l.bf16 %v327
        %v577 = vunpack.c.h.bf16 %v327
        %v578 = vunpack.c.l.bf16 %v328
        %v579 = vunpack.c.h.bf16 %v328
        %v580 = vunpack.c.l.bf16 %v329
        %v581 = vunpack.c.h.bf16 %v329
        %v582 = vunpack.c.l.bf16 %v330
        %v583 = vunpack.c.h.bf16 %v330
        %v584 = vunpack.c.l.bf16 %v331
        %v585 = vunpack.c.h.bf16 %v331
        %v586 = vunpack.c.l.bf16 %v332
        %v587 = vunpack.c.h.bf16 %v332
        %v588 = vunpack.c.l.bf16 %v333
        %v589 = vunpack.c.h.bf16 %v333
        %v590 = vadd.f32 %v334, %v350
        %v591 = vrot.slane %v590, 4
        %v592 = vadd.f32 %v590, %v591
        %v593 = vrot.slane %v592, 2
        %v594 = vadd.f32 %v592, %v593
        %v595 = vrot.slane %v594, 1
        %v596 = vadd.f32 %v594, %v595
        %v597 = vadd.f32 %v335, %v351
        %v598 = vrot.slane %v597, 4
        %v599 = vadd.f32 %v597, %v598
        %v600 = vrot.slane %v599, 2
        %v601 = vadd.f32 %v599, %v600
        %v602 = vrot.slane %v601, 1
        %v603 = vadd.f32 %v601, %v602
        %v604 = vadd.f32 %v336, %v352
        %v605 = vrot.slane %v604, 4
        %v606 = vadd.f32 %v604, %v605
        %v607 = vrot.slane %v606, 2
        %v608 = vadd.f32 %v606, %v607
        %v609 = vrot.slane %v608, 1
        %v610 = vadd.f32 %v608, %v609
        %v611 = vadd.f32 %v337, %v353
        %v612 = vrot.slane %v611, 4
        %v613 = vadd.f32 %v611, %v612
        %v614 = vrot.slane %v613, 2
        %v615 = vadd.f32 %v613, %v614
        %v616 = vrot.slane %v615, 1
        %v617 = vadd.f32 %v615, %v616
        %v618 = vadd.f32 %v338, %v354
        %v619 = vrot.slane %v618, 4
        %v620 = vadd.f32 %v618, %v619
        %v621 = vrot.slane %v620, 2
        %v622 = vadd.f32 %v620, %v621
        %v623 = vrot.slane %v622, 1
        %v624 = vadd.f32 %v622, %v623
        %v625 = vadd.f32 %v339, %v355
        %v626 = vrot.slane %v625, 4
        %v627 = vadd.f32 %v625, %v626
        %v628 = vrot.slane %v627, 2
        %v629 = vadd.f32 %v627, %v628
        %v630 = vrot.slane %v629, 1
        %v631 = vadd.f32 %v629, %v630
        %v632 = vadd.f32 %v340, %v356
        %v633 = vrot.slane %v632, 4
        %v634 = vadd.f32 %v632, %v633
        %v635 = vrot.slane %v634, 2
        %v636 = vadd.f32 %v634, %v635
        %v637 = vrot.slane %v636, 1
        %v638 = vadd.f32 %v636, %v637
        %v639 = vadd.f32 %v341, %v357
        %v640 = vrot.slane %v639, 4
        %v641 = vadd.f32 %v639, %v640
        %v642 = vrot.slane %v641, 2
        %v643 = vadd.f32 %v641, %v642
        %v644 = vrot.slane %v643, 1
        %v645 = vadd.f32 %v643, %v644
        %v646 = vadd.f32 %v342, %v358
        %v647 = vrot.slane %v646, 4
        %v648 = vadd.f32 %v646, %v647
        %v649 = vrot.slane %v648, 2
        %v650 = vadd.f32 %v648, %v649
        %v651 = vrot.slane %v650, 1
        %v652 = vadd.f32 %v650, %v651
        %v653 = vadd.f32 %v343, %v359
        %v654 = vrot.slane %v653, 4
        %v655 = vadd.f32 %v653, %v654
        %v656 = vrot.slane %v655, 2
        %v657 = vadd.f32 %v655, %v656
        %v658 = vrot.slane %v657, 1
        %v659 = vadd.f32 %v657, %v658
        %v660 = vadd.f32 %v344, %v360
        %v661 = vrot.slane %v660, 4
        %v662 = vadd.f32 %v660, %v661
        %v663 = vrot.slane %v662, 2
        %v664 = vadd.f32 %v662, %v663
        %v665 = vrot.slane %v664, 1
        %v666 = vadd.f32 %v664, %v665
        %v667 = vadd.f32 %v345, %v361
        %v668 = vrot.slane %v667, 4
        %v669 = vadd.f32 %v667, %v668
        %v670 = vrot.slane %v669, 2
        %v671 = vadd.f32 %v669, %v670
        %v672 = vrot.slane %v671, 1
        %v673 = vadd.f32 %v671, %v672
        %v674 = vadd.f32 %v346, %v362
        %v675 = vrot.slane %v674, 4
        %v676 = vadd.f32 %v674, %v675
        %v677 = vrot.slane %v676, 2
        %v678 = vadd.f32 %v676, %v677
        %v679 = vrot.slane %v678, 1
        %v680 = vadd.f32 %v678, %v679
        %v681 = vadd.f32 %v347, %v363
        %v682 = vrot.slane %v681, 4
        %v683 = vadd.f32 %v681, %v682
        %v684 = vrot.slane %v683, 2
        %v685 = vadd.f32 %v683, %v684
        %v686 = vrot.slane %v685, 1
        %v687 = vadd.f32 %v685, %v686
        %v688 = vadd.f32 %v348, %v364
        %v689 = vrot.slane %v688, 4
        %v690 = vadd.f32 %v688, %v689
        %v691 = vrot.slane %v690, 2
        %v692 = vadd.f32 %v690, %v691
        %v693 = vrot.slane %v692, 1
        %v694 = vadd.f32 %v692, %v693
        %v695 = vadd.f32 %v349, %v365
        %v696 = vrot.slane %v695, 4
        %v697 = vadd.f32 %v695, %v696
        %v698 = vrot.slane %v697, 2
        %v699 = vadd.f32 %v697, %v698
        %v700 = vrot.slane %v699, 1
        %v701 = vadd.f32 %v699, %v700
        %v702 = vadd.f32 %v366, %v382
        %v703 = vrot.slane %v702, 4
        %v704 = vadd.f32 %v702, %v703
        %v705 = vrot.slane %v704, 2
        %v706 = vadd.f32 %v704, %v705
        %v707 = vrot.slane %v706, 1
        %v708 = vadd.f32 %v706, %v707
        %v709 = vadd.f32 %v367, %v383
        %v710 = vrot.slane %v709, 4
        %v711 = vadd.f32 %v709, %v710
        %v712 = vrot.slane %v711, 2
        %v713 = vadd.f32 %v711, %v712
        %v714 = vrot.slane %v713, 1
        %v715 = vadd.f32 %v713, %v714
        %v716 = vadd.f32 %v368, %v384
        %v717 = vrot.slane %v716, 4
        %v718 = vadd.f32 %v716, %v717
        %v719 = vrot.slane %v718, 2
        %v720 = vadd.f32 %v718, %v719
        %v721 = vrot.slane %v720, 1
        %v722 = vadd.f32 %v720, %v721
        %v723 = vadd.f32 %v369, %v385
        %v724 = vrot.slane %v723, 4
        %v725 = vadd.f32 %v723, %v724
        %v726 = vrot.slane %v725, 2
        %v727 = vadd.f32 %v725, %v726
        %v728 = vrot.slane %v727, 1
        %v729 = vadd.f32 %v727, %v728
        %v730 = vadd.f32 %v370, %v386
        %v731 = vrot.slane %v730, 4
        %v732 = vadd.f32 %v730, %v731
        %v733 = vrot.slane %v732, 2
        %v734 = vadd.f32 %v732, %v733
        %v735 = vrot.slane %v734, 1
        %v736 = vadd.f32 %v734, %v735
        %v737 = vadd.f32 %v371, %v387
        %v738 = vrot.slane %v737, 4
        %v739 = vadd.f32 %v737, %v738
        %v740 = vrot.slane %v739, 2
        %v741 = vadd.f32 %v739, %v740
        %v742 = vrot.slane %v741, 1
        %v743 = vadd.f32 %v741, %v742
        %v744 = vadd.f32 %v372, %v388
        %v745 = vrot.slane %v744, 4
        %v746 = vadd.f32 %v744, %v745
        %v747 = vrot.slane %v746, 2
        %v748 = vadd.f32 %v746, %v747
        %v749 = vrot.slane %v748, 1
        %v750 = vadd.f32 %v748, %v749
        %v751 = vadd.f32 %v373, %v389
        %v752 = vrot.slane %v751, 4
        %v753 = vadd.f32 %v751, %v752
        %v754 = vrot.slane %v753, 2
        %v755 = vadd.f32 %v753, %v754
        %v756 = vrot.slane %v755, 1
        %v757 = vadd.f32 %v755, %v756
        %v758 = vadd.f32 %v374, %v390
        %v759 = vrot.slane %v758, 4
        %v760 = vadd.f32 %v758, %v759
        %v761 = vrot.slane %v760, 2
        %v762 = vadd.f32 %v760, %v761
        %v763 = vrot.slane %v762, 1
        %v764 = vadd.f32 %v762, %v763
        %v765 = vadd.f32 %v375, %v391
        %v766 = vrot.slane %v765, 4
        %v767 = vadd.f32 %v765, %v766
        %v768 = vrot.slane %v767, 2
        %v769 = vadd.f32 %v767, %v768
        %v770 = vrot.slane %v769, 1
        %v771 = vadd.f32 %v769, %v770
        %v772 = vadd.f32 %v376, %v392
        %v773 = vrot.slane %v772, 4
        %v774 = vadd.f32 %v772, %v773
        %v775 = vrot.slane %v774, 2
        %v776 = vadd.f32 %v774, %v775
        %v777 = vrot.slane %v776, 1
        %v778 = vadd.f32 %v776, %v777
        %v779 = vadd.f32 %v377, %v393
        %v780 = vrot.slane %v779, 4
        %v781 = vadd.f32 %v779, %v780
        %v782 = vrot.slane %v781, 2
        %v783 = vadd.f32 %v781, %v782
        %v784 = vrot.slane %v783, 1
        %v785 = vadd.f32 %v783, %v784
        %v786 = vadd.f32 %v378, %v394
        %v787 = vrot.slane %v786, 4
        %v788 = vadd.f32 %v786, %v787
        %v789 = vrot.slane %v788, 2
        %v790 = vadd.f32 %v788, %v789
        %v791 = vrot.slane %v790, 1
        %v792 = vadd.f32 %v790, %v791
        %v793 = vadd.f32 %v379, %v395
        %v794 = vrot.slane %v793, 4
        %v795 = vadd.f32 %v793, %v794
        %v796 = vrot.slane %v795, 2
        %v797 = vadd.f32 %v795, %v796
        %v798 = vrot.slane %v797, 1
        %v799 = vadd.f32 %v797, %v798
        %v800 = vadd.f32 %v380, %v396
        %v801 = vrot.slane %v800, 4
        %v802 = vadd.f32 %v800, %v801
        %v803 = vrot.slane %v802, 2
        %v804 = vadd.f32 %v802, %v803
        %v805 = vrot.slane %v804, 1
        %v806 = vadd.f32 %v804, %v805
        %v807 = vadd.f32 %v381, %v397
        %v808 = vrot.slane %v807, 4
        %v809 = vadd.f32 %v807, %v808
        %v810 = vrot.slane %v809, 2
        %v811 = vadd.f32 %v809, %v810
        %v812 = vrot.slane %v811, 1
        %v813 = vadd.f32 %v811, %v812
        %v814 = vadd.f32 %v398, %v414
        %v815 = vrot.slane %v814, 4
        %v816 = vadd.f32 %v814, %v815
        %v817 = vrot.slane %v816, 2
        %v818 = vadd.f32 %v816, %v817
        %v819 = vrot.slane %v818, 1
        %v820 = vadd.f32 %v818, %v819
        %v821 = vadd.f32 %v399, %v415
        %v822 = vrot.slane %v821, 4
        %v823 = vadd.f32 %v821, %v822
        %v824 = vrot.slane %v823, 2
        %v825 = vadd.f32 %v823, %v824
        %v826 = vrot.slane %v825, 1
        %v827 = vadd.f32 %v825, %v826
        %v828 = vadd.f32 %v400, %v416
        %v829 = vrot.slane %v828, 4
        %v830 = vadd.f32 %v828, %v829
        %v831 = vrot.slane %v830, 2
        %v832 = vadd.f32 %v830, %v831
        %v833 = vrot.slane %v832, 1
        %v834 = vadd.f32 %v832, %v833
        %v835 = vadd.f32 %v401, %v417
        %v836 = vrot.slane %v835, 4
        %v837 = vadd.f32 %v835, %v836
        %v838 = vrot.slane %v837, 2
        %v839 = vadd.f32 %v837, %v838
        %v840 = vrot.slane %v839, 1
        %v841 = vadd.f32 %v839, %v840
        %v842 = vadd.f32 %v402, %v418
        %v843 = vrot.slane %v842, 4
        %v844 = vadd.f32 %v842, %v843
        %v845 = vrot.slane %v844, 2
        %v846 = vadd.f32 %v844, %v845
        %v847 = vrot.slane %v846, 1
        %v848 = vadd.f32 %v846, %v847
        %v849 = vadd.f32 %v403, %v419
        %v850 = vrot.slane %v849, 4
        %v851 = vadd.f32 %v849, %v850
        %v852 = vrot.slane %v851, 2
        %v853 = vadd.f32 %v851, %v852
        %v854 = vrot.slane %v853, 1
        %v855 = vadd.f32 %v853, %v854
        %v856 = vadd.f32 %v404, %v420
        %v857 = vrot.slane %v856, 4
        %v858 = vadd.f32 %v856, %v857
        %v859 = vrot.slane %v858, 2
        %v860 = vadd.f32 %v858, %v859
        %v861 = vrot.slane %v860, 1
        %v862 = vadd.f32 %v860, %v861
        %v863 = vadd.f32 %v405, %v421
        %v864 = vrot.slane %v863, 4
        %v865 = vadd.f32 %v863, %v864
        %v866 = vrot.slane %v865, 2
        %v867 = vadd.f32 %v865, %v866
        %v868 = vrot.slane %v867, 1
        %v869 = vadd.f32 %v867, %v868
        %v870 = vadd.f32 %v406, %v422
        %v871 = vrot.slane %v870, 4
        %v872 = vadd.f32 %v870, %v871
        %v873 = vrot.slane %v872, 2
        %v874 = vadd.f32 %v872, %v873
        %v875 = vrot.slane %v874, 1
        %v876 = vadd.f32 %v874, %v875
        %v877 = vadd.f32 %v407, %v423
        %v878 = vrot.slane %v877, 4
        %v879 = vadd.f32 %v877, %v878
        %v880 = vrot.slane %v879, 2
        %v881 = vadd.f32 %v879, %v880
        %v882 = vrot.slane %v881, 1
        %v883 = vadd.f32 %v881, %v882
        %v884 = vadd.f32 %v408, %v424
        %v885 = vrot.slane %v884, 4
        %v886 = vadd.f32 %v884, %v885
        %v887 = vrot.slane %v886, 2
        %v888 = vadd.f32 %v886, %v887
        %v889 = vrot.slane %v888, 1
        %v890 = vadd.f32 %v888, %v889
        %v891 = vadd.f32 %v409, %v425
        %v892 = vrot.slane %v891, 4
        %v893 = vadd.f32 %v891, %v892
        %v894 = vrot.slane %v893, 2
        %v895 = vadd.f32 %v893, %v894
        %v896 = vrot.slane %v895, 1
        %v897 = vadd.f32 %v895, %v896
        %v898 = vadd.f32 %v410, %v426
        %v899 = vrot.slane %v898, 4
        %v900 = vadd.f32 %v898, %v899
        %v901 = vrot.slane %v900, 2
        %v902 = vadd.f32 %v900, %v901
        %v903 = vrot.slane %v902, 1
        %v904 = vadd.f32 %v902, %v903
        %v905 = vadd.f32 %v411, %v427
        %v906 = vrot.slane %v905, 4
        %v907 = vadd.f32 %v905, %v906
        %v908 = vrot.slane %v907, 2
        %v909 = vadd.f32 %v907, %v908
        %v910 = vrot.slane %v909, 1
        %v911 = vadd.f32 %v909, %v910
        %v912 = vadd.f32 %v412, %v428
        %v913 = vrot.slane %v912, 4
        %v914 = vadd.f32 %v912, %v913
        %v915 = vrot.slane %v914, 2
        %v916 = vadd.f32 %v914, %v915
        %v917 = vrot.slane %v916, 1
        %v918 = vadd.f32 %v916, %v917
        %v919 = vadd.f32 %v413, %v429
        %v920 = vrot.slane %v919, 4
        %v921 = vadd.f32 %v919, %v920
        %v922 = vrot.slane %v921, 2
        %v923 = vadd.f32 %v921, %v922
        %v924 = vrot.slane %v923, 1
        %v925 = vadd.f32 %v923, %v924
        %v926 = vadd.f32 %v430, %v446
        %v927 = vrot.slane %v926, 4
        %v928 = vadd.f32 %v926, %v927
        %v929 = vrot.slane %v928, 2
        %v930 = vadd.f32 %v928, %v929
        %v931 = vrot.slane %v930, 1
        %v932 = vadd.f32 %v930, %v931
        %v933 = vadd.f32 %v431, %v447
        %v934 = vrot.slane %v933, 4
        %v935 = vadd.f32 %v933, %v934
        %v936 = vrot.slane %v935, 2
        %v937 = vadd.f32 %v935, %v936
        %v938 = vrot.slane %v937, 1
        %v939 = vadd.f32 %v937, %v938
        %v940 = vadd.f32 %v432, %v448
        %v941 = vrot.slane %v940, 4
        %v942 = vadd.f32 %v940, %v941
        %v943 = vrot.slane %v942, 2
        %v944 = vadd.f32 %v942, %v943
        %v945 = vrot.slane %v944, 1
        %v946 = vadd.f32 %v944, %v945
        %v947 = vadd.f32 %v433, %v449
        %v948 = vrot.slane %v947, 4
        %v949 = vadd.f32 %v947, %v948
        %v950 = vrot.slane %v949, 2
        %v951 = vadd.f32 %v949, %v950
        %v952 = vrot.slane %v951, 1
        %v953 = vadd.f32 %v951, %v952
        %v954 = vadd.f32 %v434, %v450
        %v955 = vrot.slane %v954, 4
        %v956 = vadd.f32 %v954, %v955
        %v957 = vrot.slane %v956, 2
        %v958 = vadd.f32 %v956, %v957
        %v959 = vrot.slane %v958, 1
        %v960 = vadd.f32 %v958, %v959
        %v961 = vadd.f32 %v435, %v451
        %v962 = vrot.slane %v961, 4
        %v963 = vadd.f32 %v961, %v962
        %v964 = vrot.slane %v963, 2
        %v965 = vadd.f32 %v963, %v964
        %v966 = vrot.slane %v965, 1
        %v967 = vadd.f32 %v965, %v966
        %v968 = vadd.f32 %v436, %v452
        %v969 = vrot.slane %v968, 4
        %v970 = vadd.f32 %v968, %v969
        %v971 = vrot.slane %v970, 2
        %v972 = vadd.f32 %v970, %v971
        %v973 = vrot.slane %v972, 1
        %v974 = vadd.f32 %v972, %v973
        %v975 = vadd.f32 %v437, %v453
        %v976 = vrot.slane %v975, 4
        %v977 = vadd.f32 %v975, %v976
        %v978 = vrot.slane %v977, 2
        %v979 = vadd.f32 %v977, %v978
        %v980 = vrot.slane %v979, 1
        %v981 = vadd.f32 %v979, %v980
        %v982 = vadd.f32 %v438, %v454
        %v983 = vrot.slane %v982, 4
        %v984 = vadd.f32 %v982, %v983
        %v985 = vrot.slane %v984, 2
        %v986 = vadd.f32 %v984, %v985
        %v987 = vrot.slane %v986, 1
        %v988 = vadd.f32 %v986, %v987
        %v989 = vadd.f32 %v439, %v455
        %v990 = vrot.slane %v989, 4
        %v991 = vadd.f32 %v989, %v990
        %v992 = vrot.slane %v991, 2
        %v993 = vadd.f32 %v991, %v992
        %v994 = vrot.slane %v993, 1
        %v995 = vadd.f32 %v993, %v994
        %v996 = vadd.f32 %v440, %v456
        %v997 = vrot.slane %v996, 4
        %v998 = vadd.f32 %v996, %v997
        %v999 = vrot.slane %v998, 2
        %v1000 = vadd.f32 %v998, %v999
        %v1001 = vrot.slane %v1000, 1
        %v1002 = vadd.f32 %v1000, %v1001
        %v1003 = vadd.f32 %v441, %v457
        %v1004 = vrot.slane %v1003, 4
        %v1005 = vadd.f32 %v1003, %v1004
        %v1006 = vrot.slane %v1005, 2
        %v1007 = vadd.f32 %v1005, %v1006
        %v1008 = vrot.slane %v1007, 1
        %v1009 = vadd.f32 %v1007, %v1008
        %v1010 = vadd.f32 %v442, %v458
        %v1011 = vrot.slane %v1010, 4
        %v1012 = vadd.f32 %v1010, %v1011
        %v1013 = vrot.slane %v1012, 2
        %v1014 = vadd.f32 %v1012, %v1013
        %v1015 = vrot.slane %v1014, 1
        %v1016 = vadd.f32 %v1014, %v1015
        %v1017 = vadd.f32 %v443, %v459
        %v1018 = vrot.slane %v1017, 4
        %v1019 = vadd.f32 %v1017, %v1018
        %v1020 = vrot.slane %v1019, 2
        %v1021 = vadd.f32 %v1019, %v1020
        %v1022 = vrot.slane %v1021, 1
        %v1023 = vadd.f32 %v1021, %v1022
        %v1024 = vadd.f32 %v444, %v460
        %v1025 = vrot.slane %v1024, 4
        %v1026 = vadd.f32 %v1024, %v1025
        %v1027 = vrot.slane %v1026, 2
        %v1028 = vadd.f32 %v1026, %v1027
        %v1029 = vrot.slane %v1028, 1
        %v1030 = vadd.f32 %v1028, %v1029
        %v1031 = vadd.f32 %v445, %v461
        %v1032 = vrot.slane %v1031, 4
        %v1033 = vadd.f32 %v1031, %v1032
        %v1034 = vrot.slane %v1033, 2
        %v1035 = vadd.f32 %v1033, %v1034
        %v1036 = vrot.slane %v1035, 1
        %v1037 = vadd.f32 %v1035, %v1036
        %v1038 = vadd.f32 %v462, %v478
        %v1039 = vrot.slane %v1038, 4
        %v1040 = vadd.f32 %v1038, %v1039
        %v1041 = vrot.slane %v1040, 2
        %v1042 = vadd.f32 %v1040, %v1041
        %v1043 = vrot.slane %v1042, 1
        %v1044 = vadd.f32 %v1042, %v1043
        %v1045 = vadd.f32 %v463, %v479
        %v1046 = vrot.slane %v1045, 4
        %v1047 = vadd.f32 %v1045, %v1046
        %v1048 = vrot.slane %v1047, 2
        %v1049 = vadd.f32 %v1047, %v1048
        %v1050 = vrot.slane %v1049, 1
        %v1051 = vadd.f32 %v1049, %v1050
        %v1052 = vadd.f32 %v464, %v480
        %v1053 = vrot.slane %v1052, 4
        %v1054 = vadd.f32 %v1052, %v1053
        %v1055 = vrot.slane %v1054, 2
        %v1056 = vadd.f32 %v1054, %v1055
        %v1057 = vrot.slane %v1056, 1
        %v1058 = vadd.f32 %v1056, %v1057
        %v1059 = vadd.f32 %v465, %v481
        %v1060 = vrot.slane %v1059, 4
        %v1061 = vadd.f32 %v1059, %v1060
        %v1062 = vrot.slane %v1061, 2
        %v1063 = vadd.f32 %v1061, %v1062
        %v1064 = vrot.slane %v1063, 1
        %v1065 = vadd.f32 %v1063, %v1064
        %v1066 = vadd.f32 %v466, %v482
        %v1067 = vrot.slane %v1066, 4
        %v1068 = vadd.f32 %v1066, %v1067
        %v1069 = vrot.slane %v1068, 2
        %v1070 = vadd.f32 %v1068, %v1069
        %v1071 = vrot.slane %v1070, 1
        %v1072 = vadd.f32 %v1070, %v1071
        %v1073 = vadd.f32 %v467, %v483
        %v1074 = vrot.slane %v1073, 4
        %v1075 = vadd.f32 %v1073, %v1074
        %v1076 = vrot.slane %v1075, 2
        %v1077 = vadd.f32 %v1075, %v1076
        %v1078 = vrot.slane %v1077, 1
        %v1079 = vadd.f32 %v1077, %v1078
        %v1080 = vadd.f32 %v468, %v484
        %v1081 = vrot.slane %v1080, 4
        %v1082 = vadd.f32 %v1080, %v1081
        %v1083 = vrot.slane %v1082, 2
        %v1084 = vadd.f32 %v1082, %v1083
        %v1085 = vrot.slane %v1084, 1
        %v1086 = vadd.f32 %v1084, %v1085
        %v1087 = vadd.f32 %v469, %v485
        %v1088 = vrot.slane %v1087, 4
        %v1089 = vadd.f32 %v1087, %v1088
        %v1090 = vrot.slane %v1089, 2
        %v1091 = vadd.f32 %v1089, %v1090
        %v1092 = vrot.slane %v1091, 1
        %v1093 = vadd.f32 %v1091, %v1092
        %v1094 = vadd.f32 %v470, %v486
        %v1095 = vrot.slane %v1094, 4
        %v1096 = vadd.f32 %v1094, %v1095
        %v1097 = vrot.slane %v1096, 2
        %v1098 = vadd.f32 %v1096, %v1097
        %v1099 = vrot.slane %v1098, 1
        %v1100 = vadd.f32 %v1098, %v1099
        %v1101 = vadd.f32 %v471, %v487
        %v1102 = vrot.slane %v1101, 4
        %v1103 = vadd.f32 %v1101, %v1102
        %v1104 = vrot.slane %v1103, 2
        %v1105 = vadd.f32 %v1103, %v1104
        %v1106 = vrot.slane %v1105, 1
        %v1107 = vadd.f32 %v1105, %v1106
        %v1108 = vadd.f32 %v472, %v488
        %v1109 = vrot.slane %v1108, 4
        %v1110 = vadd.f32 %v1108, %v1109
        %v1111 = vrot.slane %v1110, 2
        %v1112 = vadd.f32 %v1110, %v1111
        %v1113 = vrot.slane %v1112, 1
        %v1114 = vadd.f32 %v1112, %v1113
        %v1115 = vadd.f32 %v473, %v489
        %v1116 = vrot.slane %v1115, 4
        %v1117 = vadd.f32 %v1115, %v1116
        %v1118 = vrot.slane %v1117, 2
        %v1119 = vadd.f32 %v1117, %v1118
        %v1120 = vrot.slane %v1119, 1
        %v1121 = vadd.f32 %v1119, %v1120
        %v1122 = vadd.f32 %v474, %v490
        %v1123 = vrot.slane %v1122, 4
        %v1124 = vadd.f32 %v1122, %v1123
        %v1125 = vrot.slane %v1124, 2
        %v1126 = vadd.f32 %v1124, %v1125
        %v1127 = vrot.slane %v1126, 1
        %v1128 = vadd.f32 %v1126, %v1127
        %v1129 = vadd.f32 %v475, %v491
        %v1130 = vrot.slane %v1129, 4
        %v1131 = vadd.f32 %v1129, %v1130
        %v1132 = vrot.slane %v1131, 2
        %v1133 = vadd.f32 %v1131, %v1132
        %v1134 = vrot.slane %v1133, 1
        %v1135 = vadd.f32 %v1133, %v1134
        %v1136 = vadd.f32 %v476, %v492
        %v1137 = vrot.slane %v1136, 4
        %v1138 = vadd.f32 %v1136, %v1137
        %v1139 = vrot.slane %v1138, 2
        %v1140 = vadd.f32 %v1138, %v1139
        %v1141 = vrot.slane %v1140, 1
        %v1142 = vadd.f32 %v1140, %v1141
        %v1143 = vadd.f32 %v477, %v493
        %v1144 = vrot.slane %v1143, 4
        %v1145 = vadd.f32 %v1143, %v1144
        %v1146 = vrot.slane %v1145, 2
        %v1147 = vadd.f32 %v1145, %v1146
        %v1148 = vrot.slane %v1147, 1
        %v1149 = vadd.f32 %v1147, %v1148
        %v1150 = vadd.f32 %v494, %v510
        %v1151 = vrot.slane %v1150, 4
        %v1152 = vadd.f32 %v1150, %v1151
        %v1153 = vrot.slane %v1152, 2
        %v1154 = vadd.f32 %v1152, %v1153
        %v1155 = vrot.slane %v1154, 1
        %v1156 = vadd.f32 %v1154, %v1155
        %v1157 = vadd.f32 %v495, %v511
        %v1158 = vrot.slane %v1157, 4
        %v1159 = vadd.f32 %v1157, %v1158
        %v1160 = vrot.slane %v1159, 2
        %v1161 = vadd.f32 %v1159, %v1160
        %v1162 = vrot.slane %v1161, 1
        %v1163 = vadd.f32 %v1161, %v1162
        %v1164 = vadd.f32 %v496, %v512
        %v1165 = vrot.slane %v1164, 4
        %v1166 = vadd.f32 %v1164, %v1165
        %v1167 = vrot.slane %v1166, 2
        %v1168 = vadd.f32 %v1166, %v1167
        %v1169 = vrot.slane %v1168, 1
        %v1170 = vadd.f32 %v1168, %v1169
        %v1171 = vadd.f32 %v497, %v513
        %v1172 = vrot.slane %v1171, 4
        %v1173 = vadd.f32 %v1171, %v1172
        %v1174 = vrot.slane %v1173, 2
        %v1175 = vadd.f32 %v1173, %v1174
        %v1176 = vrot.slane %v1175, 1
        %v1177 = vadd.f32 %v1175, %v1176
        %v1178 = vadd.f32 %v498, %v514
        %v1179 = vrot.slane %v1178, 4
        %v1180 = vadd.f32 %v1178, %v1179
        %v1181 = vrot.slane %v1180, 2
        %v1182 = vadd.f32 %v1180, %v1181
        %v1183 = vrot.slane %v1182, 1
        %v1184 = vadd.f32 %v1182, %v1183
        %v1185 = vadd.f32 %v499, %v515
        %v1186 = vrot.slane %v1185, 4
        %v1187 = vadd.f32 %v1185, %v1186
        %v1188 = vrot.slane %v1187, 2
        %v1189 = vadd.f32 %v1187, %v1188
        %v1190 = vrot.slane %v1189, 1
        %v1191 = vadd.f32 %v1189, %v1190
        %v1192 = vadd.f32 %v500, %v516
        %v1193 = vrot.slane %v1192, 4
        %v1194 = vadd.f32 %v1192, %v1193
        %v1195 = vrot.slane %v1194, 2
        %v1196 = vadd.f32 %v1194, %v1195
        %v1197 = vrot.slane %v1196, 1
        %v1198 = vadd.f32 %v1196, %v1197
        %v1199 = vadd.f32 %v501, %v517
        %v1200 = vrot.slane %v1199, 4
        %v1201 = vadd.f32 %v1199, %v1200
        %v1202 = vrot.slane %v1201, 2
        %v1203 = vadd.f32 %v1201, %v1202
        %v1204 = vrot.slane %v1203, 1
        %v1205 = vadd.f32 %v1203, %v1204
        %v1206 = vadd.f32 %v502, %v518
        %v1207 = vrot.slane %v1206, 4
        %v1208 = vadd.f32 %v1206, %v1207
        %v1209 = vrot.slane %v1208, 2
        %v1210 = vadd.f32 %v1208, %v1209
        %v1211 = vrot.slane %v1210, 1
        %v1212 = vadd.f32 %v1210, %v1211
        %v1213 = vadd.f32 %v503, %v519
        %v1214 = vrot.slane %v1213, 4
        %v1215 = vadd.f32 %v1213, %v1214
        %v1216 = vrot.slane %v1215, 2
        %v1217 = vadd.f32 %v1215, %v1216
        %v1218 = vrot.slane %v1217, 1
        %v1219 = vadd.f32 %v1217, %v1218
        %v1220 = vadd.f32 %v504, %v520
        %v1221 = vrot.slane %v1220, 4
        %v1222 = vadd.f32 %v1220, %v1221
        %v1223 = vrot.slane %v1222, 2
        %v1224 = vadd.f32 %v1222, %v1223
        %v1225 = vrot.slane %v1224, 1
        %v1226 = vadd.f32 %v1224, %v1225
        %v1227 = vadd.f32 %v505, %v521
        %v1228 = vrot.slane %v1227, 4
        %v1229 = vadd.f32 %v1227, %v1228
        %v1230 = vrot.slane %v1229, 2
        %v1231 = vadd.f32 %v1229, %v1230
        %v1232 = vrot.slane %v1231, 1
        %v1233 = vadd.f32 %v1231, %v1232
        %v1234 = vadd.f32 %v506, %v522
        %v1235 = vrot.slane %v1234, 4
        %v1236 = vadd.f32 %v1234, %v1235
        %v1237 = vrot.slane %v1236, 2
        %v1238 = vadd.f32 %v1236, %v1237
        %v1239 = vrot.slane %v1238, 1
        %v1240 = vadd.f32 %v1238, %v1239
        %v1241 = vadd.f32 %v507, %v523
        %v1242 = vrot.slane %v1241, 4
        %v1243 = vadd.f32 %v1241, %v1242
        %v1244 = vrot.slane %v1243, 2
        %v1245 = vadd.f32 %v1243, %v1244
        %v1246 = vrot.slane %v1245, 1
        %v1247 = vadd.f32 %v1245, %v1246
        %v1248 = vadd.f32 %v508, %v524
        %v1249 = vrot.slane %v1248, 4
        %v1250 = vadd.f32 %v1248, %v1249
        %v1251 = vrot.slane %v1250, 2
        %v1252 = vadd.f32 %v1250, %v1251
        %v1253 = vrot.slane %v1252, 1
        %v1254 = vadd.f32 %v1252, %v1253
        %v1255 = vadd.f32 %v509, %v525
        %v1256 = vrot.slane %v1255, 4
        %v1257 = vadd.f32 %v1255, %v1256
        %v1258 = vrot.slane %v1257, 2
        %v1259 = vadd.f32 %v1257, %v1258
        %v1260 = vrot.slane %v1259, 1
        %v1261 = vadd.f32 %v1259, %v1260
        %v1262 = vadd.f32 %v526, %v542
        %v1263 = vrot.slane %v1262, 4
        %v1264 = vadd.f32 %v1262, %v1263
        %v1265 = vrot.slane %v1264, 2
        %v1266 = vadd.f32 %v1264, %v1265
        %v1267 = vrot.slane %v1266, 1
        %v1268 = vadd.f32 %v1266, %v1267
        %v1269 = vadd.f32 %v527, %v543
        %v1270 = vrot.slane %v1269, 4
        %v1271 = vadd.f32 %v1269, %v1270
        %v1272 = vrot.slane %v1271, 2
        %v1273 = vadd.f32 %v1271, %v1272
        %v1274 = vrot.slane %v1273, 1
        %v1275 = vadd.f32 %v1273, %v1274
        %v1276 = vadd.f32 %v528, %v544
        %v1277 = vrot.slane %v1276, 4
        %v1278 = vadd.f32 %v1276, %v1277
        %v1279 = vrot.slane %v1278, 2
        %v1280 = vadd.f32 %v1278, %v1279
        %v1281 = vrot.slane %v1280, 1
        %v1282 = vadd.f32 %v1280, %v1281
        %v1283 = vadd.f32 %v529, %v545
        %v1284 = vrot.slane %v1283, 4
        %v1285 = vadd.f32 %v1283, %v1284
        %v1286 = vrot.slane %v1285, 2
        %v1287 = vadd.f32 %v1285, %v1286
        %v1288 = vrot.slane %v1287, 1
        %v1289 = vadd.f32 %v1287, %v1288
        %v1290 = vadd.f32 %v530, %v546
        %v1291 = vrot.slane %v1290, 4
        %v1292 = vadd.f32 %v1290, %v1291
        %v1293 = vrot.slane %v1292, 2
        %v1294 = vadd.f32 %v1292, %v1293
        %v1295 = vrot.slane %v1294, 1
        %v1296 = vadd.f32 %v1294, %v1295
        %v1297 = vadd.f32 %v531, %v547
        %v1298 = vrot.slane %v1297, 4
        %v1299 = vadd.f32 %v1297, %v1298
        %v1300 = vrot.slane %v1299, 2
        %v1301 = vadd.f32 %v1299, %v1300
        %v1302 = vrot.slane %v1301, 1
        %v1303 = vadd.f32 %v1301, %v1302
        %v1304 = vadd.f32 %v532, %v548
        %v1305 = vrot.slane %v1304, 4
        %v1306 = vadd.f32 %v1304, %v1305
        %v1307 = vrot.slane %v1306, 2
        %v1308 = vadd.f32 %v1306, %v1307
        %v1309 = vrot.slane %v1308, 1
        %v1310 = vadd.f32 %v1308, %v1309
        %v1311 = vadd.f32 %v533, %v549
        %v1312 = vrot.slane %v1311, 4
        %v1313 = vadd.f32 %v1311, %v1312
        %v1314 = vrot.slane %v1313, 2
        %v1315 = vadd.f32 %v1313, %v1314
        %v1316 = vrot.slane %v1315, 1
        %v1317 = vadd.f32 %v1315, %v1316
        %v1318 = vadd.f32 %v534, %v550
        %v1319 = vrot.slane %v1318, 4
        %v1320 = vadd.f32 %v1318, %v1319
        %v1321 = vrot.slane %v1320, 2
        %v1322 = vadd.f32 %v1320, %v1321
        %v1323 = vrot.slane %v1322, 1
        %v1324 = vadd.f32 %v1322, %v1323
        %v1325 = vadd.f32 %v535, %v551
        %v1326 = vrot.slane %v1325, 4
        %v1327 = vadd.f32 %v1325, %v1326
        %v1328 = vrot.slane %v1327, 2
        %v1329 = vadd.f32 %v1327, %v1328
        %v1330 = vrot.slane %v1329, 1
        %v1331 = vadd.f32 %v1329, %v1330
        %v1332 = vadd.f32 %v536, %v552
        %v1333 = vrot.slane %v1332, 4
        %v1334 = vadd.f32 %v1332, %v1333
        %v1335 = vrot.slane %v1334, 2
        %v1336 = vadd.f32 %v1334, %v1335
        %v1337 = vrot.slane %v1336, 1
        %v1338 = vadd.f32 %v1336, %v1337
        %v1339 = vadd.f32 %v537, %v553
        %v1340 = vrot.slane %v1339, 4
        %v1341 = vadd.f32 %v1339, %v1340
        %v1342 = vrot.slane %v1341, 2
        %v1343 = vadd.f32 %v1341, %v1342
        %v1344 = vrot.slane %v1343, 1
        %v1345 = vadd.f32 %v1343, %v1344
        %v1346 = vadd.f32 %v538, %v554
        %v1347 = vrot.slane %v1346, 4
        %v1348 = vadd.f32 %v1346, %v1347
        %v1349 = vrot.slane %v1348, 2
        %v1350 = vadd.f32 %v1348, %v1349
        %v1351 = vrot.slane %v1350, 1
        %v1352 = vadd.f32 %v1350, %v1351
        %v1353 = vadd.f32 %v539, %v555
        %v1354 = vrot.slane %v1353, 4
        %v1355 = vadd.f32 %v1353, %v1354
        %v1356 = vrot.slane %v1355, 2
        %v1357 = vadd.f32 %v1355, %v1356
        %v1358 = vrot.slane %v1357, 1
        %v1359 = vadd.f32 %v1357, %v1358
        %v1360 = vadd.f32 %v540, %v556
        %v1361 = vrot.slane %v1360, 4
        %v1362 = vadd.f32 %v1360, %v1361
        %v1363 = vrot.slane %v1362, 2
        %v1364 = vadd.f32 %v1362, %v1363
        %v1365 = vrot.slane %v1364, 1
        %v1366 = vadd.f32 %v1364, %v1365
        %v1367 = vadd.f32 %v541, %v557
        %v1368 = vrot.slane %v1367, 4
        %v1369 = vadd.f32 %v1367, %v1368
        %v1370 = vrot.slane %v1369, 2
        %v1371 = vadd.f32 %v1369, %v1370
        %v1372 = vrot.slane %v1371, 1
        %v1373 = vadd.f32 %v1371, %v1372
        %v1374 = vadd.f32 %v558, %v574
        %v1375 = vrot.slane %v1374, 4
        %v1376 = vadd.f32 %v1374, %v1375
        %v1377 = vrot.slane %v1376, 2
        %v1378 = vadd.f32 %v1376, %v1377
        %v1379 = vrot.slane %v1378, 1
        %v1380 = vadd.f32 %v1378, %v1379
        %v1381 = vadd.f32 %v559, %v575
        %v1382 = vrot.slane %v1381, 4
        %v1383 = vadd.f32 %v1381, %v1382
        %v1384 = vrot.slane %v1383, 2
        %v1385 = vadd.f32 %v1383, %v1384
        %v1386 = vrot.slane %v1385, 1
        %v1387 = vadd.f32 %v1385, %v1386
        %v1388 = vadd.f32 %v560, %v576
        %v1389 = vrot.slane %v1388, 4
        %v1390 = vadd.f32 %v1388, %v1389
        %v1391 = vrot.slane %v1390, 2
        %v1392 = vadd.f32 %v1390, %v1391
        %v1393 = vrot.slane %v1392, 1
        %v1394 = vadd.f32 %v1392, %v1393
        %v1395 = vadd.f32 %v561, %v577
        %v1396 = vrot.slane %v1395, 4
        %v1397 = vadd.f32 %v1395, %v1396
        %v1398 = vrot.slane %v1397, 2
        %v1399 = vadd.f32 %v1397, %v1398
        %v1400 = vrot.slane %v1399, 1
        %v1401 = vadd.f32 %v1399, %v1400
        %v1402 = vadd.f32 %v562, %v578
        %v1403 = vrot.slane %v1402, 4
        %v1404 = vadd.f32 %v1402, %v1403
        %v1405 = vrot.slane %v1404, 2
        %v1406 = vadd.f32 %v1404, %v1405
        %v1407 = vrot.slane %v1406, 1
        %v1408 = vadd.f32 %v1406, %v1407
        %v1409 = vadd.f32 %v563, %v579
        %v1410 = vrot.slane %v1409, 4
        %v1411 = vadd.f32 %v1409, %v1410
        %v1412 = vrot.slane %v1411, 2
        %v1413 = vadd.f32 %v1411, %v1412
        %v1414 = vrot.slane %v1413, 1
        %v1415 = vadd.f32 %v1413, %v1414
        %v1416 = vadd.f32 %v564, %v580
        %v1417 = vrot.slane %v1416, 4
        %v1418 = vadd.f32 %v1416, %v1417
        %v1419 = vrot.slane %v1418, 2
        %v1420 = vadd.f32 %v1418, %v1419
        %v1421 = vrot.slane %v1420, 1
        %v1422 = vadd.f32 %v1420, %v1421
        %v1423 = vadd.f32 %v565, %v581
        %v1424 = vrot.slane %v1423, 4
        %v1425 = vadd.f32 %v1423, %v1424
        %v1426 = vrot.slane %v1425, 2
        %v1427 = vadd.f32 %v1425, %v1426
        %v1428 = vrot.slane %v1427, 1
        %v1429 = vadd.f32 %v1427, %v1428
        %v1430 = vadd.f32 %v566, %v582
        %v1431 = vrot.slane %v1430, 4
        %v1432 = vadd.f32 %v1430, %v1431
        %v1433 = vrot.slane %v1432, 2
        %v1434 = vadd.f32 %v1432, %v1433
        %v1435 = vrot.slane %v1434, 1
        %v1436 = vadd.f32 %v1434, %v1435
        %v1437 = vadd.f32 %v567, %v583
        %v1438 = vrot.slane %v1437, 4
        %v1439 = vadd.f32 %v1437, %v1438
        %v1440 = vrot.slane %v1439, 2
        %v1441 = vadd.f32 %v1439, %v1440
        %v1442 = vrot.slane %v1441, 1
        %v1443 = vadd.f32 %v1441, %v1442
        %v1444 = vadd.f32 %v568, %v584
        %v1445 = vrot.slane %v1444, 4
        %v1446 = vadd.f32 %v1444, %v1445
        %v1447 = vrot.slane %v1446, 2
        %v1448 = vadd.f32 %v1446, %v1447
        %v1449 = vrot.slane %v1448, 1
        %v1450 = vadd.f32 %v1448, %v1449
        %v1451 = vadd.f32 %v569, %v585
        %v1452 = vrot.slane %v1451, 4
        %v1453 = vadd.f32 %v1451, %v1452
        %v1454 = vrot.slane %v1453, 2
        %v1455 = vadd.f32 %v1453, %v1454
        %v1456 = vrot.slane %v1455, 1
        %v1457 = vadd.f32 %v1455, %v1456
        %v1458 = vadd.f32 %v570, %v586
        %v1459 = vrot.slane %v1458, 4
        %v1460 = vadd.f32 %v1458, %v1459
        %v1461 = vrot.slane %v1460, 2
        %v1462 = vadd.f32 %v1460, %v1461
        %v1463 = vrot.slane %v1462, 1
        %v1464 = vadd.f32 %v1462, %v1463
        %v1465 = vadd.f32 %v571, %v587
        %v1466 = vrot.slane %v1465, 4
        %v1467 = vadd.f32 %v1465, %v1466
        %v1468 = vrot.slane %v1467, 2
        %v1469 = vadd.f32 %v1467, %v1468
        %v1470 = vrot.slane %v1469, 1
        %v1471 = vadd.f32 %v1469, %v1470
        %v1472 = vadd.f32 %v572, %v588
        %v1473 = vrot.slane %v1472, 4
        %v1474 = vadd.f32 %v1472, %v1473
        %v1475 = vrot.slane %v1474, 2
        %v1476 = vadd.f32 %v1474, %v1475
        %v1477 = vrot.slane %v1476, 1
        %v1478 = vadd.f32 %v1476, %v1477
        %v1479 = vadd.f32 %v573, %v589
        %v1480 = vrot.slane %v1479, 4
        %v1481 = vadd.f32 %v1479, %v1480
        %v1482 = vrot.slane %v1481, 2
        %v1483 = vadd.f32 %v1481, %v1482
        %v1484 = vrot.slane %v1483, 1
        %v1485 = vadd.f32 %v1483, %v1484
        %v1486 = vpack.c.bf16 %v596, %v596
        %v1487 = vpack.c.bf16 %v603, %v603
        %v1488 = vpack.c.bf16 %v610, %v610
        %v1489 = vpack.c.bf16 %v617, %v617
        %v1490 = vpack.c.bf16 %v624, %v624
        %v1491 = vpack.c.bf16 %v631, %v631
        %v1492 = vpack.c.bf16 %v638, %v638
        %v1493 = vpack.c.bf16 %v645, %v645
        %v1494 = vpack.c.bf16 %v652, %v652
        %v1495 = vpack.c.bf16 %v659, %v659
        %v1496 = vpack.c.bf16 %v666, %v666
        %v1497 = vpack.c.bf16 %v673, %v673
        %v1498 = vpack.c.bf16 %v680, %v680
        %v1499 = vpack.c.bf16 %v687, %v687
        %v1500 = vpack.c.bf16 %v694, %v694
        %v1501 = vpack.c.bf16 %v701, %v701
        %v1502 = vpack.c.bf16 %v708, %v708
        %v1503 = vpack.c.bf16 %v715, %v715
        %v1504 = vpack.c.bf16 %v722, %v722
        %v1505 = vpack.c.bf16 %v729, %v729
        %v1506 = vpack.c.bf16 %v736, %v736
        %v1507 = vpack.c.bf16 %v743, %v743
        %v1508 = vpack.c.bf16 %v750, %v750
        %v1509 = vpack.c.bf16 %v757, %v757
        %v1510 = vpack.c.bf16 %v764, %v764
        %v1511 = vpack.c.bf16 %v771, %v771
        %v1512 = vpack.c.bf16 %v778, %v778
        %v1513 = vpack.c.bf16 %v785, %v785
        %v1514 = vpack.c.bf16 %v792, %v792
        %v1515 = vpack.c.bf16 %v799, %v799
        %v1516 = vpack.c.bf16 %v806, %v806
        %v1517 = vpack.c.bf16 %v813, %v813
        %v1518 = vpack.c.bf16 %v820, %v820
        %v1519 = vpack.c.bf16 %v827, %v827
        %v1520 = vpack.c.bf16 %v834, %v834
        %v1521 = vpack.c.bf16 %v841, %v841
        %v1522 = vpack.c.bf16 %v848, %v848
        %v1523 = vpack.c.bf16 %v855, %v855
        %v1524 = vpack.c.bf16 %v862, %v862
        %v1525 = vpack.c.bf16 %v869, %v869
        %v1526 = vpack.c.bf16 %v876, %v876
        %v1527 = vpack.c.bf16 %v883, %v883
        %v1528 = vpack.c.bf16 %v890, %v890
        %v1529 = vpack.c.bf16 %v897, %v897
        %v1530 = vpack.c.bf16 %v904, %v904
        %v1531 = vpack.c.bf16 %v911, %v911
        %v1532 = vpack.c.bf16 %v918, %v918
        %v1533 = vpack.c.bf16 %v925, %v925
        %v1534 = vpack.c.bf16 %v932, %v932
        %v1535 = vpack.c.bf16 %v939, %v939
        %v1536 = vpack.c.bf16 %v946, %v946
        %v1537 = vpack.c.bf16 %v953, %v953
        %v1538 = vpack.c.bf16 %v960, %v960
        %v1539 = vpack.c.bf16 %v967, %v967
        %v1540 = vpack.c.bf16 %v974, %v974
        %v1541 = vpack.c.bf16 %v981, %v981
        %v1542 = vpack.c.bf16 %v988, %v988
        %v1543 = vpack.c.bf16 %v995, %v995
        %v1544 = vpack.c.bf16 %v1002, %v1002
        %v1545 = vpack.c.bf16 %v1009, %v1009
        %v1546 = vpack.c.bf16 %v1016, %v1016
        %v1547 = vpack.c.bf16 %v1023, %v1023
        %v1548 = vpack.c.bf16 %v1030, %v1030
        %v1549 = vpack.c.bf16 %v1037, %v1037
        %v1550 = vpack.c.bf16 %v1044, %v1044
        %v1551 = vpack.c.bf16 %v1051, %v1051
        %v1552 = vpack.c.bf16 %v1058, %v1058
        %v1553 = vpack.c.bf16 %v1065, %v1065
        %v1554 = vpack.c.bf16 %v1072, %v1072
        %v1555 = vpack.c.bf16 %v1079, %v1079
        %v1556 = vpack.c.bf16 %v1086, %v1086
        %v1557 = vpack.c.bf16 %v1093, %v1093
        %v1558 = vpack.c.bf16 %v1100, %v1100
        %v1559 = vpack.c.bf16 %v1107, %v1107
        %v1560 = vpack.c.bf16 %v1114, %v1114
        %v1561 = vpack.c.bf16 %v1121, %v1121
        %v1562 = vpack.c.bf16 %v1128, %v1128
        %v1563 = vpack.c.bf16 %v1135, %v1135
        %v1564 = vpack.c.bf16 %v1142, %v1142
        %v1565 = vpack.c.bf16 %v1149, %v1149
        %v1566 = vpack.c.bf16 %v1156, %v1156
        %v1567 = vpack.c.bf16 %v1163, %v1163
        %v1568 = vpack.c.bf16 %v1170, %v1170
        %v1569 = vpack.c.bf16 %v1177, %v1177
        %v1570 = vpack.c.bf16 %v1184, %v1184
        %v1571 = vpack.c.bf16 %v1191, %v1191
        %v1572 = vpack.c.bf16 %v1198, %v1198
        %v1573 = vpack.c.bf16 %v1205, %v1205
        %v1574 = vpack.c.bf16 %v1212, %v1212
        %v1575 = vpack.c.bf16 %v1219, %v1219
        %v1576 = vpack.c.bf16 %v1226, %v1226
        %v1577 = vpack.c.bf16 %v1233, %v1233
        %v1578 = vpack.c.bf16 %v1240, %v1240
        %v1579 = vpack.c.bf16 %v1247, %v1247
        %v1580 = vpack.c.bf16 %v1254, %v1254
        %v1581 = vpack.c.bf16 %v1261, %v1261
        %v1582 = vpack.c.bf16 %v1268, %v1268
        %v1583 = vpack.c.bf16 %v1275, %v1275
        %v1584 = vpack.c.bf16 %v1282, %v1282
        %v1585 = vpack.c.bf16 %v1289, %v1289
        %v1586 = vpack.c.bf16 %v1296, %v1296
        %v1587 = vpack.c.bf16 %v1303, %v1303
        %v1588 = vpack.c.bf16 %v1310, %v1310
        %v1589 = vpack.c.bf16 %v1317, %v1317
        %v1590 = vpack.c.bf16 %v1324, %v1324
        %v1591 = vpack.c.bf16 %v1331, %v1331
        %v1592 = vpack.c.bf16 %v1338, %v1338
        %v1593 = vpack.c.bf16 %v1345, %v1345
        %v1594 = vpack.c.bf16 %v1352, %v1352
        %v1595 = vpack.c.bf16 %v1359, %v1359
        %v1596 = vpack.c.bf16 %v1366, %v1366
        %v1597 = vpack.c.bf16 %v1373, %v1373
        %v1598 = vpack.c.bf16 %v1380, %v1380
        %v1599 = vpack.c.bf16 %v1387, %v1387
        %v1600 = vpack.c.bf16 %v1394, %v1394
        %v1601 = vpack.c.bf16 %v1401, %v1401
        %v1602 = vpack.c.bf16 %v1408, %v1408
        %v1603 = vpack.c.bf16 %v1415, %v1415
        %v1604 = vpack.c.bf16 %v1422, %v1422
        %v1605 = vpack.c.bf16 %v1429, %v1429
        %v1606 = vpack.c.bf16 %v1436, %v1436
        %v1607 = vpack.c.bf16 %v1443, %v1443
        %v1608 = vpack.c.bf16 %v1450, %v1450
        %v1609 = vpack.c.bf16 %v1457, %v1457
        %v1610 = vpack.c.bf16 %v1464, %v1464
        %v1611 = vpack.c.bf16 %v1471, %v1471
        %v1612 = vpack.c.bf16 %v1478, %v1478
        %v1613 = vpack.c.bf16 %v1485, %v1485
        %v1614 = vld [vmem:[#allocation5] sm:$0xff]
        %v1615 = vld [vmem:[#allocation5 + $0x8] sm:$0xff]
        %v1616 = vld [vmem:[#allocation5 + $0x10] sm:$0xff]
        %v1617 = vld [vmem:[#allocation5 + $0x18] sm:$0xff]
        %v1618 = vld [vmem:[#allocation5 + $0x20] sm:$0xff]
        %v1619 = vld [vmem:[#allocation5 + $0x28] sm:$0xff]
        %v1620 = vld [vmem:[#allocation5 + $0x30] sm:$0xff]
        %v1621 = vld [vmem:[#allocation5 + $0x38] sm:$0xff]
        %v1622 = vld [vmem:[#allocation5 + $0x40] sm:$0xff]
        %v1623 = vld [vmem:[#allocation5 + $0x48] sm:$0xff]
        %v1624 = vld [vmem:[#allocation5 + $0x50] sm:$0xff]
        %v1625 = vld [vmem:[#allocation5 + $0x58] sm:$0xff]
        %v1626 = vld [vmem:[#allocation5 + $0x60] sm:$0xff]
        %v1627 = vld [vmem:[#allocation5 + $0x68] sm:$0xff]
        %v1628 = vld [vmem:[#allocation5 + $0x70] sm:$0xff]
        %v1629 = vld [vmem:[#allocation5 + $0x78] sm:$0xff]
        %v1630 = vld [vmem:[#allocation5 + $0x80] sm:$0xff]
        %v1631 = vld [vmem:[#allocation5 + $0x88] sm:$0xff]
        %v1632 = vld [vmem:[#allocation5 + $0x90] sm:$0xff]
        %v1633 = vld [vmem:[#allocation5 + $0x98] sm:$0xff]
        %v1634 = vld [vmem:[#allocation5 + $0xa0] sm:$0xff]
        %v1635 = vld [vmem:[#allocation5 + $0xa8] sm:$0xff]
        %v1636 = vld [vmem:[#allocation5 + $0xb0] sm:$0xff]
        %v1637 = vld [vmem:[#allocation5 + $0xb8] sm:$0xff]
        %v1638 = vld [vmem:[#allocation5 + $0xc0] sm:$0xff]
        %v1639 = vld [vmem:[#allocation5 + $0xc8] sm:$0xff]
        %v1640 = vld [vmem:[#allocation5 + $0xd0] sm:$0xff]
        %v1641 = vld [vmem:[#allocation5 + $0xd8] sm:$0xff]
        %v1642 = vld [vmem:[#allocation5 + $0xe0] sm:$0xff]
        %v1643 = vld [vmem:[#allocation5 + $0xe8] sm:$0xff]
        %v1644 = vld [vmem:[#allocation5 + $0xf0] sm:$0xff]
        %v1645 = vld [vmem:[#allocation5 + $0xf8] sm:$0xff]
        %v1646 = vld [vmem:[#allocation5 + $0x100] sm:$0xff]
        %v1647 = vld [vmem:[#allocation5 + $0x108] sm:$0xff]
        %v1648 = vld [vmem:[#allocation5 + $0x110] sm:$0xff]
        %v1649 = vld [vmem:[#allocation5 + $0x118] sm:$0xff]
        %v1650 = vld [vmem:[#allocation5 + $0x120] sm:$0xff]
        %v1651 = vld [vmem:[#allocation5 + $0x128] sm:$0xff]
        %v1652 = vld [vmem:[#allocation5 + $0x130] sm:$0xff]
        %v1653 = vld [vmem:[#allocation5 + $0x138] sm:$0xff]
        %v1654 = vld [vmem:[#allocation5 + $0x140] sm:$0xff]
        %v1655 = vld [vmem:[#allocation5 + $0x148] sm:$0xff]
        %v1656 = vld [vmem:[#allocation5 + $0x150] sm:$0xff]
        %v1657 = vld [vmem:[#allocation5 + $0x158] sm:$0xff]
        %v1658 = vld [vmem:[#allocation5 + $0x160] sm:$0xff]
        %v1659 = vld [vmem:[#allocation5 + $0x168] sm:$0xff]
        %v1660 = vld [vmem:[#allocation5 + $0x170] sm:$0xff]
        %v1661 = vld [vmem:[#allocation5 + $0x178] sm:$0xff]
        %v1662 = vld [vmem:[#allocation5 + $0x180] sm:$0xff]
        %v1663 = vld [vmem:[#allocation5 + $0x188] sm:$0xff]
        %v1664 = vld [vmem:[#allocation5 + $0x190] sm:$0xff]
        %v1665 = vld [vmem:[#allocation5 + $0x198] sm:$0xff]
        %v1666 = vld [vmem:[#allocation5 + $0x1a0] sm:$0xff]
        %v1667 = vld [vmem:[#allocation5 + $0x1a8] sm:$0xff]
        %v1668 = vld [vmem:[#allocation5 + $0x1b0] sm:$0xff]
        %v1669 = vld [vmem:[#allocation5 + $0x1b8] sm:$0xff]
        %v1670 = vld [vmem:[#allocation5 + $0x1c0] sm:$0xff]
        %v1671 = vld [vmem:[#allocation5 + $0x1c8] sm:$0xff]
        %v1672 = vld [vmem:[#allocation5 + $0x1d0] sm:$0xff]
        %v1673 = vld [vmem:[#allocation5 + $0x1d8] sm:$0xff]
        %v1674 = vld [vmem:[#allocation5 + $0x1e0] sm:$0xff]
        %v1675 = vld [vmem:[#allocation5 + $0x1e8] sm:$0xff]
        %v1676 = vld [vmem:[#allocation5 + $0x1f0] sm:$0xff]
        %v1677 = vld [vmem:[#allocation5 + $0x1f8] sm:$0xff]
        %v1678 = vld [vmem:[#allocation5 + $0x200] sm:$0xff]
        %v1679 = vld [vmem:[#allocation5 + $0x208] sm:$0xff]
        %v1680 = vld [vmem:[#allocation5 + $0x210] sm:$0xff]
        %v1681 = vld [vmem:[#allocation5 + $0x218] sm:$0xff]
        %v1682 = vld [vmem:[#allocation5 + $0x220] sm:$0xff]
        %v1683 = vld [vmem:[#allocation5 + $0x228] sm:$0xff]
        %v1684 = vld [vmem:[#allocation5 + $0x230] sm:$0xff]
        %v1685 = vld [vmem:[#allocation5 + $0x238] sm:$0xff]
        %v1686 = vld [vmem:[#allocation5 + $0x240] sm:$0xff]
        %v1687 = vld [vmem:[#allocation5 + $0x248] sm:$0xff]
        %v1688 = vld [vmem:[#allocation5 + $0x250] sm:$0xff]
        %v1689 = vld [vmem:[#allocation5 + $0x258] sm:$0xff]
        %v1690 = vld [vmem:[#allocation5 + $0x260] sm:$0xff]
        %v1691 = vld [vmem:[#allocation5 + $0x268] sm:$0xff]
        %v1692 = vld [vmem:[#allocation5 + $0x270] sm:$0xff]
        %v1693 = vld [vmem:[#allocation5 + $0x278] sm:$0xff]
        %v1694 = vld [vmem:[#allocation5 + $0x280] sm:$0xff]
        %v1695 = vld [vmem:[#allocation5 + $0x288] sm:$0xff]
        %v1696 = vld [vmem:[#allocation5 + $0x290] sm:$0xff]
        %v1697 = vld [vmem:[#allocation5 + $0x298] sm:$0xff]
        %v1698 = vld [vmem:[#allocation5 + $0x2a0] sm:$0xff]
        %v1699 = vld [vmem:[#allocation5 + $0x2a8] sm:$0xff]
        %v1700 = vld [vmem:[#allocation5 + $0x2b0] sm:$0xff]
        %v1701 = vld [vmem:[#allocation5 + $0x2b8] sm:$0xff]
        %v1702 = vld [vmem:[#allocation5 + $0x2c0] sm:$0xff]
        %v1703 = vld [vmem:[#allocation5 + $0x2c8] sm:$0xff]
        %v1704 = vld [vmem:[#allocation5 + $0x2d0] sm:$0xff]
        %v1705 = vld [vmem:[#allocation5 + $0x2d8] sm:$0xff]
        %v1706 = vld [vmem:[#allocation5 + $0x2e0] sm:$0xff]
        %v1707 = vld [vmem:[#allocation5 + $0x2e8] sm:$0xff]
        %v1708 = vld [vmem:[#allocation5 + $0x2f0] sm:$0xff]
        %v1709 = vld [vmem:[#allocation5 + $0x2f8] sm:$0xff]
        %v1710 = vld [vmem:[#allocation5 + $0x300] sm:$0xff]
        %v1711 = vld [vmem:[#allocation5 + $0x308] sm:$0xff]
        %v1712 = vld [vmem:[#allocation5 + $0x310] sm:$0xff]
        %v1713 = vld [vmem:[#allocation5 + $0x318] sm:$0xff]
        %v1714 = vld [vmem:[#allocation5 + $0x320] sm:$0xff]
        %v1715 = vld [vmem:[#allocation5 + $0x328] sm:$0xff]
        %v1716 = vld [vmem:[#allocation5 + $0x330] sm:$0xff]
        %v1717 = vld [vmem:[#allocation5 + $0x338] sm:$0xff]
        %v1718 = vld [vmem:[#allocation5 + $0x340] sm:$0xff]
        %v1719 = vld [vmem:[#allocation5 + $0x348] sm:$0xff]
        %v1720 = vld [vmem:[#allocation5 + $0x350] sm:$0xff]
        %v1721 = vld [vmem:[#allocation5 + $0x358] sm:$0xff]
        %v1722 = vld [vmem:[#allocation5 + $0x360] sm:$0xff]
        %v1723 = vld [vmem:[#allocation5 + $0x368] sm:$0xff]
        %v1724 = vld [vmem:[#allocation5 + $0x370] sm:$0xff]
        %v1725 = vld [vmem:[#allocation5 + $0x378] sm:$0xff]
        %v1726 = vld [vmem:[#allocation5 + $0x380] sm:$0xff]
        %v1727 = vld [vmem:[#allocation5 + $0x388] sm:$0xff]
        %v1728 = vld [vmem:[#allocation5 + $0x390] sm:$0xff]
        %v1729 = vld [vmem:[#allocation5 + $0x398] sm:$0xff]
        %v1730 = vld [vmem:[#allocation5 + $0x3a0] sm:$0xff]
        %v1731 = vld [vmem:[#allocation5 + $0x3a8] sm:$0xff]
        %v1732 = vld [vmem:[#allocation5 + $0x3b0] sm:$0xff]
        %v1733 = vld [vmem:[#allocation5 + $0x3b8] sm:$0xff]
        %v1734 = vld [vmem:[#allocation5 + $0x3c0] sm:$0xff]
        %v1735 = vld [vmem:[#allocation5 + $0x3c8] sm:$0xff]
        %v1736 = vld [vmem:[#allocation5 + $0x3d0] sm:$0xff]
        %v1737 = vld [vmem:[#allocation5 + $0x3d8] sm:$0xff]
        %v1738 = vld [vmem:[#allocation5 + $0x3e0] sm:$0xff]
        %v1739 = vld [vmem:[#allocation5 + $0x3e8] sm:$0xff]
        %v1740 = vld [vmem:[#allocation5 + $0x3f0] sm:$0xff]
        %v1741 = vld [vmem:[#allocation5 + $0x3f8] sm:$0xff]
        %v1742 = vld [vmem:[#allocation5 + $0x400] sm:$0xff]
        %v1743 = vld [vmem:[#allocation5 + $0x408] sm:$0xff]
        %v1744 = vld [vmem:[#allocation5 + $0x410] sm:$0xff]
        %v1745 = vld [vmem:[#allocation5 + $0x418] sm:$0xff]
        %v1746 = vld [vmem:[#allocation5 + $0x420] sm:$0xff]
        %v1747 = vld [vmem:[#allocation5 + $0x428] sm:$0xff]
        %v1748 = vld [vmem:[#allocation5 + $0x430] sm:$0xff]
        %v1749 = vld [vmem:[#allocation5 + $0x438] sm:$0xff]
        %v1750 = vld [vmem:[#allocation5 + $0x440] sm:$0xff]
        %v1751 = vld [vmem:[#allocation5 + $0x448] sm:$0xff]
        %v1752 = vld [vmem:[#allocation5 + $0x450] sm:$0xff]
        %v1753 = vld [vmem:[#allocation5 + $0x458] sm:$0xff]
        %v1754 = vld [vmem:[#allocation5 + $0x460] sm:$0xff]
        %v1755 = vld [vmem:[#allocation5 + $0x468] sm:$0xff]
        %v1756 = vld [vmem:[#allocation5 + $0x470] sm:$0xff]
        %v1757 = vld [vmem:[#allocation5 + $0x478] sm:$0xff]
        %v1758 = vld [vmem:[#allocation5 + $0x480] sm:$0xff]
        %v1759 = vld [vmem:[#allocation5 + $0x488] sm:$0xff]
        %v1760 = vld [vmem:[#allocation5 + $0x490] sm:$0xff]
        %v1761 = vld [vmem:[#allocation5 + $0x498] sm:$0xff]
        %v1762 = vld [vmem:[#allocation5 + $0x4a0] sm:$0xff]
        %v1763 = vld [vmem:[#allocation5 + $0x4a8] sm:$0xff]
        %v1764 = vld [vmem:[#allocation5 + $0x4b0] sm:$0xff]
        %v1765 = vld [vmem:[#allocation5 + $0x4b8] sm:$0xff]
        %v1766 = vld [vmem:[#allocation5 + $0x4c0] sm:$0xff]
        %v1767 = vld [vmem:[#allocation5 + $0x4c8] sm:$0xff]
        %v1768 = vld [vmem:[#allocation5 + $0x4d0] sm:$0xff]
        %v1769 = vld [vmem:[#allocation5 + $0x4d8] sm:$0xff]
        %v1770 = vld [vmem:[#allocation5 + $0x4e0] sm:$0xff]
        %v1771 = vld [vmem:[#allocation5 + $0x4e8] sm:$0xff]
        %v1772 = vld [vmem:[#allocation5 + $0x4f0] sm:$0xff]
        %v1773 = vld [vmem:[#allocation5 + $0x4f8] sm:$0xff]
        %v1774 = vld [vmem:[#allocation5 + $0x500] sm:$0xff]
        %v1775 = vld [vmem:[#allocation5 + $0x508] sm:$0xff]
        %v1776 = vld [vmem:[#allocation5 + $0x510] sm:$0xff]
        %v1777 = vld [vmem:[#allocation5 + $0x518] sm:$0xff]
        %v1778 = vld [vmem:[#allocation5 + $0x520] sm:$0xff]
        %v1779 = vld [vmem:[#allocation5 + $0x528] sm:$0xff]
        %v1780 = vld [vmem:[#allocation5 + $0x530] sm:$0xff]
        %v1781 = vld [vmem:[#allocation5 + $0x538] sm:$0xff]
        %v1782 = vld [vmem:[#allocation5 + $0x540] sm:$0xff]
        %v1783 = vld [vmem:[#allocation5 + $0x548] sm:$0xff]
        %v1784 = vld [vmem:[#allocation5 + $0x550] sm:$0xff]
        %v1785 = vld [vmem:[#allocation5 + $0x558] sm:$0xff]
        %v1786 = vld [vmem:[#allocation5 + $0x560] sm:$0xff]
        %v1787 = vld [vmem:[#allocation5 + $0x568] sm:$0xff]
        %v1788 = vld [vmem:[#allocation5 + $0x570] sm:$0xff]
        %v1789 = vld [vmem:[#allocation5 + $0x578] sm:$0xff]
        %v1790 = vld [vmem:[#allocation5 + $0x580] sm:$0xff]
        %v1791 = vld [vmem:[#allocation5 + $0x588] sm:$0xff]
        %v1792 = vld [vmem:[#allocation5 + $0x590] sm:$0xff]
        %v1793 = vld [vmem:[#allocation5 + $0x598] sm:$0xff]
        %v1794 = vld [vmem:[#allocation5 + $0x5a0] sm:$0xff]
        %v1795 = vld [vmem:[#allocation5 + $0x5a8] sm:$0xff]
        %v1796 = vld [vmem:[#allocation5 + $0x5b0] sm:$0xff]
        %v1797 = vld [vmem:[#allocation5 + $0x5b8] sm:$0xff]
        %v1798 = vld [vmem:[#allocation5 + $0x5c0] sm:$0xff]
        %v1799 = vld [vmem:[#allocation5 + $0x5c8] sm:$0xff]
        %v1800 = vld [vmem:[#allocation5 + $0x5d0] sm:$0xff]
        %v1801 = vld [vmem:[#allocation5 + $0x5d8] sm:$0xff]
        %v1802 = vld [vmem:[#allocation5 + $0x5e0] sm:$0xff]
        %v1803 = vld [vmem:[#allocation5 + $0x5e8] sm:$0xff]
        %v1804 = vld [vmem:[#allocation5 + $0x5f0] sm:$0xff]
        %v1805 = vld [vmem:[#allocation5 + $0x5f8] sm:$0xff]
        %v1806 = vld [vmem:[#allocation5 + $0x600] sm:$0xff]
        %v1807 = vld [vmem:[#allocation5 + $0x608] sm:$0xff]
        %v1808 = vld [vmem:[#allocation5 + $0x610] sm:$0xff]
        %v1809 = vld [vmem:[#allocation5 + $0x618] sm:$0xff]
        %v1810 = vld [vmem:[#allocation5 + $0x620] sm:$0xff]
        %v1811 = vld [vmem:[#allocation5 + $0x628] sm:$0xff]
        %v1812 = vld [vmem:[#allocation5 + $0x630] sm:$0xff]
        %v1813 = vld [vmem:[#allocation5 + $0x638] sm:$0xff]
        %v1814 = vld [vmem:[#allocation5 + $0x640] sm:$0xff]
        %v1815 = vld [vmem:[#allocation5 + $0x648] sm:$0xff]
        %v1816 = vld [vmem:[#allocation5 + $0x650] sm:$0xff]
        %v1817 = vld [vmem:[#allocation5 + $0x658] sm:$0xff]
        %v1818 = vld [vmem:[#allocation5 + $0x660] sm:$0xff]
        %v1819 = vld [vmem:[#allocation5 + $0x668] sm:$0xff]
        %v1820 = vld [vmem:[#allocation5 + $0x670] sm:$0xff]
        %v1821 = vld [vmem:[#allocation5 + $0x678] sm:$0xff]
        %v1822 = vld [vmem:[#allocation5 + $0x680] sm:$0xff]
        %v1823 = vld [vmem:[#allocation5 + $0x688] sm:$0xff]
        %v1824 = vld [vmem:[#allocation5 + $0x690] sm:$0xff]
        %v1825 = vld [vmem:[#allocation5 + $0x698] sm:$0xff]
        %v1826 = vld [vmem:[#allocation5 + $0x6a0] sm:$0xff]
        %v1827 = vld [vmem:[#allocation5 + $0x6a8] sm:$0xff]
        %v1828 = vld [vmem:[#allocation5 + $0x6b0] sm:$0xff]
        %v1829 = vld [vmem:[#allocation5 + $0x6b8] sm:$0xff]
        %v1830 = vld [vmem:[#allocation5 + $0x6c0] sm:$0xff]
        %v1831 = vld [vmem:[#allocation5 + $0x6c8] sm:$0xff]
        %v1832 = vld [vmem:[#allocation5 + $0x6d0] sm:$0xff]
        %v1833 = vld [vmem:[#allocation5 + $0x6d8] sm:$0xff]
        %v1834 = vld [vmem:[#allocation5 + $0x6e0] sm:$0xff]
        %v1835 = vld [vmem:[#allocation5 + $0x6e8] sm:$0xff]
        %v1836 = vld [vmem:[#allocation5 + $0x6f0] sm:$0xff]
        %v1837 = vld [vmem:[#allocation5 + $0x6f8] sm:$0xff]
        %v1838 = vld [vmem:[#allocation5 + $0x700] sm:$0xff]
        %v1839 = vld [vmem:[#allocation5 + $0x708] sm:$0xff]
        %v1840 = vld [vmem:[#allocation5 + $0x710] sm:$0xff]
        %v1841 = vld [vmem:[#allocation5 + $0x718] sm:$0xff]
        %v1842 = vld [vmem:[#allocation5 + $0x720] sm:$0xff]
        %v1843 = vld [vmem:[#allocation5 + $0x728] sm:$0xff]
        %v1844 = vld [vmem:[#allocation5 + $0x730] sm:$0xff]
        %v1845 = vld [vmem:[#allocation5 + $0x738] sm:$0xff]
        %v1846 = vld [vmem:[#allocation5 + $0x740] sm:$0xff]
        %v1847 = vld [vmem:[#allocation5 + $0x748] sm:$0xff]
        %v1848 = vld [vmem:[#allocation5 + $0x750] sm:$0xff]
        %v1849 = vld [vmem:[#allocation5 + $0x758] sm:$0xff]
        %v1850 = vld [vmem:[#allocation5 + $0x760] sm:$0xff]
        %v1851 = vld [vmem:[#allocation5 + $0x768] sm:$0xff]
        %v1852 = vld [vmem:[#allocation5 + $0x770] sm:$0xff]
        %v1853 = vld [vmem:[#allocation5 + $0x778] sm:$0xff]
        %v1854 = vld [vmem:[#allocation5 + $0x780] sm:$0xff]
        %v1855 = vld [vmem:[#allocation5 + $0x788] sm:$0xff]
        %v1856 = vld [vmem:[#allocation5 + $0x790] sm:$0xff]
        %v1857 = vld [vmem:[#allocation5 + $0x798] sm:$0xff]
        %v1858 = vld [vmem:[#allocation5 + $0x7a0] sm:$0xff]
        %v1859 = vld [vmem:[#allocation5 + $0x7a8] sm:$0xff]
        %v1860 = vld [vmem:[#allocation5 + $0x7b0] sm:$0xff]
        %v1861 = vld [vmem:[#allocation5 + $0x7b8] sm:$0xff]
        %v1862 = vld [vmem:[#allocation5 + $0x7c0] sm:$0xff]
        %v1863 = vld [vmem:[#allocation5 + $0x7c8] sm:$0xff]
        %v1864 = vld [vmem:[#allocation5 + $0x7d0] sm:$0xff]
        %v1865 = vld [vmem:[#allocation5 + $0x7d8] sm:$0xff]
        %v1866 = vld [vmem:[#allocation5 + $0x7e0] sm:$0xff]
        %v1867 = vld [vmem:[#allocation5 + $0x7e8] sm:$0xff]
        %v1868 = vld [vmem:[#allocation5 + $0x7f0] sm:$0xff]
        %v1869 = vld [vmem:[#allocation5 + $0x7f8] sm:$0xff]
        %v1870 = vld [vmem:[%s2] sm:$0x3]
        %v1872 = vlaneseq
        %v1873 = vshrl.u32 %v1872, 7
        %v1874 = vsub.s32 0, %v1873
        %v1875 = vrot.slane %v1870, %v1874
        %v1876 = vlaneseq
        %v1877 = vshrl.u32 %v1876, 7
        %v1878 = vsub.s32 1, %v1877
        %v1879 = vrot.slane %v1870, %v1878
        %v2010 = vunpack.c.l.b16 %v1486
        %v2011 = vunpack.c.l.b16 %v1487
        %v2012 = vunpack.c.l.b16 %v1488
        %v2013 = vunpack.c.l.b16 %v1489
        %v2014 = vunpack.c.l.b16 %v1490
        %v2015 = vunpack.c.l.b16 %v1491
        %v2016 = vunpack.c.l.b16 %v1492
        %v2017 = vunpack.c.l.b16 %v1493
        %v2018 = vunpack.c.l.b16 %v1494
        %v2019 = vunpack.c.l.b16 %v1495
        %v2020 = vunpack.c.l.b16 %v1496
        %v2021 = vunpack.c.l.b16 %v1497
        %v2022 = vunpack.c.l.b16 %v1498
        %v2023 = vunpack.c.l.b16 %v1499
        %v2024 = vunpack.c.l.b16 %v1500
        %v2025 = vunpack.c.l.b16 %v1501
        %v2026 = vunpack.c.l.b16 %v1502
        %v2027 = vunpack.c.l.b16 %v1503
        %v2028 = vunpack.c.l.b16 %v1504
        %v2029 = vunpack.c.l.b16 %v1505
        %v2030 = vunpack.c.l.b16 %v1506
        %v2031 = vunpack.c.l.b16 %v1507
        %v2032 = vunpack.c.l.b16 %v1508
        %v2033 = vunpack.c.l.b16 %v1509
        %v2034 = vunpack.c.l.b16 %v1510
        %v2035 = vunpack.c.l.b16 %v1511
        %v2036 = vunpack.c.l.b16 %v1512
        %v2037 = vunpack.c.l.b16 %v1513
        %v2038 = vunpack.c.l.b16 %v1514
        %v2039 = vunpack.c.l.b16 %v1515
        %v2040 = vunpack.c.l.b16 %v1516
        %v2041 = vunpack.c.l.b16 %v1517
        %v2042 = vunpack.c.l.b16 %v1518
        %v2043 = vunpack.c.l.b16 %v1519
        %v2044 = vunpack.c.l.b16 %v1520
        %v2045 = vunpack.c.l.b16 %v1521
        %v2046 = vunpack.c.l.b16 %v1522
        %v2047 = vunpack.c.l.b16 %v1523
        %v2048 = vunpack.c.l.b16 %v1524
        %v2049 = vunpack.c.l.b16 %v1525
        %v2050 = vunpack.c.l.b16 %v1526
        %v2051 = vunpack.c.l.b16 %v1527
        %v2052 = vunpack.c.l.b16 %v1528
        %v2053 = vunpack.c.l.b16 %v1529
        %v2054 = vunpack.c.l.b16 %v1530
        %v2055 = vunpack.c.l.b16 %v1531
        %v2056 = vunpack.c.l.b16 %v1532
        %v2057 = vunpack.c.l.b16 %v1533
        %v2058 = vunpack.c.l.b16 %v1534
        %v2059 = vunpack.c.l.b16 %v1535
        %v2060 = vunpack.c.l.b16 %v1536
        %v2061 = vunpack.c.l.b16 %v1537
        %v2062 = vunpack.c.l.b16 %v1538
        %v2063 = vunpack.c.l.b16 %v1539
        %v2064 = vunpack.c.l.b16 %v1540
        %v2065 = vunpack.c.l.b16 %v1541
        %v2066 = vunpack.c.l.b16 %v1542
        %v2067 = vunpack.c.l.b16 %v1543
        %v2068 = vunpack.c.l.b16 %v1544
        %v2069 = vunpack.c.l.b16 %v1545
        %v2070 = vunpack.c.l.b16 %v1546
        %v2071 = vunpack.c.l.b16 %v1547
        %v2072 = vunpack.c.l.b16 %v1548
        %v2073 = vunpack.c.l.b16 %v1549
        %v2074 = vunpack.c.l.b16 %v1550
        %v2075 = vunpack.c.l.b16 %v1551
        %v2076 = vunpack.c.l.b16 %v1552
        %v2077 = vunpack.c.l.b16 %v1553
        %v2078 = vunpack.c.l.b16 %v1554
        %v2079 = vunpack.c.l.b16 %v1555
        %v2080 = vunpack.c.l.b16 %v1556
        %v2081 = vunpack.c.l.b16 %v1557
        %v2082 = vunpack.c.l.b16 %v1558
        %v2083 = vunpack.c.l.b16 %v1559
        %v2084 = vunpack.c.l.b16 %v1560
        %v2085 = vunpack.c.l.b16 %v1561
        %v2086 = vunpack.c.l.b16 %v1562
        %v2087 = vunpack.c.l.b16 %v1563
        %v2088 = vunpack.c.l.b16 %v1564
        %v2089 = vunpack.c.l.b16 %v1565
        %v2090 = vunpack.c.l.b16 %v1566
        %v2091 = vunpack.c.l.b16 %v1567
        %v2092 = vunpack.c.l.b16 %v1568
        %v2093 = vunpack.c.l.b16 %v1569
        %v2094 = vunpack.c.l.b16 %v1570
        %v2095 = vunpack.c.l.b16 %v1571
        %v2096 = vunpack.c.l.b16 %v1572
        %v2097 = vunpack.c.l.b16 %v1573
        %v2098 = vunpack.c.l.b16 %v1574
        %v2099 = vunpack.c.l.b16 %v1575
        %v2100 = vunpack.c.l.b16 %v1576
        %v2101 = vunpack.c.l.b16 %v1577
        %v2102 = vunpack.c.l.b16 %v1578
        %v2103 = vunpack.c.l.b16 %v1579
        %v2104 = vunpack.c.l.b16 %v1580
        %v2105 = vunpack.c.l.b16 %v1581
        %v2106 = vunpack.c.l.b16 %v1582
        %v2107 = vunpack.c.l.b16 %v1583
        %v2108 = vunpack.c.l.b16 %v1584
        %v2109 = vunpack.c.l.b16 %v1585
        %v2110 = vunpack.c.l.b16 %v1586
        %v2111 = vunpack.c.l.b16 %v1587
        %v2112 = vunpack.c.l.b16 %v1588
        %v2113 = vunpack.c.l.b16 %v1589
        %v2114 = vunpack.c.l.b16 %v1590
        %v2115 = vunpack.c.l.b16 %v1591
        %v2116 = vunpack.c.l.b16 %v1592
        %v2117 = vunpack.c.l.b16 %v1593
        %v2118 = vunpack.c.l.b16 %v1594
        %v2119 = vunpack.c.l.b16 %v1595
        %v2120 = vunpack.c.l.b16 %v1596
        %v2121 = vunpack.c.l.b16 %v1597
        %v2122 = vunpack.c.l.b16 %v1598
        %v2123 = vunpack.c.l.b16 %v1599
        %v2124 = vunpack.c.l.b16 %v1600
        %v2125 = vunpack.c.l.b16 %v1601
        %v2126 = vunpack.c.l.b16 %v1602
        %v2127 = vunpack.c.l.b16 %v1603
        %v2128 = vunpack.c.l.b16 %v1604
        %v2129 = vunpack.c.l.b16 %v1605
        %v2130 = vunpack.c.l.b16 %v1606
        %v2131 = vunpack.c.l.b16 %v1607
        %v2132 = vunpack.c.l.b16 %v1608
        %v2133 = vunpack.c.l.b16 %v1609
        %v2134 = vunpack.c.l.b16 %v1610
        %v2135 = vunpack.c.l.b16 %v1611
        %v2136 = vunpack.c.l.b16 %v1612
        %v2137 = vunpack.c.l.b16 %v1613
        %vm2138 = vcmask 1041409
        %v2139 = vsel %vm2138, %v2026, %v2010
        %vm2140 = vcmask 1042434
        %v2141 = vsel %vm2140, %v2042, %v2139
        %vm2142 = vcmask 1043459
        %v2143 = vsel %vm2142, %v2058, %v2141
        %vm2144 = vcmask 1044484
        %v2145 = vsel %vm2144, %v2074, %v2143
        %vm2146 = vcmask 1045509
        %v2147 = vsel %vm2146, %v2090, %v2145
        %vm2148 = vcmask 1046534
        %v2149 = vsel %vm2148, %v2106, %v2147
        %vm2150 = vcmask 1047559
        %v2151 = vsel %vm2150, %v2122, %v2149
        %v2152 = vsel %vm2138, %v2027, %v2011
        %v2153 = vsel %vm2140, %v2043, %v2152
        %v2154 = vsel %vm2142, %v2059, %v2153
        %v2155 = vsel %vm2144, %v2075, %v2154
        %v2156 = vsel %vm2146, %v2091, %v2155
        %v2157 = vsel %vm2148, %v2107, %v2156
        %v2158 = vsel %vm2150, %v2123, %v2157
        %v2159 = vsel %vm2138, %v2028, %v2012
        %v2160 = vsel %vm2140, %v2044, %v2159
        %v2161 = vsel %vm2142, %v2060, %v2160
        %v2162 = vsel %vm2144, %v2076, %v2161
        %v2163 = vsel %vm2146, %v2092, %v2162
        %v2164 = vsel %vm2148, %v2108, %v2163
        %v2165 = vsel %vm2150, %v2124, %v2164
        %v2166 = vsel %vm2138, %v2029, %v2013
        %v2167 = vsel %vm2140, %v2045, %v2166
        %v2168 = vsel %vm2142, %v2061, %v2167
        %v2169 = vsel %vm2144, %v2077, %v2168
        %v2170 = vsel %vm2146, %v2093, %v2169
        %v2171 = vsel %vm2148, %v2109, %v2170
        %v2172 = vsel %vm2150, %v2125, %v2171
        %v2173 = vsel %vm2138, %v2030, %v2014
        %v2174 = vsel %vm2140, %v2046, %v2173
        %v2175 = vsel %vm2142, %v2062, %v2174
        %v2176 = vsel %vm2144, %v2078, %v2175
        %v2177 = vsel %vm2146, %v2094, %v2176
        %v2178 = vsel %vm2148, %v2110, %v2177
        %v2179 = vsel %vm2150, %v2126, %v2178
        %v2180 = vsel %vm2138, %v2031, %v2015
        %v2181 = vsel %vm2140, %v2047, %v2180
        %v2182 = vsel %vm2142, %v2063, %v2181
        %v2183 = vsel %vm2144, %v2079, %v2182
        %v2184 = vsel %vm2146, %v2095, %v2183
        %v2185 = vsel %vm2148, %v2111, %v2184
        %v2186 = vsel %vm2150, %v2127, %v2185
        %v2187 = vsel %vm2138, %v2032, %v2016
        %v2188 = vsel %vm2140, %v2048, %v2187
        %v2189 = vsel %vm2142, %v2064, %v2188
        %v2190 = vsel %vm2144, %v2080, %v2189
        %v2191 = vsel %vm2146, %v2096, %v2190
        %v2192 = vsel %vm2148, %v2112, %v2191
        %v2193 = vsel %vm2150, %v2128, %v2192
        %v2194 = vsel %vm2138, %v2033, %v2017
        %v2195 = vsel %vm2140, %v2049, %v2194
        %v2196 = vsel %vm2142, %v2065, %v2195
        %v2197 = vsel %vm2144, %v2081, %v2196
        %v2198 = vsel %vm2146, %v2097, %v2197
        %v2199 = vsel %vm2148, %v2113, %v2198
        %v2200 = vsel %vm2150, %v2129, %v2199
        %v2201 = vsel %vm2138, %v2034, %v2018
        %v2202 = vsel %vm2140, %v2050, %v2201
        %v2203 = vsel %vm2142, %v2066, %v2202
        %v2204 = vsel %vm2144, %v2082, %v2203
        %v2205 = vsel %vm2146, %v2098, %v2204
        %v2206 = vsel %vm2148, %v2114, %v2205
        %v2207 = vsel %vm2150, %v2130, %v2206
        %v2208 = vsel %vm2138, %v2035, %v2019
        %v2209 = vsel %vm2140, %v2051, %v2208
        %v2210 = vsel %vm2142, %v2067, %v2209
        %v2211 = vsel %vm2144, %v2083, %v2210
        %v2212 = vsel %vm2146, %v2099, %v2211
        %v2213 = vsel %vm2148, %v2115, %v2212
        %v2214 = vsel %vm2150, %v2131, %v2213
        %v2215 = vsel %vm2138, %v2036, %v2020
        %v2216 = vsel %vm2140, %v2052, %v2215
        %v2217 = vsel %vm2142, %v2068, %v2216
        %v2218 = vsel %vm2144, %v2084, %v2217
        %v2219 = vsel %vm2146, %v2100, %v2218
        %v2220 = vsel %vm2148, %v2116, %v2219
        %v2221 = vsel %vm2150, %v2132, %v2220
        %v2222 = vsel %vm2138, %v2037, %v2021
        %v2223 = vsel %vm2140, %v2053, %v2222
        %v2224 = vsel %vm2142, %v2069, %v2223
        %v2225 = vsel %vm2144, %v2085, %v2224
        %v2226 = vsel %vm2146, %v2101, %v2225
        %v2227 = vsel %vm2148, %v2117, %v2226
        %v2228 = vsel %vm2150, %v2133, %v2227
        %v2229 = vsel %vm2138, %v2038, %v2022
        %v2230 = vsel %vm2140, %v2054, %v2229
        %v2231 = vsel %vm2142, %v2070, %v2230
        %v2232 = vsel %vm2144, %v2086, %v2231
        %v2233 = vsel %vm2146, %v2102, %v2232
        %v2234 = vsel %vm2148, %v2118, %v2233
        %v2235 = vsel %vm2150, %v2134, %v2234
        %v2236 = vsel %vm2138, %v2039, %v2023
        %v2237 = vsel %vm2140, %v2055, %v2236
        %v2238 = vsel %vm2142, %v2071, %v2237
        %v2239 = vsel %vm2144, %v2087, %v2238
        %v2240 = vsel %vm2146, %v2103, %v2239
        %v2241 = vsel %vm2148, %v2119, %v2240
        %v2242 = vsel %vm2150, %v2135, %v2241
        %v2243 = vsel %vm2138, %v2040, %v2024
        %v2244 = vsel %vm2140, %v2056, %v2243
        %v2245 = vsel %vm2142, %v2072, %v2244
        %v2246 = vsel %vm2144, %v2088, %v2245
        %v2247 = vsel %vm2146, %v2104, %v2246
        %v2248 = vsel %vm2148, %v2120, %v2247
        %v2249 = vsel %vm2150, %v2136, %v2248
        %v2250 = vsel %vm2138, %v2041, %v2025
        %v2251 = vsel %vm2140, %v2057, %v2250
        %v2252 = vsel %vm2142, %v2073, %v2251
        %v2253 = vsel %vm2144, %v2089, %v2252
        %v2254 = vsel %vm2146, %v2105, %v2253
        %v2255 = vsel %vm2148, %v2121, %v2254
        %v2256 = vsel %vm2150, %v2137, %v2255
        %v2257 = vpack.c.b16 %v2151, %v2151
        %v2258 = vpack.c.b16 %v2158, %v2158
        %v2259 = vpack.c.b16 %v2165, %v2165
        %v2260 = vpack.c.b16 %v2172, %v2172
        %v2261 = vpack.c.b16 %v2179, %v2179
        %v2262 = vpack.c.b16 %v2186, %v2186
        %v2263 = vpack.c.b16 %v2193, %v2193
        %v2264 = vpack.c.b16 %v2200, %v2200
        %v2265 = vpack.c.b16 %v2207, %v2207
        %v2266 = vpack.c.b16 %v2214, %v2214
        %v2267 = vpack.c.b16 %v2221, %v2221
        %v2268 = vpack.c.b16 %v2228, %v2228
        %v2269 = vpack.c.b16 %v2235, %v2235
        %v2270 = vpack.c.b16 %v2242, %v2242
        %v2271 = vpack.c.b16 %v2249, %v2249
        %v2272 = vpack.c.b16 %v2256, %v2256
        %v2545 = vunpack.c.l.b16 %v1614
        %v2546 = vunpack.c.h.b16 %v1614
        %v2547 = vunpack.c.l.b16 %v1615
        %v2548 = vunpack.c.h.b16 %v1615
        %v2549 = vunpack.c.l.b16 %v1616
        %v2550 = vunpack.c.h.b16 %v1616
        %v2551 = vunpack.c.l.b16 %v1617
        %v2552 = vunpack.c.h.b16 %v1617
        %v2553 = vunpack.c.l.b16 %v1618
        %v2554 = vunpack.c.h.b16 %v1618
        %v2555 = vunpack.c.l.b16 %v1619
        %v2556 = vunpack.c.h.b16 %v1619
        %v2557 = vunpack.c.l.b16 %v1620
        %v2558 = vunpack.c.h.b16 %v1620
        %v2559 = vunpack.c.l.b16 %v1621
        %v2560 = vunpack.c.h.b16 %v1621
        %v2561 = vunpack.c.l.b16 %v1622
        %v2562 = vunpack.c.h.b16 %v1622
        %v2563 = vunpack.c.l.b16 %v1623
        %v2564 = vunpack.c.h.b16 %v1623
        %v2565 = vunpack.c.l.b16 %v1624
        %v2566 = vunpack.c.h.b16 %v1624
        %v2567 = vunpack.c.l.b16 %v1625
        %v2568 = vunpack.c.h.b16 %v1625
        %v2569 = vunpack.c.l.b16 %v1626
        %v2570 = vunpack.c.h.b16 %v1626
        %v2571 = vunpack.c.l.b16 %v1627
        %v2572 = vunpack.c.h.b16 %v1627
        %v2573 = vunpack.c.l.b16 %v1628
        %v2574 = vunpack.c.h.b16 %v1628
        %v2575 = vunpack.c.l.b16 %v1629
        %v2576 = vunpack.c.h.b16 %v1629
        %v2577 = vunpack.c.l.b16 %v1630
        %v2578 = vunpack.c.h.b16 %v1630
        %v2579 = vunpack.c.l.b16 %v1631
        %v2580 = vunpack.c.h.b16 %v1631
        %v2581 = vunpack.c.l.b16 %v1632
        %v2582 = vunpack.c.h.b16 %v1632
        %v2583 = vunpack.c.l.b16 %v1633
        %v2584 = vunpack.c.h.b16 %v1633
        %v2585 = vunpack.c.l.b16 %v1634
        %v2586 = vunpack.c.h.b16 %v1634
        %v2587 = vunpack.c.l.b16 %v1635
        %v2588 = vunpack.c.h.b16 %v1635
        %v2589 = vunpack.c.l.b16 %v1636
        %v2590 = vunpack.c.h.b16 %v1636
        %v2591 = vunpack.c.l.b16 %v1637
        %v2592 = vunpack.c.h.b16 %v1637
        %v2593 = vunpack.c.l.b16 %v1638
        %v2594 = vunpack.c.h.b16 %v1638
        %v2595 = vunpack.c.l.b16 %v1639
        %v2596 = vunpack.c.h.b16 %v1639
        %v2597 = vunpack.c.l.b16 %v1640
        %v2598 = vunpack.c.h.b16 %v1640
        %v2599 = vunpack.c.l.b16 %v1641
        %v2600 = vunpack.c.h.b16 %v1641
        %v2601 = vunpack.c.l.b16 %v1642
        %v2602 = vunpack.c.h.b16 %v1642
        %v2603 = vunpack.c.l.b16 %v1643
        %v2604 = vunpack.c.h.b16 %v1643
        %v2605 = vunpack.c.l.b16 %v1644
        %v2606 = vunpack.c.h.b16 %v1644
        %v2607 = vunpack.c.l.b16 %v1645
        %v2608 = vunpack.c.h.b16 %v1645
        %v2609 = vunpack.c.l.b16 %v1646
        %v2610 = vunpack.c.h.b16 %v1646
        %v2611 = vunpack.c.l.b16 %v1647
        %v2612 = vunpack.c.h.b16 %v1647
        %v2613 = vunpack.c.l.b16 %v1648
        %v2614 = vunpack.c.h.b16 %v1648
        %v2615 = vunpack.c.l.b16 %v1649
        %v2616 = vunpack.c.h.b16 %v1649
        %v2617 = vunpack.c.l.b16 %v1650
        %v2618 = vunpack.c.h.b16 %v1650
        %v2619 = vunpack.c.l.b16 %v1651
        %v2620 = vunpack.c.h.b16 %v1651
        %v2621 = vunpack.c.l.b16 %v1652
        %v2622 = vunpack.c.h.b16 %v1652
        %v2623 = vunpack.c.l.b16 %v1653
        %v2624 = vunpack.c.h.b16 %v1653
        %v2625 = vunpack.c.l.b16 %v1654
        %v2626 = vunpack.c.h.b16 %v1654
        %v2627 = vunpack.c.l.b16 %v1655
        %v2628 = vunpack.c.h.b16 %v1655
        %v2629 = vunpack.c.l.b16 %v1656
        %v2630 = vunpack.c.h.b16 %v1656
        %v2631 = vunpack.c.l.b16 %v1657
        %v2632 = vunpack.c.h.b16 %v1657
        %v2633 = vunpack.c.l.b16 %v1658
        %v2634 = vunpack.c.h.b16 %v1658
        %v2635 = vunpack.c.l.b16 %v1659
        %v2636 = vunpack.c.h.b16 %v1659
        %v2637 = vunpack.c.l.b16 %v1660
        %v2638 = vunpack.c.h.b16 %v1660
        %v2639 = vunpack.c.l.b16 %v1661
        %v2640 = vunpack.c.h.b16 %v1661
        %v2641 = vunpack.c.l.b16 %v1662
        %v2642 = vunpack.c.h.b16 %v1662
        %v2643 = vunpack.c.l.b16 %v1663
        %v2644 = vunpack.c.h.b16 %v1663
        %v2645 = vunpack.c.l.b16 %v1664
        %v2646 = vunpack.c.h.b16 %v1664
        %v2647 = vunpack.c.l.b16 %v1665
        %v2648 = vunpack.c.h.b16 %v1665
        %v2649 = vunpack.c.l.b16 %v1666
        %v2650 = vunpack.c.h.b16 %v1666
        %v2651 = vunpack.c.l.b16 %v1667
        %v2652 = vunpack.c.h.b16 %v1667
        %v2653 = vunpack.c.l.b16 %v1668
        %v2654 = vunpack.c.h.b16 %v1668
        %v2655 = vunpack.c.l.b16 %v1669
        %v2656 = vunpack.c.h.b16 %v1669
        %v2657 = vunpack.c.l.b16 %v1670
        %v2658 = vunpack.c.h.b16 %v1670
        %v2659 = vunpack.c.l.b16 %v1671
        %v2660 = vunpack.c.h.b16 %v1671
        %v2661 = vunpack.c.l.b16 %v1672
        %v2662 = vunpack.c.h.b16 %v1672
        %v2663 = vunpack.c.l.b16 %v1673
        %v2664 = vunpack.c.h.b16 %v1673
        %v2665 = vunpack.c.l.b16 %v1674
        %v2666 = vunpack.c.h.b16 %v1674
        %v2667 = vunpack.c.l.b16 %v1675
        %v2668 = vunpack.c.h.b16 %v1675
        %v2669 = vunpack.c.l.b16 %v1676
        %v2670 = vunpack.c.h.b16 %v1676
        %v2671 = vunpack.c.l.b16 %v1677
        %v2672 = vunpack.c.h.b16 %v1677
        %v2673 = vunpack.c.l.b16 %v1678
        %v2674 = vunpack.c.h.b16 %v1678
        %v2675 = vunpack.c.l.b16 %v1679
        %v2676 = vunpack.c.h.b16 %v1679
        %v2677 = vunpack.c.l.b16 %v1680
        %v2678 = vunpack.c.h.b16 %v1680
        %v2679 = vunpack.c.l.b16 %v1681
        %v2680 = vunpack.c.h.b16 %v1681
        %v2681 = vunpack.c.l.b16 %v1682
        %v2682 = vunpack.c.h.b16 %v1682
        %v2683 = vunpack.c.l.b16 %v1683
        %v2684 = vunpack.c.h.b16 %v1683
        %v2685 = vunpack.c.l.b16 %v1684
        %v2686 = vunpack.c.h.b16 %v1684
        %v2687 = vunpack.c.l.b16 %v1685
        %v2688 = vunpack.c.h.b16 %v1685
        %v2689 = vunpack.c.l.b16 %v1686
        %v2690 = vunpack.c.h.b16 %v1686
        %v2691 = vunpack.c.l.b16 %v1687
        %v2692 = vunpack.c.h.b16 %v1687
        %v2693 = vunpack.c.l.b16 %v1688
        %v2694 = vunpack.c.h.b16 %v1688
        %v2695 = vunpack.c.l.b16 %v1689
        %v2696 = vunpack.c.h.b16 %v1689
        %v2697 = vunpack.c.l.b16 %v1690
        %v2698 = vunpack.c.h.b16 %v1690
        %v2699 = vunpack.c.l.b16 %v1691
        %v2700 = vunpack.c.h.b16 %v1691
        %v2701 = vunpack.c.l.b16 %v1692
        %v2702 = vunpack.c.h.b16 %v1692
        %v2703 = vunpack.c.l.b16 %v1693
        %v2704 = vunpack.c.h.b16 %v1693
        %v2705 = vunpack.c.l.b16 %v1694
        %v2706 = vunpack.c.h.b16 %v1694
        %v2707 = vunpack.c.l.b16 %v1695
        %v2708 = vunpack.c.h.b16 %v1695
        %v2709 = vunpack.c.l.b16 %v1696
        %v2710 = vunpack.c.h.b16 %v1696
        %v2711 = vunpack.c.l.b16 %v1697
        %v2712 = vunpack.c.h.b16 %v1697
        %v2713 = vunpack.c.l.b16 %v1698
        %v2714 = vunpack.c.h.b16 %v1698
        %v2715 = vunpack.c.l.b16 %v1699
        %v2716 = vunpack.c.h.b16 %v1699
        %v2717 = vunpack.c.l.b16 %v1700
        %v2718 = vunpack.c.h.b16 %v1700
        %v2719 = vunpack.c.l.b16 %v1701
        %v2720 = vunpack.c.h.b16 %v1701
        %v2721 = vunpack.c.l.b16 %v1702
        %v2722 = vunpack.c.h.b16 %v1702
        %v2723 = vunpack.c.l.b16 %v1703
        %v2724 = vunpack.c.h.b16 %v1703
        %v2725 = vunpack.c.l.b16 %v1704
        %v2726 = vunpack.c.h.b16 %v1704
        %v2727 = vunpack.c.l.b16 %v1705
        %v2728 = vunpack.c.h.b16 %v1705
        %v2729 = vunpack.c.l.b16 %v1706
        %v2730 = vunpack.c.h.b16 %v1706
        %v2731 = vunpack.c.l.b16 %v1707
        %v2732 = vunpack.c.h.b16 %v1707
        %v2733 = vunpack.c.l.b16 %v1708
        %v2734 = vunpack.c.h.b16 %v1708
        %v2735 = vunpack.c.l.b16 %v1709
        %v2736 = vunpack.c.h.b16 %v1709
        %v2737 = vunpack.c.l.b16 %v1710
        %v2738 = vunpack.c.h.b16 %v1710
        %v2739 = vunpack.c.l.b16 %v1711
        %v2740 = vunpack.c.h.b16 %v1711
        %v2741 = vunpack.c.l.b16 %v1712
        %v2742 = vunpack.c.h.b16 %v1712
        %v2743 = vunpack.c.l.b16 %v1713
        %v2744 = vunpack.c.h.b16 %v1713
        %v2745 = vunpack.c.l.b16 %v1714
        %v2746 = vunpack.c.h.b16 %v1714
        %v2747 = vunpack.c.l.b16 %v1715
        %v2748 = vunpack.c.h.b16 %v1715
        %v2749 = vunpack.c.l.b16 %v1716
        %v2750 = vunpack.c.h.b16 %v1716
        %v2751 = vunpack.c.l.b16 %v1717
        %v2752 = vunpack.c.h.b16 %v1717
        %v2753 = vunpack.c.l.b16 %v1718
        %v2754 = vunpack.c.h.b16 %v1718
        %v2755 = vunpack.c.l.b16 %v1719
        %v2756 = vunpack.c.h.b16 %v1719
        %v2757 = vunpack.c.l.b16 %v1720
        %v2758 = vunpack.c.h.b16 %v1720
        %v2759 = vunpack.c.l.b16 %v1721
        %v2760 = vunpack.c.h.b16 %v1721
        %v2761 = vunpack.c.l.b16 %v1722
        %v2762 = vunpack.c.h.b16 %v1722
        %v2763 = vunpack.c.l.b16 %v1723
        %v2764 = vunpack.c.h.b16 %v1723
        %v2765 = vunpack.c.l.b16 %v1724
        %v2766 = vunpack.c.h.b16 %v1724
        %v2767 = vunpack.c.l.b16 %v1725
        %v2768 = vunpack.c.h.b16 %v1725
        %v2769 = vunpack.c.l.b16 %v1726
        %v2770 = vunpack.c.h.b16 %v1726
        %v2771 = vunpack.c.l.b16 %v1727
        %v2772 = vunpack.c.h.b16 %v1727
        %v2773 = vunpack.c.l.b16 %v1728
        %v2774 = vunpack.c.h.b16 %v1728
        %v2775 = vunpack.c.l.b16 %v1729
        %v2776 = vunpack.c.h.b16 %v1729
        %v2777 = vunpack.c.l.b16 %v1730
        %v2778 = vunpack.c.h.b16 %v1730
        %v2779 = vunpack.c.l.b16 %v1731
        %v2780 = vunpack.c.h.b16 %v1731
        %v2781 = vunpack.c.l.b16 %v1732
        %v2782 = vunpack.c.h.b16 %v1732
        %v2783 = vunpack.c.l.b16 %v1733
        %v2784 = vunpack.c.h.b16 %v1733
        %v2785 = vunpack.c.l.b16 %v1734
        %v2786 = vunpack.c.h.b16 %v1734
        %v2787 = vunpack.c.l.b16 %v1735
        %v2788 = vunpack.c.h.b16 %v1735
        %v2789 = vunpack.c.l.b16 %v1736
        %v2790 = vunpack.c.h.b16 %v1736
        %v2791 = vunpack.c.l.b16 %v1737
        %v2792 = vunpack.c.h.b16 %v1737
        %v2793 = vunpack.c.l.b16 %v1738
        %v2794 = vunpack.c.h.b16 %v1738
        %v2795 = vunpack.c.l.b16 %v1739
        %v2796 = vunpack.c.h.b16 %v1739
        %v2797 = vunpack.c.l.b16 %v1740
        %v2798 = vunpack.c.h.b16 %v1740
        %v2799 = vunpack.c.l.b16 %v1741
        %v2800 = vunpack.c.h.b16 %v1741
        %v2801 = vunpack.c.l.b16 %v1742
        %v2802 = vunpack.c.h.b16 %v1742
        %v2803 = vunpack.c.l.b16 %v1743
        %v2804 = vunpack.c.h.b16 %v1743
        %v2805 = vunpack.c.l.b16 %v1744
        %v2806 = vunpack.c.h.b16 %v1744
        %v2807 = vunpack.c.l.b16 %v1745
        %v2808 = vunpack.c.h.b16 %v1745
        %v2809 = vunpack.c.l.b16 %v1746
        %v2810 = vunpack.c.h.b16 %v1746
        %v2811 = vunpack.c.l.b16 %v1747
        %v2812 = vunpack.c.h.b16 %v1747
        %v2813 = vunpack.c.l.b16 %v1748
        %v2814 = vunpack.c.h.b16 %v1748
        %v2815 = vunpack.c.l.b16 %v1749
        %v2816 = vunpack.c.h.b16 %v1749
        %v2817 = vunpack.c.l.b16 %v1750
        %v2818 = vunpack.c.h.b16 %v1750
        %v2819 = vunpack.c.l.b16 %v1751
        %v2820 = vunpack.c.h.b16 %v1751
        %v2821 = vunpack.c.l.b16 %v1752
        %v2822 = vunpack.c.h.b16 %v1752
        %v2823 = vunpack.c.l.b16 %v1753
        %v2824 = vunpack.c.h.b16 %v1753
        %v2825 = vunpack.c.l.b16 %v1754
        %v2826 = vunpack.c.h.b16 %v1754
        %v2827 = vunpack.c.l.b16 %v1755
        %v2828 = vunpack.c.h.b16 %v1755
        %v2829 = vunpack.c.l.b16 %v1756
        %v2830 = vunpack.c.h.b16 %v1756
        %v2831 = vunpack.c.l.b16 %v1757
        %v2832 = vunpack.c.h.b16 %v1757
        %v2833 = vunpack.c.l.b16 %v1758
        %v2834 = vunpack.c.h.b16 %v1758
        %v2835 = vunpack.c.l.b16 %v1759
        %v2836 = vunpack.c.h.b16 %v1759
        %v2837 = vunpack.c.l.b16 %v1760
        %v2838 = vunpack.c.h.b16 %v1760
        %v2839 = vunpack.c.l.b16 %v1761
        %v2840 = vunpack.c.h.b16 %v1761
        %v2841 = vunpack.c.l.b16 %v1762
        %v2842 = vunpack.c.h.b16 %v1762
        %v2843 = vunpack.c.l.b16 %v1763
        %v2844 = vunpack.c.h.b16 %v1763
        %v2845 = vunpack.c.l.b16 %v1764
        %v2846 = vunpack.c.h.b16 %v1764
        %v2847 = vunpack.c.l.b16 %v1765
        %v2848 = vunpack.c.h.b16 %v1765
        %v2849 = vunpack.c.l.b16 %v1766
        %v2850 = vunpack.c.h.b16 %v1766
        %v2851 = vunpack.c.l.b16 %v1767
        %v2852 = vunpack.c.h.b16 %v1767
        %v2853 = vunpack.c.l.b16 %v1768
        %v2854 = vunpack.c.h.b16 %v1768
        %v2855 = vunpack.c.l.b16 %v1769
        %v2856 = vunpack.c.h.b16 %v1769
        %v2857 = vunpack.c.l.b16 %v1770
        %v2858 = vunpack.c.h.b16 %v1770
        %v2859 = vunpack.c.l.b16 %v1771
        %v2860 = vunpack.c.h.b16 %v1771
        %v2861 = vunpack.c.l.b16 %v1772
        %v2862 = vunpack.c.h.b16 %v1772
        %v2863 = vunpack.c.l.b16 %v1773
        %v2864 = vunpack.c.h.b16 %v1773
        %v2865 = vunpack.c.l.b16 %v1774
        %v2866 = vunpack.c.h.b16 %v1774
        %v2867 = vunpack.c.l.b16 %v1775
        %v2868 = vunpack.c.h.b16 %v1775
        %v2869 = vunpack.c.l.b16 %v1776
        %v2870 = vunpack.c.h.b16 %v1776
        %v2871 = vunpack.c.l.b16 %v1777
        %v2872 = vunpack.c.h.b16 %v1777
        %v2873 = vunpack.c.l.b16 %v1778
        %v2874 = vunpack.c.h.b16 %v1778
        %v2875 = vunpack.c.l.b16 %v1779
        %v2876 = vunpack.c.h.b16 %v1779
        %v2877 = vunpack.c.l.b16 %v1780
        %v2878 = vunpack.c.h.b16 %v1780
        %v2879 = vunpack.c.l.b16 %v1781
        %v2880 = vunpack.c.h.b16 %v1781
        %v2881 = vunpack.c.l.b16 %v1782
        %v2882 = vunpack.c.h.b16 %v1782
        %v2883 = vunpack.c.l.b16 %v1783
        %v2884 = vunpack.c.h.b16 %v1783
        %v2885 = vunpack.c.l.b16 %v1784
        %v2886 = vunpack.c.h.b16 %v1784
        %v2887 = vunpack.c.l.b16 %v1785
        %v2888 = vunpack.c.h.b16 %v1785
        %v2889 = vunpack.c.l.b16 %v1786
        %v2890 = vunpack.c.h.b16 %v1786
        %v2891 = vunpack.c.l.b16 %v1787
        %v2892 = vunpack.c.h.b16 %v1787
        %v2893 = vunpack.c.l.b16 %v1788
        %v2894 = vunpack.c.h.b16 %v1788
        %v2895 = vunpack.c.l.b16 %v1789
        %v2896 = vunpack.c.h.b16 %v1789
        %v2897 = vunpack.c.l.b16 %v1790
        %v2898 = vunpack.c.h.b16 %v1790
        %v2899 = vunpack.c.l.b16 %v1791
        %v2900 = vunpack.c.h.b16 %v1791
        %v2901 = vunpack.c.l.b16 %v1792
        %v2902 = vunpack.c.h.b16 %v1792
        %v2903 = vunpack.c.l.b16 %v1793
        %v2904 = vunpack.c.h.b16 %v1793
        %v2905 = vunpack.c.l.b16 %v1794
        %v2906 = vunpack.c.h.b16 %v1794
        %v2907 = vunpack.c.l.b16 %v1795
        %v2908 = vunpack.c.h.b16 %v1795
        %v2909 = vunpack.c.l.b16 %v1796
        %v2910 = vunpack.c.h.b16 %v1796
        %v2911 = vunpack.c.l.b16 %v1797
        %v2912 = vunpack.c.h.b16 %v1797
        %v2913 = vunpack.c.l.b16 %v1798
        %v2914 = vunpack.c.h.b16 %v1798
        %v2915 = vunpack.c.l.b16 %v1799
        %v2916 = vunpack.c.h.b16 %v1799
        %v2917 = vunpack.c.l.b16 %v1800
        %v2918 = vunpack.c.h.b16 %v1800
        %v2919 = vunpack.c.l.b16 %v1801
        %v2920 = vunpack.c.h.b16 %v1801
        %v2921 = vunpack.c.l.b16 %v1802
        %v2922 = vunpack.c.h.b16 %v1802
        %v2923 = vunpack.c.l.b16 %v1803
        %v2924 = vunpack.c.h.b16 %v1803
        %v2925 = vunpack.c.l.b16 %v1804
        %v2926 = vunpack.c.h.b16 %v1804
        %v2927 = vunpack.c.l.b16 %v1805
        %v2928 = vunpack.c.h.b16 %v1805
        %v2929 = vunpack.c.l.b16 %v1806
        %v2930 = vunpack.c.h.b16 %v1806
        %v2931 = vunpack.c.l.b16 %v1807
        %v2932 = vunpack.c.h.b16 %v1807
        %v2933 = vunpack.c.l.b16 %v1808
        %v2934 = vunpack.c.h.b16 %v1808
        %v2935 = vunpack.c.l.b16 %v1809
        %v2936 = vunpack.c.h.b16 %v1809
        %v2937 = vunpack.c.l.b16 %v1810
        %v2938 = vunpack.c.h.b16 %v1810
        %v2939 = vunpack.c.l.b16 %v1811
        %v2940 = vunpack.c.h.b16 %v1811
        %v2941 = vunpack.c.l.b16 %v1812
        %v2942 = vunpack.c.h.b16 %v1812
        %v2943 = vunpack.c.l.b16 %v1813
        %v2944 = vunpack.c.h.b16 %v1813
        %v2945 = vunpack.c.l.b16 %v1814
        %v2946 = vunpack.c.h.b16 %v1814
        %v2947 = vunpack.c.l.b16 %v1815
        %v2948 = vunpack.c.h.b16 %v1815
        %v2949 = vunpack.c.l.b16 %v1816
        %v2950 = vunpack.c.h.b16 %v1816
        %v2951 = vunpack.c.l.b16 %v1817
        %v2952 = vunpack.c.h.b16 %v1817
        %v2953 = vunpack.c.l.b16 %v1818
        %v2954 = vunpack.c.h.b16 %v1818
        %v2955 = vunpack.c.l.b16 %v1819
        %v2956 = vunpack.c.h.b16 %v1819
        %v2957 = vunpack.c.l.b16 %v1820
        %v2958 = vunpack.c.h.b16 %v1820
        %v2959 = vunpack.c.l.b16 %v1821
        %v2960 = vunpack.c.h.b16 %v1821
        %v2961 = vunpack.c.l.b16 %v1822
        %v2962 = vunpack.c.h.b16 %v1822
        %v2963 = vunpack.c.l.b16 %v1823
        %v2964 = vunpack.c.h.b16 %v1823
        %v2965 = vunpack.c.l.b16 %v1824
        %v2966 = vunpack.c.h.b16 %v1824
        %v2967 = vunpack.c.l.b16 %v1825
        %v2968 = vunpack.c.h.b16 %v1825
        %v2969 = vunpack.c.l.b16 %v1826
        %v2970 = vunpack.c.h.b16 %v1826
        %v2971 = vunpack.c.l.b16 %v1827
        %v2972 = vunpack.c.h.b16 %v1827
        %v2973 = vunpack.c.l.b16 %v1828
        %v2974 = vunpack.c.h.b16 %v1828
        %v2975 = vunpack.c.l.b16 %v1829
        %v2976 = vunpack.c.h.b16 %v1829
        %v2977 = vunpack.c.l.b16 %v1830
        %v2978 = vunpack.c.h.b16 %v1830
        %v2979 = vunpack.c.l.b16 %v1831
        %v2980 = vunpack.c.h.b16 %v1831
        %v2981 = vunpack.c.l.b16 %v1832
        %v2982 = vunpack.c.h.b16 %v1832
        %v2983 = vunpack.c.l.b16 %v1833
        %v2984 = vunpack.c.h.b16 %v1833
        %v2985 = vunpack.c.l.b16 %v1834
        %v2986 = vunpack.c.h.b16 %v1834
        %v2987 = vunpack.c.l.b16 %v1835
        %v2988 = vunpack.c.h.b16 %v1835
        %v2989 = vunpack.c.l.b16 %v1836
        %v2990 = vunpack.c.h.b16 %v1836
        %v2991 = vunpack.c.l.b16 %v1837
        %v2992 = vunpack.c.h.b16 %v1837
        %v2993 = vunpack.c.l.b16 %v1838
        %v2994 = vunpack.c.h.b16 %v1838
        %v2995 = vunpack.c.l.b16 %v1839
        %v2996 = vunpack.c.h.b16 %v1839
        %v2997 = vunpack.c.l.b16 %v1840
        %v2998 = vunpack.c.h.b16 %v1840
        %v2999 = vunpack.c.l.b16 %v1841
        %v3000 = vunpack.c.h.b16 %v1841
        %v3001 = vunpack.c.l.b16 %v1842
        %v3002 = vunpack.c.h.b16 %v1842
        %v3003 = vunpack.c.l.b16 %v1843
        %v3004 = vunpack.c.h.b16 %v1843
        %v3005 = vunpack.c.l.b16 %v1844
        %v3006 = vunpack.c.h.b16 %v1844
        %v3007 = vunpack.c.l.b16 %v1845
        %v3008 = vunpack.c.h.b16 %v1845
        %v3009 = vunpack.c.l.b16 %v1846
        %v3010 = vunpack.c.h.b16 %v1846
        %v3011 = vunpack.c.l.b16 %v1847
        %v3012 = vunpack.c.h.b16 %v1847
        %v3013 = vunpack.c.l.b16 %v1848
        %v3014 = vunpack.c.h.b16 %v1848
        %v3015 = vunpack.c.l.b16 %v1849
        %v3016 = vunpack.c.h.b16 %v1849
        %v3017 = vunpack.c.l.b16 %v1850
        %v3018 = vunpack.c.h.b16 %v1850
        %v3019 = vunpack.c.l.b16 %v1851
        %v3020 = vunpack.c.h.b16 %v1851
        %v3021 = vunpack.c.l.b16 %v1852
        %v3022 = vunpack.c.h.b16 %v1852
        %v3023 = vunpack.c.l.b16 %v1853
        %v3024 = vunpack.c.h.b16 %v1853
        %v3025 = vunpack.c.l.b16 %v1854
        %v3026 = vunpack.c.h.b16 %v1854
        %v3027 = vunpack.c.l.b16 %v1855
        %v3028 = vunpack.c.h.b16 %v1855
        %v3029 = vunpack.c.l.b16 %v1856
        %v3030 = vunpack.c.h.b16 %v1856
        %v3031 = vunpack.c.l.b16 %v1857
        %v3032 = vunpack.c.h.b16 %v1857
        %v3033 = vunpack.c.l.b16 %v1858
        %v3034 = vunpack.c.h.b16 %v1858
        %v3035 = vunpack.c.l.b16 %v1859
        %v3036 = vunpack.c.h.b16 %v1859
        %v3037 = vunpack.c.l.b16 %v1860
        %v3038 = vunpack.c.h.b16 %v1860
        %v3039 = vunpack.c.l.b16 %v1861
        %v3040 = vunpack.c.h.b16 %v1861
        %v3041 = vunpack.c.l.b16 %v1862
        %v3042 = vunpack.c.h.b16 %v1862
        %v3043 = vunpack.c.l.b16 %v1863
        %v3044 = vunpack.c.h.b16 %v1863
        %v3045 = vunpack.c.l.b16 %v1864
        %v3046 = vunpack.c.h.b16 %v1864
        %v3047 = vunpack.c.l.b16 %v1865
        %v3048 = vunpack.c.h.b16 %v1865
        %v3049 = vunpack.c.l.b16 %v1866
        %v3050 = vunpack.c.h.b16 %v1866
        %v3051 = vunpack.c.l.b16 %v1867
        %v3052 = vunpack.c.h.b16 %v1867
        %v3053 = vunpack.c.l.b16 %v1868
        %v3054 = vunpack.c.h.b16 %v1868
        %v3055 = vunpack.c.l.b16 %v1869
        %v3056 = vunpack.c.h.b16 %v1869
        %v3057 = vpack.c.b16 %v2547, %v2545
        %v3058 = vpack.c.b16 %v2548, %v2546
        %v3059 = vpack.c.b16 %v2551, %v2549
        %v3060 = vpack.c.b16 %v2552, %v2550
        %v3061 = vpack.c.b16 %v2555, %v2553
        %v3062 = vpack.c.b16 %v2556, %v2554
        %v3063 = vpack.c.b16 %v2559, %v2557
        %v3064 = vpack.c.b16 %v2560, %v2558
        %v3065 = vpack.c.b16 %v2563, %v2561
        %v3066 = vpack.c.b16 %v2564, %v2562
        %v3067 = vpack.c.b16 %v2567, %v2565
        %v3068 = vpack.c.b16 %v2568, %v2566
        %v3069 = vpack.c.b16 %v2571, %v2569
        %v3070 = vpack.c.b16 %v2572, %v2570
        %v3071 = vpack.c.b16 %v2575, %v2573
        %v3072 = vpack.c.b16 %v2576, %v2574
        %v3073 = vpack.c.b16 %v2579, %v2577
        %v3074 = vpack.c.b16 %v2580, %v2578
        %v3075 = vpack.c.b16 %v2583, %v2581
        %v3076 = vpack.c.b16 %v2584, %v2582
        %v3077 = vpack.c.b16 %v2587, %v2585
        %v3078 = vpack.c.b16 %v2588, %v2586
        %v3079 = vpack.c.b16 %v2591, %v2589
        %v3080 = vpack.c.b16 %v2592, %v2590
        %v3081 = vpack.c.b16 %v2595, %v2593
        %v3082 = vpack.c.b16 %v2596, %v2594
        %v3083 = vpack.c.b16 %v2599, %v2597
        %v3084 = vpack.c.b16 %v2600, %v2598
        %v3085 = vpack.c.b16 %v2603, %v2601
        %v3086 = vpack.c.b16 %v2604, %v2602
        %v3087 = vpack.c.b16 %v2607, %v2605
        %v3088 = vpack.c.b16 %v2608, %v2606
        %v3089 = vpack.c.b16 %v2611, %v2609
        %v3090 = vpack.c.b16 %v2612, %v2610
        %v3091 = vpack.c.b16 %v2615, %v2613
        %v3092 = vpack.c.b16 %v2616, %v2614
        %v3093 = vpack.c.b16 %v2619, %v2617
        %v3094 = vpack.c.b16 %v2620, %v2618
        %v3095 = vpack.c.b16 %v2623, %v2621
        %v3096 = vpack.c.b16 %v2624, %v2622
        %v3097 = vpack.c.b16 %v2627, %v2625
        %v3098 = vpack.c.b16 %v2628, %v2626
        %v3099 = vpack.c.b16 %v2631, %v2629
        %v3100 = vpack.c.b16 %v2632, %v2630
        %v3101 = vpack.c.b16 %v2635, %v2633
        %v3102 = vpack.c.b16 %v2636, %v2634
        %v3103 = vpack.c.b16 %v2639, %v2637
        %v3104 = vpack.c.b16 %v2640, %v2638
        %v3105 = vpack.c.b16 %v2643, %v2641
        %v3106 = vpack.c.b16 %v2644, %v2642
        %v3107 = vpack.c.b16 %v2647, %v2645
        %v3108 = vpack.c.b16 %v2648, %v2646
        %v3109 = vpack.c.b16 %v2651, %v2649
        %v3110 = vpack.c.b16 %v2652, %v2650
        %v3111 = vpack.c.b16 %v2655, %v2653
        %v3112 = vpack.c.b16 %v2656, %v2654
        %v3113 = vpack.c.b16 %v2659, %v2657
        %v3114 = vpack.c.b16 %v2660, %v2658
        %v3115 = vpack.c.b16 %v2663, %v2661
        %v3116 = vpack.c.b16 %v2664, %v2662
        %v3117 = vpack.c.b16 %v2667, %v2665
        %v3118 = vpack.c.b16 %v2668, %v2666
        %v3119 = vpack.c.b16 %v2671, %v2669
        %v3120 = vpack.c.b16 %v2672, %v2670
        %v3121 = vpack.c.b16 %v2675, %v2673
        %v3122 = vpack.c.b16 %v2676, %v2674
        %v3123 = vpack.c.b16 %v2679, %v2677
        %v3124 = vpack.c.b16 %v2680, %v2678
        %v3125 = vpack.c.b16 %v2683, %v2681
        %v3126 = vpack.c.b16 %v2684, %v2682
        %v3127 = vpack.c.b16 %v2687, %v2685
        %v3128 = vpack.c.b16 %v2688, %v2686
        %v3129 = vpack.c.b16 %v2691, %v2689
        %v3130 = vpack.c.b16 %v2692, %v2690
        %v3131 = vpack.c.b16 %v2695, %v2693
        %v3132 = vpack.c.b16 %v2696, %v2694
        %v3133 = vpack.c.b16 %v2699, %v2697
        %v3134 = vpack.c.b16 %v2700, %v2698
        %v3135 = vpack.c.b16 %v2703, %v2701
        %v3136 = vpack.c.b16 %v2704, %v2702
        %v3137 = vpack.c.b16 %v2707, %v2705
        %v3138 = vpack.c.b16 %v2708, %v2706
        %v3139 = vpack.c.b16 %v2711, %v2709
        %v3140 = vpack.c.b16 %v2712, %v2710
        %v3141 = vpack.c.b16 %v2715, %v2713
        %v3142 = vpack.c.b16 %v2716, %v2714
        %v3143 = vpack.c.b16 %v2719, %v2717
        %v3144 = vpack.c.b16 %v2720, %v2718
        %v3145 = vpack.c.b16 %v2723, %v2721
        %v3146 = vpack.c.b16 %v2724, %v2722
        %v3147 = vpack.c.b16 %v2727, %v2725
        %v3148 = vpack.c.b16 %v2728, %v2726
        %v3149 = vpack.c.b16 %v2731, %v2729
        %v3150 = vpack.c.b16 %v2732, %v2730
        %v3151 = vpack.c.b16 %v2735, %v2733
        %v3152 = vpack.c.b16 %v2736, %v2734
        %v3153 = vpack.c.b16 %v2739, %v2737
        %v3154 = vpack.c.b16 %v2740, %v2738
        %v3155 = vpack.c.b16 %v2743, %v2741
        %v3156 = vpack.c.b16 %v2744, %v2742
        %v3157 = vpack.c.b16 %v2747, %v2745
        %v3158 = vpack.c.b16 %v2748, %v2746
        %v3159 = vpack.c.b16 %v2751, %v2749
        %v3160 = vpack.c.b16 %v2752, %v2750
        %v3161 = vpack.c.b16 %v2755, %v2753
        %v3162 = vpack.c.b16 %v2756, %v2754
        %v3163 = vpack.c.b16 %v2759, %v2757
        %v3164 = vpack.c.b16 %v2760, %v2758
        %v3165 = vpack.c.b16 %v2763, %v2761
        %v3166 = vpack.c.b16 %v2764, %v2762
        %v3167 = vpack.c.b16 %v2767, %v2765
        %v3168 = vpack.c.b16 %v2768, %v2766
        %v3169 = vpack.c.b16 %v2771, %v2769
        %v3170 = vpack.c.b16 %v2772, %v2770
        %v3171 = vpack.c.b16 %v2775, %v2773
        %v3172 = vpack.c.b16 %v2776, %v2774
        %v3173 = vpack.c.b16 %v2779, %v2777
        %v3174 = vpack.c.b16 %v2780, %v2778
        %v3175 = vpack.c.b16 %v2783, %v2781
        %v3176 = vpack.c.b16 %v2784, %v2782
        %v3177 = vpack.c.b16 %v2787, %v2785
        %v3178 = vpack.c.b16 %v2788, %v2786
        %v3179 = vpack.c.b16 %v2791, %v2789
        %v3180 = vpack.c.b16 %v2792, %v2790
        %v3181 = vpack.c.b16 %v2795, %v2793
        %v3182 = vpack.c.b16 %v2796, %v2794
        %v3183 = vpack.c.b16 %v2799, %v2797
        %v3184 = vpack.c.b16 %v2800, %v2798
        %v3185 = vpack.c.b16 %v2803, %v2801
        %v3186 = vpack.c.b16 %v2804, %v2802
        %v3187 = vpack.c.b16 %v2807, %v2805
        %v3188 = vpack.c.b16 %v2808, %v2806
        %v3189 = vpack.c.b16 %v2811, %v2809
        %v3190 = vpack.c.b16 %v2812, %v2810
        %v3191 = vpack.c.b16 %v2815, %v2813
        %v3192 = vpack.c.b16 %v2816, %v2814
        %v3193 = vpack.c.b16 %v2819, %v2817
        %v3194 = vpack.c.b16 %v2820, %v2818
        %v3195 = vpack.c.b16 %v2823, %v2821
        %v3196 = vpack.c.b16 %v2824, %v2822
        %v3197 = vpack.c.b16 %v2827, %v2825
        %v3198 = vpack.c.b16 %v2828, %v2826
        %v3199 = vpack.c.b16 %v2831, %v2829
        %v3200 = vpack.c.b16 %v2832, %v2830
        %v3201 = vpack.c.b16 %v2835, %v2833
        %v3202 = vpack.c.b16 %v2836, %v2834
        %v3203 = vpack.c.b16 %v2839, %v2837
        %v3204 = vpack.c.b16 %v2840, %v2838
        %v3205 = vpack.c.b16 %v2843, %v2841
        %v3206 = vpack.c.b16 %v2844, %v2842
        %v3207 = vpack.c.b16 %v2847, %v2845
        %v3208 = vpack.c.b16 %v2848, %v2846
        %v3209 = vpack.c.b16 %v2851, %v2849
        %v3210 = vpack.c.b16 %v2852, %v2850
        %v3211 = vpack.c.b16 %v2855, %v2853
        %v3212 = vpack.c.b16 %v2856, %v2854
        %v3213 = vpack.c.b16 %v2859, %v2857
        %v3214 = vpack.c.b16 %v2860, %v2858
        %v3215 = vpack.c.b16 %v2863, %v2861
        %v3216 = vpack.c.b16 %v2864, %v2862
        %v3217 = vpack.c.b16 %v2867, %v2865
        %v3218 = vpack.c.b16 %v2868, %v2866
        %v3219 = vpack.c.b16 %v2871, %v2869
        %v3220 = vpack.c.b16 %v2872, %v2870
        %v3221 = vpack.c.b16 %v2875, %v2873
        %v3222 = vpack.c.b16 %v2876, %v2874
        %v3223 = vpack.c.b16 %v2879, %v2877
        %v3224 = vpack.c.b16 %v2880, %v2878
        %v3225 = vpack.c.b16 %v2883, %v2881
        %v3226 = vpack.c.b16 %v2884, %v2882
        %v3227 = vpack.c.b16 %v2887, %v2885
        %v3228 = vpack.c.b16 %v2888, %v2886
        %v3229 = vpack.c.b16 %v2891, %v2889
        %v3230 = vpack.c.b16 %v2892, %v2890
        %v3231 = vpack.c.b16 %v2895, %v2893
        %v3232 = vpack.c.b16 %v2896, %v2894
        %v3233 = vpack.c.b16 %v2899, %v2897
        %v3234 = vpack.c.b16 %v2900, %v2898
        %v3235 = vpack.c.b16 %v2903, %v2901
        %v3236 = vpack.c.b16 %v2904, %v2902
        %v3237 = vpack.c.b16 %v2907, %v2905
        %v3238 = vpack.c.b16 %v2908, %v2906
        %v3239 = vpack.c.b16 %v2911, %v2909
        %v3240 = vpack.c.b16 %v2912, %v2910
        %v3241 = vpack.c.b16 %v2915, %v2913
        %v3242 = vpack.c.b16 %v2916, %v2914
        %v3243 = vpack.c.b16 %v2919, %v2917
        %v3244 = vpack.c.b16 %v2920, %v2918
        %v3245 = vpack.c.b16 %v2923, %v2921
        %v3246 = vpack.c.b16 %v2924, %v2922
        %v3247 = vpack.c.b16 %v2927, %v2925
        %v3248 = vpack.c.b16 %v2928, %v2926
        %v3249 = vpack.c.b16 %v2931, %v2929
        %v3250 = vpack.c.b16 %v2932, %v2930
        %v3251 = vpack.c.b16 %v2935, %v2933
        %v3252 = vpack.c.b16 %v2936, %v2934
        %v3253 = vpack.c.b16 %v2939, %v2937
        %v3254 = vpack.c.b16 %v2940, %v2938
        %v3255 = vpack.c.b16 %v2943, %v2941
        %v3256 = vpack.c.b16 %v2944, %v2942
        %v3257 = vpack.c.b16 %v2947, %v2945
        %v3258 = vpack.c.b16 %v2948, %v2946
        %v3259 = vpack.c.b16 %v2951, %v2949
        %v3260 = vpack.c.b16 %v2952, %v2950
        %v3261 = vpack.c.b16 %v2955, %v2953
        %v3262 = vpack.c.b16 %v2956, %v2954
        %v3263 = vpack.c.b16 %v2959, %v2957
        %v3264 = vpack.c.b16 %v2960, %v2958
        %v3265 = vpack.c.b16 %v2963, %v2961
        %v3266 = vpack.c.b16 %v2964, %v2962
        %v3267 = vpack.c.b16 %v2967, %v2965
        %v3268 = vpack.c.b16 %v2968, %v2966
        %v3269 = vpack.c.b16 %v2971, %v2969
        %v3270 = vpack.c.b16 %v2972, %v2970
        %v3271 = vpack.c.b16 %v2975, %v2973
        %v3272 = vpack.c.b16 %v2976, %v2974
        %v3273 = vpack.c.b16 %v2979, %v2977
        %v3274 = vpack.c.b16 %v2980, %v2978
        %v3275 = vpack.c.b16 %v2983, %v2981
        %v3276 = vpack.c.b16 %v2984, %v2982
        %v3277 = vpack.c.b16 %v2987, %v2985
        %v3278 = vpack.c.b16 %v2988, %v2986
        %v3279 = vpack.c.b16 %v2991, %v2989
        %v3280 = vpack.c.b16 %v2992, %v2990
        %v3281 = vpack.c.b16 %v2995, %v2993
        %v3282 = vpack.c.b16 %v2996, %v2994
        %v3283 = vpack.c.b16 %v2999, %v2997
        %v3284 = vpack.c.b16 %v3000, %v2998
        %v3285 = vpack.c.b16 %v3003, %v3001
        %v3286 = vpack.c.b16 %v3004, %v3002
        %v3287 = vpack.c.b16 %v3007, %v3005
        %v3288 = vpack.c.b16 %v3008, %v3006
        %v3289 = vpack.c.b16 %v3011, %v3009
        %v3290 = vpack.c.b16 %v3012, %v3010
        %v3291 = vpack.c.b16 %v3015, %v3013
        %v3292 = vpack.c.b16 %v3016, %v3014
        %v3293 = vpack.c.b16 %v3019, %v3017
        %v3294 = vpack.c.b16 %v3020, %v3018
        %v3295 = vpack.c.b16 %v3023, %v3021
        %v3296 = vpack.c.b16 %v3024, %v3022
        %v3297 = vpack.c.b16 %v3027, %v3025
        %v3298 = vpack.c.b16 %v3028, %v3026
        %v3299 = vpack.c.b16 %v3031, %v3029
        %v3300 = vpack.c.b16 %v3032, %v3030
        %v3301 = vpack.c.b16 %v3035, %v3033
        %v3302 = vpack.c.b16 %v3036, %v3034
        %v3303 = vpack.c.b16 %v3039, %v3037
        %v3304 = vpack.c.b16 %v3040, %v3038
        %v3305 = vpack.c.b16 %v3043, %v3041
        %v3306 = vpack.c.b16 %v3044, %v3042
        %v3307 = vpack.c.b16 %v3047, %v3045
        %v3308 = vpack.c.b16 %v3048, %v3046
        %v3309 = vpack.c.b16 %v3051, %v3049
        %v3310 = vpack.c.b16 %v3052, %v3050
        %v3311 = vpack.c.b16 %v3055, %v3053
        %v3312 = vpack.c.b16 %v3056, %v3054
        %3569 = vmatprep.subr.bf16.mxu0 %v3058
        %3570 = vmatpush1.bf16.msra.mxu0 %v3057
        %3571 = vmatprep.subr.bf16.mxu0 %v3060
        %3572 = vmatpush1.bf16.msra.mxu0 %v3059
        %3573 = vmatprep.subr.bf16.mxu0 %v3062
        %3574 = vmatpush1.bf16.msra.mxu0 %v3061
        %3575 = vmatprep.subr.bf16.mxu0 %v3064
        %3576 = vmatpush1.bf16.msra.mxu0 %v3063
        %3577 = vmatprep.subr.bf16.mxu0 %v3066
        %3578 = vmatpush1.bf16.msra.mxu0 %v3065
        %3579 = vmatprep.subr.bf16.mxu0 %v3068
        %3580 = vmatpush1.bf16.msra.mxu0 %v3067
        %3581 = vmatprep.subr.bf16.mxu0 %v3070
        %3582 = vmatpush1.bf16.msra.mxu0 %v3069
        %3583 = vmatprep.subr.bf16.mxu0 %v3072
        %3584 = vmatpush1.bf16.msra.mxu0 %v3071
        %3585 = vmatprep.subr.bf16.mxu0 %v3074
        %3586 = vmatpush1.bf16.msra.mxu0 %v3073
        %3587 = vmatprep.subr.bf16.mxu0 %v3076
        %3588 = vmatpush1.bf16.msra.mxu0 %v3075
        %3589 = vmatprep.subr.bf16.mxu0 %v3078
        %3590 = vmatpush1.bf16.msra.mxu0 %v3077
        %3591 = vmatprep.subr.bf16.mxu0 %v3080
        %3592 = vmatpush1.bf16.msra.mxu0 %v3079
        %3593 = vmatprep.subr.bf16.mxu0 %v3082
        %3594 = vmatpush1.bf16.msra.mxu0 %v3081
        %3595 = vmatprep.subr.bf16.mxu0 %v3084
        %3596 = vmatpush1.bf16.msra.mxu0 %v3083
        %3597 = vmatprep.subr.bf16.mxu0 %v3086
        %3598 = vmatpush1.bf16.msra.mxu0 %v3085
        %3599 = vmatprep.subr.bf16.mxu0 %v3088
        %3600 = vmatpush1.bf16.msra.mxu0 %v3087
        %3601 = vmatprep.mubr.bf16.mxu0 %v2258
        %3602 = vmatmul.mubr.bf16.gmra.mrb[0].mxu0 %v2257
        %v3603 = vpop.f32.mrb[0].mxu0
        %v3604 = vadd.f32 %v1875, %v3603
        %v3605 = vpop.f32.mrb[0].mxu0
        %v3606 = vadd.f32 %v1879, %v3605
        %v3607 = vpop.f32.mrb[0].mxu0
        %v3608 = vpop.f32.mrb[0].mxu0
        %3609 = vdwg.mxu0
        %3610 = vmatprep.subr.bf16.mxu0 %v3090
        %3611 = vmatpush1.bf16.msra.mxu0 %v3089
        %3612 = vmatprep.subr.bf16.mxu0 %v3092
        %3613 = vmatpush1.bf16.msra.mxu0 %v3091
        %3614 = vmatprep.subr.bf16.mxu0 %v3094
        %3615 = vmatpush1.bf16.msra.mxu0 %v3093
        %3616 = vmatprep.subr.bf16.mxu0 %v3096
        %3617 = vmatpush1.bf16.msra.mxu0 %v3095
        %3618 = vmatprep.subr.bf16.mxu0 %v3098
        %3619 = vmatpush1.bf16.msra.mxu0 %v3097
        %3620 = vmatprep.subr.bf16.mxu0 %v3100
        %3621 = vmatpush1.bf16.msra.mxu0 %v3099
        %3622 = vmatprep.subr.bf16.mxu0 %v3102
        %3623 = vmatpush1.bf16.msra.mxu0 %v3101
        %3624 = vmatprep.subr.bf16.mxu0 %v3104
        %3625 = vmatpush1.bf16.msra.mxu0 %v3103
        %3626 = vmatprep.subr.bf16.mxu0 %v3106
        %3627 = vmatpush1.bf16.msra.mxu0 %v3105
        %3628 = vmatprep.subr.bf16.mxu0 %v3108
        %3629 = vmatpush1.bf16.msra.mxu0 %v3107
        %3630 = vmatprep.subr.bf16.mxu0 %v3110
        %3631 = vmatpush1.bf16.msra.mxu0 %v3109
        %3632 = vmatprep.subr.bf16.mxu0 %v3112
        %3633 = vmatpush1.bf16.msra.mxu0 %v3111
        %3634 = vmatprep.subr.bf16.mxu0 %v3114
        %3635 = vmatpush1.bf16.msra.mxu0 %v3113
        %3636 = vmatprep.subr.bf16.mxu0 %v3116
        %3637 = vmatpush1.bf16.msra.mxu0 %v3115
        %3638 = vmatprep.subr.bf16.mxu0 %v3118
        %3639 = vmatpush1.bf16.msra.mxu0 %v3117
        %3640 = vmatprep.subr.bf16.mxu0 %v3120
        %3641 = vmatpush1.bf16.msra.mxu0 %v3119
        %3642 = vmatprep.mubr.bf16.mxu0 %v2260
        %3643 = vmatmul.mubr.bf16.gmra.mrb[0].mxu0 %v2259
        %v3644 = vpop.f32.mrb[0].mxu0
        %v3645 = vadd.f32 %v3604, %v3644
        %v3646 = vpop.f32.mrb[0].mxu0
        %v3647 = vadd.f32 %v3606, %v3646
        %v3648 = vpop.f32.mrb[0].mxu0
        %v3649 = vpop.f32.mrb[0].mxu0
        %3650 = vdwg.mxu0
        %3651 = vmatprep.subr.bf16.mxu0 %v3122
        %3652 = vmatpush1.bf16.msra.mxu0 %v3121
        %3653 = vmatprep.subr.bf16.mxu0 %v3124
        %3654 = vmatpush1.bf16.msra.mxu0 %v3123
        %3655 = vmatprep.subr.bf16.mxu0 %v3126
        %3656 = vmatpush1.bf16.msra.mxu0 %v3125
        %3657 = vmatprep.subr.bf16.mxu0 %v3128
        %3658 = vmatpush1.bf16.msra.mxu0 %v3127
        %3659 = vmatprep.subr.bf16.mxu0 %v3130
        %3660 = vmatpush1.bf16.msra.mxu0 %v3129
        %3661 = vmatprep.subr.bf16.mxu0 %v3132
        %3662 = vmatpush1.bf16.msra.mxu0 %v3131
        %3663 = vmatprep.subr.bf16.mxu0 %v3134
        %3664 = vmatpush1.bf16.msra.mxu0 %v3133
        %3665 = vmatprep.subr.bf16.mxu0 %v3136
        %3666 = vmatpush1.bf16.msra.mxu0 %v3135
        %3667 = vmatprep.subr.bf16.mxu0 %v3138
        %3668 = vmatpush1.bf16.msra.mxu0 %v3137
        %3669 = vmatprep.subr.bf16.mxu0 %v3140
        %3670 = vmatpush1.bf16.msra.mxu0 %v3139
        %3671 = vmatprep.subr.bf16.mxu0 %v3142
        %3672 = vmatpush1.bf16.msra.mxu0 %v3141
        %3673 = vmatprep.subr.bf16.mxu0 %v3144
        %3674 = vmatpush1.bf16.msra.mxu0 %v3143
        %3675 = vmatprep.subr.bf16.mxu0 %v3146
        %3676 = vmatpush1.bf16.msra.mxu0 %v3145
        %3677 = vmatprep.subr.bf16.mxu0 %v3148
        %3678 = vmatpush1.bf16.msra.mxu0 %v3147
        %3679 = vmatprep.subr.bf16.mxu0 %v3150
        %3680 = vmatpush1.bf16.msra.mxu0 %v3149
        %3681 = vmatprep.subr.bf16.mxu0 %v3152
        %3682 = vmatpush1.bf16.msra.mxu0 %v3151
        %3683 = vmatprep.mubr.bf16.mxu0 %v2262
        %3684 = vmatmul.mubr.bf16.gmra.mrb[0].mxu0 %v2261
        %v3685 = vpop.f32.mrb[0].mxu0
        %v3686 = vadd.f32 %v3645, %v3685
        %v3687 = vpop.f32.mrb[0].mxu0
        %v3688 = vadd.f32 %v3647, %v3687
        %v3689 = vpop.f32.mrb[0].mxu0
        %v3690 = vpop.f32.mrb[0].mxu0
        %3691 = vdwg.mxu0
        %3692 = vmatprep.subr.bf16.mxu0 %v3154
        %3693 = vmatpush1.bf16.msra.mxu0 %v3153
        %3694 = vmatprep.subr.bf16.mxu0 %v3156
        %3695 = vmatpush1.bf16.msra.mxu0 %v3155
        %3696 = vmatprep.subr.bf16.mxu0 %v3158
        %3697 = vmatpush1.bf16.msra.mxu0 %v3157
        %3698 = vmatprep.subr.bf16.mxu0 %v3160
        %3699 = vmatpush1.bf16.msra.mxu0 %v3159
        %3700 = vmatprep.subr.bf16.mxu0 %v3162
        %3701 = vmatpush1.bf16.msra.mxu0 %v3161
        %3702 = vmatprep.subr.bf16.mxu0 %v3164
        %3703 = vmatpush1.bf16.msra.mxu0 %v3163
        %3704 = vmatprep.subr.bf16.mxu0 %v3166
        %3705 = vmatpush1.bf16.msra.mxu0 %v3165
        %3706 = vmatprep.subr.bf16.mxu0 %v3168
        %3707 = vmatpush1.bf16.msra.mxu0 %v3167
        %3708 = vmatprep.subr.bf16.mxu0 %v3170
        %3709 = vmatpush1.bf16.msra.mxu0 %v3169
        %3710 = vmatprep.subr.bf16.mxu0 %v3172
        %3711 = vmatpush1.bf16.msra.mxu0 %v3171
        %3712 = vmatprep.subr.bf16.mxu0 %v3174
        %3713 = vmatpush1.bf16.msra.mxu0 %v3173
        %3714 = vmatprep.subr.bf16.mxu0 %v3176
        %3715 = vmatpush1.bf16.msra.mxu0 %v3175
        %3716 = vmatprep.subr.bf16.mxu0 %v3178
        %3717 = vmatpush1.bf16.msra.mxu0 %v3177
        %3718 = vmatprep.subr.bf16.mxu0 %v3180
        %3719 = vmatpush1.bf16.msra.mxu0 %v3179
        %3720 = vmatprep.subr.bf16.mxu0 %v3182
        %3721 = vmatpush1.bf16.msra.mxu0 %v3181
        %3722 = vmatprep.subr.bf16.mxu0 %v3184
        %3723 = vmatpush1.bf16.msra.mxu0 %v3183
        %3724 = vmatprep.mubr.bf16.mxu0 %v2264
        %3725 = vmatmul.mubr.bf16.gmra.mrb[0].mxu0 %v2263
        %v3726 = vpop.f32.mrb[0].mxu0
        %v3727 = vadd.f32 %v3686, %v3726
        %v3728 = vpop.f32.mrb[0].mxu0
        %v3729 = vadd.f32 %v3688, %v3728
        %v3730 = vpop.f32.mrb[0].mxu0
        %v3731 = vpop.f32.mrb[0].mxu0
        %3732 = vdwg.mxu0
        %3733 = vmatprep.subr.bf16.mxu0 %v3186
        %3734 = vmatpush1.bf16.msra.mxu0 %v3185
        %3735 = vmatprep.subr.bf16.mxu0 %v3188
        %3736 = vmatpush1.bf16.msra.mxu0 %v3187
        %3737 = vmatprep.subr.bf16.mxu0 %v3190
        %3738 = vmatpush1.bf16.msra.mxu0 %v3189
        %3739 = vmatprep.subr.bf16.mxu0 %v3192
        %3740 = vmatpush1.bf16.msra.mxu0 %v3191
        %3741 = vmatprep.subr.bf16.mxu0 %v3194
        %3742 = vmatpush1.bf16.msra.mxu0 %v3193
        %3743 = vmatprep.subr.bf16.mxu0 %v3196
        %3744 = vmatpush1.bf16.msra.mxu0 %v3195
        %3745 = vmatprep.subr.bf16.mxu0 %v3198
        %3746 = vmatpush1.bf16.msra.mxu0 %v3197
        %3747 = vmatprep.subr.bf16.mxu0 %v3200
        %3748 = vmatpush1.bf16.msra.mxu0 %v3199
        %3749 = vmatprep.subr.bf16.mxu0 %v3202
        %3750 = vmatpush1.bf16.msra.mxu0 %v3201
        %3751 = vmatprep.subr.bf16.mxu0 %v3204
        %3752 = vmatpush1.bf16.msra.mxu0 %v3203
        %3753 = vmatprep.subr.bf16.mxu0 %v3206
        %3754 = vmatpush1.bf16.msra.mxu0 %v3205
        %3755 = vmatprep.subr.bf16.mxu0 %v3208
        %3756 = vmatpush1.bf16.msra.mxu0 %v3207
        %3757 = vmatprep.subr.bf16.mxu0 %v3210
        %3758 = vmatpush1.bf16.msra.mxu0 %v3209
        %3759 = vmatprep.subr.bf16.mxu0 %v3212
        %3760 = vmatpush1.bf16.msra.mxu0 %v3211
        %3761 = vmatprep.subr.bf16.mxu0 %v3214
        %3762 = vmatpush1.bf16.msra.mxu0 %v3213
        %3763 = vmatprep.subr.bf16.mxu0 %v3216
        %3764 = vmatpush1.bf16.msra.mxu0 %v3215
        %3765 = vmatprep.mubr.bf16.mxu0 %v2266
        %3766 = vmatmul.mubr.bf16.gmra.mrb[0].mxu0 %v2265
        %v3767 = vpop.f32.mrb[0].mxu0
        %v3768 = vadd.f32 %v3727, %v3767
        %v3769 = vpop.f32.mrb[0].mxu0
        %v3770 = vadd.f32 %v3729, %v3769
        %v3771 = vpop.f32.mrb[0].mxu0
        %v3772 = vpop.f32.mrb[0].mxu0
        %3773 = vdwg.mxu0
        %3774 = vmatprep.subr.bf16.mxu0 %v3218
        %3775 = vmatpush1.bf16.msra.mxu0 %v3217
        %3776 = vmatprep.subr.bf16.mxu0 %v3220
        %3777 = vmatpush1.bf16.msra.mxu0 %v3219
        %3778 = vmatprep.subr.bf16.mxu0 %v3222
        %3779 = vmatpush1.bf16.msra.mxu0 %v3221
        %3780 = vmatprep.subr.bf16.mxu0 %v3224
        %3781 = vmatpush1.bf16.msra.mxu0 %v3223
        %3782 = vmatprep.subr.bf16.mxu0 %v3226
        %3783 = vmatpush1.bf16.msra.mxu0 %v3225
        %3784 = vmatprep.subr.bf16.mxu0 %v3228
        %3785 = vmatpush1.bf16.msra.mxu0 %v3227
        %3786 = vmatprep.subr.bf16.mxu0 %v3230
        %3787 = vmatpush1.bf16.msra.mxu0 %v3229
        %3788 = vmatprep.subr.bf16.mxu0 %v3232
        %3789 = vmatpush1.bf16.msra.mxu0 %v3231
        %3790 = vmatprep.subr.bf16.mxu0 %v3234
        %3791 = vmatpush1.bf16.msra.mxu0 %v3233
        %3792 = vmatprep.subr.bf16.mxu0 %v3236
        %3793 = vmatpush1.bf16.msra.mxu0 %v3235
        %3794 = vmatprep.subr.bf16.mxu0 %v3238
        %3795 = vmatpush1.bf16.msra.mxu0 %v3237
        %3796 = vmatprep.subr.bf16.mxu0 %v3240
        %3797 = vmatpush1.bf16.msra.mxu0 %v3239
        %3798 = vmatprep.subr.bf16.mxu0 %v3242
        %3799 = vmatpush1.bf16.msra.mxu0 %v3241
        %3800 = vmatprep.subr.bf16.mxu0 %v3244
        %3801 = vmatpush1.bf16.msra.mxu0 %v3243
        %3802 = vmatprep.subr.bf16.mxu0 %v3246
        %3803 = vmatpush1.bf16.msra.mxu0 %v3245
        %3804 = vmatprep.subr.bf16.mxu0 %v3248
        %3805 = vmatpush1.bf16.msra.mxu0 %v3247
        %3806 = vmatprep.mubr.bf16.mxu0 %v2268
        %3807 = vmatmul.mubr.bf16.gmra.mrb[0].mxu0 %v2267
        %v3808 = vpop.f32.mrb[0].mxu0
        %v3809 = vadd.f32 %v3768, %v3808
        %v3810 = vpop.f32.mrb[0].mxu0
        %v3811 = vadd.f32 %v3770, %v3810
        %v3812 = vpop.f32.mrb[0].mxu0
        %v3813 = vpop.f32.mrb[0].mxu0
        %3814 = vdwg.mxu0
        %3815 = vmatprep.subr.bf16.mxu0 %v3250
        %3816 = vmatpush1.bf16.msra.mxu0 %v3249
        %3817 = vmatprep.subr.bf16.mxu0 %v3252
        %3818 = vmatpush1.bf16.msra.mxu0 %v3251
        %3819 = vmatprep.subr.bf16.mxu0 %v3254
        %3820 = vmatpush1.bf16.msra.mxu0 %v3253
        %3821 = vmatprep.subr.bf16.mxu0 %v3256
        %3822 = vmatpush1.bf16.msra.mxu0 %v3255
        %3823 = vmatprep.subr.bf16.mxu0 %v3258
        %3824 = vmatpush1.bf16.msra.mxu0 %v3257
        %3825 = vmatprep.subr.bf16.mxu0 %v3260
        %3826 = vmatpush1.bf16.msra.mxu0 %v3259
        %3827 = vmatprep.subr.bf16.mxu0 %v3262
        %3828 = vmatpush1.bf16.msra.mxu0 %v3261
        %3829 = vmatprep.subr.bf16.mxu0 %v3264
        %3830 = vmatpush1.bf16.msra.mxu0 %v3263
        %3831 = vmatprep.subr.bf16.mxu0 %v3266
        %3832 = vmatpush1.bf16.msra.mxu0 %v3265
        %3833 = vmatprep.subr.bf16.mxu0 %v3268
        %3834 = vmatpush1.bf16.msra.mxu0 %v3267
        %3835 = vmatprep.subr.bf16.mxu0 %v3270
        %3836 = vmatpush1.bf16.msra.mxu0 %v3269
        %3837 = vmatprep.subr.bf16.mxu0 %v3272
        %3838 = vmatpush1.bf16.msra.mxu0 %v3271
        %3839 = vmatprep.subr.bf16.mxu0 %v3274
        %3840 = vmatpush1.bf16.msra.mxu0 %v3273
        %3841 = vmatprep.subr.bf16.mxu0 %v3276
        %3842 = vmatpush1.bf16.msra.mxu0 %v3275
        %3843 = vmatprep.subr.bf16.mxu0 %v3278
        %3844 = vmatpush1.bf16.msra.mxu0 %v3277
        %3845 = vmatprep.subr.bf16.mxu0 %v3280
        %3846 = vmatpush1.bf16.msra.mxu0 %v3279
        %3847 = vmatprep.mubr.bf16.mxu0 %v2270
        %3848 = vmatmul.mubr.bf16.gmra.mrb[0].mxu0 %v2269
        %v3849 = vpop.f32.mrb[0].mxu0
        %v3850 = vadd.f32 %v3809, %v3849
        %v3851 = vpop.f32.mrb[0].mxu0
        %v3852 = vadd.f32 %v3811, %v3851
        %v3853 = vpop.f32.mrb[0].mxu0
        %v3854 = vpop.f32.mrb[0].mxu0
        %3855 = vdwg.mxu0
        %3856 = vmatprep.subr.bf16.mxu0 %v3282
        %3857 = vmatpush1.bf16.msra.mxu0 %v3281
        %3858 = vmatprep.subr.bf16.mxu0 %v3284
        %3859 = vmatpush1.bf16.msra.mxu0 %v3283
        %3860 = vmatprep.subr.bf16.mxu0 %v3286
        %3861 = vmatpush1.bf16.msra.mxu0 %v3285
        %3862 = vmatprep.subr.bf16.mxu0 %v3288
        %3863 = vmatpush1.bf16.msra.mxu0 %v3287
        %3864 = vmatprep.subr.bf16.mxu0 %v3290
        %3865 = vmatpush1.bf16.msra.mxu0 %v3289
        %3866 = vmatprep.subr.bf16.mxu0 %v3292
        %3867 = vmatpush1.bf16.msra.mxu0 %v3291
        %3868 = vmatprep.subr.bf16.mxu0 %v3294
        %3869 = vmatpush1.bf16.msra.mxu0 %v3293
        %3870 = vmatprep.subr.bf16.mxu0 %v3296
        %3871 = vmatpush1.bf16.msra.mxu0 %v3295
        %3872 = vmatprep.subr.bf16.mxu0 %v3298
        %3873 = vmatpush1.bf16.msra.mxu0 %v3297
        %3874 = vmatprep.subr.bf16.mxu0 %v3300
        %3875 = vmatpush1.bf16.msra.mxu0 %v3299
        %3876 = vmatprep.subr.bf16.mxu0 %v3302
        %3877 = vmatpush1.bf16.msra.mxu0 %v3301
        %3878 = vmatprep.subr.bf16.mxu0 %v3304
        %3879 = vmatpush1.bf16.msra.mxu0 %v3303
        %3880 = vmatprep.subr.bf16.mxu0 %v3306
        %3881 = vmatpush1.bf16.msra.mxu0 %v3305
        %3882 = vmatprep.subr.bf16.mxu0 %v3308
        %3883 = vmatpush1.bf16.msra.mxu0 %v3307
        %3884 = vmatprep.subr.bf16.mxu0 %v3310
        %3885 = vmatpush1.bf16.msra.mxu0 %v3309
        %3886 = vmatprep.subr.bf16.mxu0 %v3312
        %3887 = vmatpush1.bf16.msra.mxu0 %v3311
        %3888 = vmatprep.mubr.bf16.mxu0 %v2272
        %3889 = vmatmul.mubr.bf16.gmra.mrb[0].mxu0 %v2271
        %v3890 = vpop.f32.mrb[0].mxu0
        %v3891 = vadd.f32 %v3850, %v3890
        %v3892 = vpop.f32.mrb[0].mxu0
        %v3893 = vadd.f32 %v3852, %v3892
        %v3894 = vpop.f32.mrb[0].mxu0
        %v3895 = vpop.f32.mrb[0].mxu0
        %3896 = vdwg.mxu0
        %3897 = vst [vmem:[%s204] sm:$0xff] %v3891
        %3898 = vst [vmem:[%s204 + $0x8] sm:$0xff] %v3893
        %s3899 = sand.u32 %s97, 1
        %s3900 = scalar_lea.sflag [#allocation4], %s3899
        %s3901 = sand.u32 %s97, 1
        %s3902 = smul.addr %s3901, 16
        %s3903 = scalar_lea.vmem [#allocation7], %s3902
        // Predicated region
        $region41: #{tpu_custom_call.1} parent=31 // pred_check
          %p3904 = pneg %p107
        $region42: #{tpu_custom_call.1} parent=31 // pred_check_branch
          %3906 = sbr.rel (%p3904) target = $region44
        $region43: #{tpu_custom_call.1} parent=31 // pred_region
          %s3908 = ssub.s32 256, 256
          %3909 = vsyncadd %s3900, %s3908
          %s3910 = smul.addr %s21, 2
          %s3911 = smul.addr %s3910, 128
          %s3912 = scalar_lea.hbm %s3, %s3911
          %s3914 = sshll.u32 %s3903, 4
          %s3915 = int_to_ptr.vmem [resolvable:$true] %s3914
          %3917 = dma.vmem_to_hbm [thread:$0]  %s3915, 256, %s3912, %s3900
        $region44: #{tpu_custom_call.1} parent=31 // pred_fallthru
          _
      $region32: #{tpu_custom_call.1} parent=5 // pred_fallthru
        _
      %p3918 = scmp.le.s32.totalorder 2, %s16
      // Predicated region
      $region45: #{tpu_custom_call.1} parent=5 // pred_check
        %p3919 = pneg %p3918
      $region46: #{tpu_custom_call.1} parent=5 // pred_check_branch
        %3921 = sbr.rel (%p3919) target = $region48
      $region47: #{tpu_custom_call.1} parent=5 // pred_region
        %s3922 = ssub.s32 %s16, 2
        // Predicated region
        $region49: #{tpu_custom_call.1} parent=47 // pred_check
          %p3923 = pneg %p113
        $region50: #{tpu_custom_call.1} parent=47 // pred_check_branch
          %3925 = sbr.rel (%p3923) target = $region52
        $region51: #{tpu_custom_call.1} parent=47 // pred_region
          %s3926 = sand.u32 %s98, 1
          %s3927 = scalar_lea.sflag [#allocation4], %s3926
          %s3928 = sand.u32 %s98, 1
          %s3929 = smul.addr %s3928, 16
          %s3930 = scalar_lea.vmem [#allocation7], %s3929
          %3931 = dma.done %s3927, 256
        $region52: #{tpu_custom_call.1} parent=47 // pred_fallthru
          _
      $region48: #{tpu_custom_call.1} parent=5 // pred_fallthru
        _
    $region6: #{tpu_custom_call.1} parent=1 // loop_footer
      %s20 = sadd.s32 1, %s16
    $region7: #{tpu_custom_call.1} parent=1 // loop_footer_branch
      %15 = sbr.rel target = $region3
    $region8: #{tpu_custom_call.1} parent=1 // loop_exit
      _
    %3932 = vsyncpa [#allocation3], 1
    %s3933 = scalar_lea.sflag [#allocation3], 1
    %3934 = vsyncpa %s3933, 1
    %3935 = vsyncpa [#allocation6], 1
    %3936 = vsyncpa [#allocation4], 1
    %s3937 = scalar_lea.sflag [#allocation4], 1
    %3938 = vsyncpa %s3937, 1

</llo_original>
